<compile_context>
chip_gen: v5e
topology: v5e:2x2
jax: 0.10.0
libtpu: 0.0.40
codegen_flags: <defaults>
</compile_context>

<pallas_src>
import jax
import jax.numpy as jnp
import numpy as np
from jax.experimental import pallas as pl
from jax.experimental.pallas import tpu as pltpu

_BN_EPS = 1e-5

_COMPILER_PARAMS = pltpu.CompilerParams(
    dimension_semantics=("parallel",),
    vmem_limit_bytes=32 * 1024 * 1024,
)


# ----------------------------- Pallas kernels -----------------------------

def conv_relu_pool_kernel(p_ref, w_ref, b_ref, o_ref):
    """Fused conv (im2col matmul) + 2x2 max-pool + bias + ReLU for one row tile.

    p_ref: (4*TN, F) bf16 -- quadrant-major im2col patches of TN pooled outputs.
    w_ref: (F, Cout)  bf16 -- conv weights with BatchNorm folded in.
    b_ref: (1, Cout)  f32  -- folded bias.
    o_ref: (TN, Cout) f32  -- pooled activations.
    """
    tn = o_ref.shape[0]
    # One MXU push for all four pooling-window positions.
    y = jnp.dot(p_ref[...], w_ref[...], preferred_element_type=jnp.float32)
    m = jnp.maximum(jnp.maximum(y[:tn], y[tn:2 * tn]),
                    jnp.maximum(y[2 * tn:3 * tn], y[3 * tn:]))
    # bias + ReLU once, after the max (identical result, 1/4 of the VPU work).
    o_ref[...] = jnp.maximum(m + b_ref[...], 0.0).astype(o_ref.dtype)


def mlp_kernel(x_ref, w1_ref, b1_ref, w2_ref, b2_ref, o_ref):
    """Linear(1152 -> 256) + ReLU + [Dropout == id] + Linear(256 -> num_classes)."""
    h = jnp.dot(x_ref[...], w1_ref[...], preferred_element_type=jnp.float32) + b1_ref[...]
    h = jnp.maximum(h, 0.0)
    o = jnp.dot(h.astype(jnp.bfloat16), w2_ref[...],
                preferred_element_type=jnp.float32) + b2_ref[...]
    o_ref[...] = o.astype(o_ref.dtype)


# ----------------------------- JAX glue / wrappers -----------------------------

def _round_up(n, m):
    return ((n + m - 1) // m) * m


def _pick_tile(n, cap=256, align=32):
    return min(cap, _round_up(n, align))


def _im2col_pooled_tiles(x_nhwc, tn):
    """(B,H,W,Cin) -> (ntiles*4*tn, 9*Cin) bf16; inside each tile the 4 pooling-window
    quadrants are stacked as contiguous tn-row slabs (quadrant-major)."""
    x = x_nhwc.astype(jnp.bfloat16)
    B, H, W, Cin = x.shape
    Ho, Wo, F = H // 2, W // 2, 9 * Cin
    xp = jnp.pad(x, ((0, 0), (1, 1), (1, 1), (0, 0)))                    # conv padding=1
    cols = [xp[:, dy:dy + H, dx:dx + W, :] for dy in range(3) for dx in range(3)]
    patches = jnp.concatenate(cols, axis=-1)                             # (B,H,W,9*Cin), (dy,dx,ci)
    patches = patches[:, :2 * Ho, :2 * Wo, :]                            # MaxPool floor for odd H/W
    p = patches.reshape(B, Ho, 2, Wo, 2, F).transpose(2, 4, 0, 1, 3, 5)  # (2,2,B,Ho,Wo,F)
    p = p.reshape(4, B * Ho * Wo, F)                                     # (quadrant, n, F)
    n = B * Ho * Wo
    npad = _round_up(n, tn)
    p = jnp.pad(p, ((0, 0), (0, npad - n), (0, 0)))
    ntiles = npad // tn
    p = p.reshape(4, ntiles, tn, F).transpose(1, 0, 2, 3).reshape(ntiles * 4 * tn, F)
    return p, n, Ho, Wo, ntiles


def conv_relu_pool(x_nhwc, w2d, bias):
    B, H, W, _ = x_nhwc.shape
    F, Cout = w2d.shape
    tn = _pick_tile(B * (H // 2) * (W // 2))
    p, n, Ho, Wo, ntiles = _im2col_pooled_tiles(x_nhwc, tn)
    out = pl.pallas_call(
        conv_relu_pool_kernel,
        out_shape=jax.ShapeDtypeStruct((ntiles * tn, Cout), jnp.float32),
        grid=(ntiles,),
        in_specs=[pl.BlockSpec((4 * tn, F), lambda i: (i, 0)),
                  pl.BlockSpec((F, Cout), lambda i: (0, 0)),
                  pl.BlockSpec((1, Cout), lambda i: (0, 0))],
        out_specs=pl.BlockSpec((tn, Cout), lambda i: (i, 0)),
        compiler_params=_COMPILER_PARAMS,
    )(p, w2d, bias)
    return out[:n].reshape(B, Ho, Wo, Cout)


def fc_layers(y_nhwc, w1, b1, w2, b2):
    B = y_nhwc.shape[0]
    flat = y_nhwc.reshape(B, -1).astype(jnp.bfloat16)   # NHWC flatten (fc1 columns pre-permuted)
    Fin, H1 = w1.shape
    C = w2.shape[1]
    tb = _pick_tile(B, cap=256, align=8)
    bpad = _round_up(B, tb)
    flat = jnp.pad(flat, ((0, bpad - B), (0, 0)))
    out = pl.pallas_call(
        mlp_kernel,
        out_shape=jax.ShapeDtypeStruct((bpad, C), jnp.float32),
        grid=(bpad // tb,),
        in_specs=[pl.BlockSpec((tb, Fin), lambda i: (i, 0)),
                  pl.BlockSpec((Fin, H1), lambda i: (0, 0)),
                  pl.BlockSpec((1, H1), lambda i: (0, 0)),
                  pl.BlockSpec((H1, C), lambda i: (0, 0)),
                  pl.BlockSpec((1, C), lambda i: (0, 0))],
        out_specs=pl.BlockSpec((tb, C), lambda i: (i, 0)),
        compiler_params=_COMPILER_PARAMS,
    )(flat, w1, b1, w2, b2)
    return out[:B]


def torch_cnn_forward(x_nchw, p):
    x = jnp.transpose(x_nchw, (0, 2, 3, 1))                         # NCHW -> NHWC (glue)
    y = conv_relu_pool(x, p["c1_w"], p["c1_b"])                     # (B, 14, 14,  32)
    y = conv_relu_pool(y, p["c2_w"], p["c2_b"])                     # (B,  7,  7,  64)
    y = conv_relu_pool(y, p["c3_w"], p["c3_b"])                     # (B,  3,  3, 128)
    return fc_layers(y, p["fc1_w"], p["fc1_b"], p["fc2_w"], p["fc2_b"])


# ----------------------------- One-time parameter packing -----------------------------

def _fold_conv_bn(w_oihw, b, gamma, beta, mean, var):
    """Fold eval-mode BatchNorm into the conv and reshape to a (9*Cin, Cout) matmul operand."""
    scale = gamma / jnp.sqrt(var + _BN_EPS)
    w_eff = w_oihw * scale[:, None, None, None]
    b_eff = (b - mean) * scale + beta
    cout, cin = w_oihw.shape[0], w_oihw.shape[1]
    # (Cout,Cin,kH,kW) -> (kH,kW,Cin,Cout) -> (9*Cin, Cout), matching the (dy,dx,ci) patch order.
    w2d = jnp.transpose(w_eff, (2, 3, 1, 0)).reshape(9 * cin, cout)
    return w2d.astype(jnp.bfloat16), b_eff.reshape(1, cout).astype(jnp.float32)


def pack_params(params):
    """One-time transform of PyTorch-layout params into kernel-ready bf16 matmul layouts."""
    p = {}
    for i in (1, 2, 3):
        p[f"c{i}_w"], p[f"c{i}_b"] = _fold_conv_bn(
            params[f"conv{i}_w"], params[f"conv{i}_b"],
            params[f"bn{i}_g"], params[f"bn{i}_b"],
            params[f"bn{i}_m"], params[f"bn{i}_v"])
    # fc1 columns: PyTorch NCHW-flatten order (c*9 + h*3 + w) -> NHWC order ((h*3+w)*128 + c),
    # so the runtime transpose of the activations disappears.
    h1, fin = params["fc1_w"].shape                                   # (256, 128*3*3)
    w1 = params["fc1_w"].reshape(h1, 128, 3, 3).transpose(0, 2, 3, 1).reshape(h1, fin)
    p["fc1_w"] = w1.T.astype(jnp.bfloat16)                            # (1152, 256)
    p["fc1_b"] = params["fc1_b"].reshape(1, -1).astype(jnp.float32)
    p["fc2_w"] = params["fc2_w"].T.astype(jnp.bfloat16)               # (256, num_classes)
    p["fc2_b"] = params["fc2_b"].reshape(1, -1).astype(jnp.float32)
    return p


# ----------------------------- Parameters (deterministic) -----------------------------

def init_params(key, input_channels, num_classes):
    ks = jax.random.split(key, 8)

    def w(k, shape, fan_in):
        return jax.random.normal(k, shape, jnp.float32) / np.sqrt(fan_in)

    def bn(k, c):
        kg, kb, km, kv = jax.random.split(k, 4)
        return {"g": 1.0 + 0.1 * jax.random.normal(kg, (c,), jnp.float32),
                "b": 0.1 * jax.random.normal(kb, (c,), jnp.float32),
                "m": 0.1 * jax.random.normal(km, (c,), jnp.float32),
                "v": 0.5 + jax.random.uniform(kv, (c,), jnp.float32)}

    params = {
        "conv1_w": w(ks[0], (32, input_channels, 3, 3), 9 * input_channels),
        "conv1_b": jnp.full((32,), 0.01, jnp.float32),
        "conv2_w": w(ks[1], (64, 32, 3, 3), 9 * 32),
        "conv2_b": jnp.full((64,), 0.01, jnp.float32),
        "conv3_w": w(ks[2], (128, 64, 3, 3), 9 * 64),
        "conv3_b": jnp.full((128,), 0.01, jnp.float32),
        "fc1_w": w(ks[3], (256, 128 * 3 * 3), 128 * 3 * 3),
        "fc1_b": jnp.full((256,), 0.01, jnp.float32),
        "fc2_w": w(ks[4], (num_classes, 256), 256),
        "fc2_b": jnp.zeros((num_classes,), jnp.float32),
    }
    for i, c, k in ((1, 32, ks[5]), (2, 64, ks[6]), (3, 128, ks[7])):
        b = bn(k, c)
        params.update({f"bn{i}_g": b["g"], f"bn{i}_b": b["b"],
                       f"bn{i}_m": b["m"], f"bn{i}_v": b["v"]})
    return params


# ----------------------------- Pure-JAX reference -----------------------------

def reference_forward(x_nchw, params):
    """Eval-mode reference with the same bf16-operand / f32-accumulate numerics."""
    def conv_block(x, w, b, g, be, m, v):
        scale = g / jnp.sqrt(v + _BN_EPS)
        w_eff = (w * scale[:, None, None, None]).astype(jnp.bfloat16)
        b_eff = (b - m) * scale + be
        y = jax.lax.conv_general_dilated(
            x.astype(jnp.bfloat16), w_eff, window_strides=(1, 1), padding="SAME",
            dimension_numbers=("NCHW", "OIHW", "NCHW"),
            preferred_element_type=jnp.float32)
        y = jnp.maximum(y + b_eff[None, :, None, None], 0.0)
        return jax.lax.reduce_window(y, -jnp.inf, jax.lax.max,
                                     (1, 1, 2, 2), (1, 1, 2, 2), "VALID")

    y = x_nchw
    for i in (1, 2, 3):
        y = conv_block(y, params[f"conv{i}_w"], params[f"conv{i}_b"],
                       params[f"bn{i}_g"], params[f"bn{i}_b"],
                       params[f"bn{i}_m"], params[f"bn{i}_v"])
    flat = y.reshape(y.shape[0], -1)                                 # PyTorch NCHW flatten
    h = jnp.dot(flat.astype(jnp.bfloat16), params["fc1_w"].T.astype(jnp.bfloat16),
                preferred_element_type=jnp.float32) + params["fc1_b"]
    h = jnp.maximum(h, 0.0)
    return jnp.dot(h.astype(jnp.bfloat16), params["fc2_w"].T.astype(jnp.bfloat16),
                   preferred_element_type=jnp.float32) + params["fc2_b"]


if __name__ == "__main__":
    key = jax.random.PRNGKey(0)
    k_param, k_x = jax.random.split(key)

    input_channels, num_classes = 1, 10
    params = init_params(k_param, input_channels, num_classes)
    packed = pack_params(params)

    # 28x28 spatial is required by the module's hard-coded Linear(128*3*3, 256).
    x = jax.random.normal(k_x, (2, input_channels, 28, 28), jnp.float32)

    fwd = jax.jit(torch_cnn_forward)
    out = jax.block_until_ready(fwd(x, packed))
    assert out.shape == (2, num_classes), out.shape

    ref = jax.block_until_ready(reference_forward(x, params))
    np.testing.assert_allclose(np.asarray(out), np.asarray(ref), rtol=2e-2, atol=2e-2)

    print("KERNEL_OK")
</pallas_src>

<mosaic_0001>
module attributes {stable_mosaic.version = 11 : i64} {
  func.func @conv_relu_pool_kernel(%arg0: i32, %arg1: memref<1024x9xbf16, #tpu.memory_space<vmem>>, %arg2: memref<9x32xbf16, #tpu.memory_space<vmem>>, %arg3: memref<1x32xf32, #tpu.memory_space<vmem>>, %arg4: memref<256x32xf32, #tpu.memory_space<vmem>>) attributes {dimension_semantics = [#tpu.dimension_semantics<parallel>], iteration_bounds = array<i64: 2>, scalar_prefetch = 0 : i64, scratch_operands = 0 : i64, tpu.core_type = #tpu.core_type<tc>, window_params = [{transform_indices = @transform_0, window_bounds = array<i64: 1024, 9>}, {pipeline_mode = #tpu.pipeline_mode<synchronous>, transform_indices = @transform_1, window_bounds = array<i64: 9, 32>}, {pipeline_mode = #tpu.pipeline_mode<synchronous>, transform_indices = @transform_2, window_bounds = array<i64: 1, 32>}, {transform_indices = @transform_3, window_bounds = array<i64: 256, 32>}]} {
    %c0 = arith.constant 0 : index
    %c0_0 = arith.constant 0 : index
    %0 = vector.load %arg1[%c0, %c0_0] : memref<1024x9xbf16, #tpu.memory_space<vmem>>, vector<1024x9xbf16>
    %c0_1 = arith.constant 0 : index
    %c0_2 = arith.constant 0 : index
    %1 = vector.load %arg2[%c0_1, %c0_2] : memref<9x32xbf16, #tpu.memory_space<vmem>>, vector<9x32xbf16>
    %cst = arith.constant dense<0.000000e+00> : vector<1024x32xf32>
    %2 = tpu.matmul %0, %1, %cst {dimension_numbers = #tpu.dot_dimension_numbers<[1], [0], [0], [1], [0, 0, 1, 1], [], []>} : vector<1024x9xbf16>, vector<9x32xbf16>, vector<1024x32xf32> -> vector<1024x32xf32>
    %3 = vector.extract_strided_slice %2 {offsets = [0, 0], sizes = [256, 32], strides = [1, 1]} : vector<1024x32xf32> to vector<256x32xf32>
    %4 = vector.extract_strided_slice %2 {offsets = [256, 0], sizes = [256, 32], strides = [1, 1]} : vector<1024x32xf32> to vector<256x32xf32>
    %5 = arith.maximumf %3, %4 : vector<256x32xf32>
    %6 = vector.extract_strided_slice %2 {offsets = [512, 0], sizes = [256, 32], strides = [1, 1]} : vector<1024x32xf32> to vector<256x32xf32>
    %7 = vector.extract_strided_slice %2 {offsets = [768, 0], sizes = [256, 32], strides = [1, 1]} : vector<1024x32xf32> to vector<256x32xf32>
    %8 = arith.maximumf %6, %7 : vector<256x32xf32>
    %9 = arith.maximumf %5, %8 : vector<256x32xf32>
    %c0_3 = arith.constant 0 : index
    %c0_4 = arith.constant 0 : index
    %10 = vector.load %arg3[%c0_3, %c0_4] : memref<1x32xf32, #tpu.memory_space<vmem>>, vector<1x32xf32>
    %11 = vector.broadcast %10 : vector<1x32xf32> to vector<256x32xf32>
    %12 = arith.addf %9, %11 : vector<256x32xf32>
    %cst_5 = arith.constant 0.000000e+00 : f32
    %13 = vector.broadcast %cst_5 : f32 to vector<256x32xf32>
    %14 = arith.maximumf %12, %13 : vector<256x32xf32>
    %c0_6 = arith.constant 0 : index
    %c0_7 = arith.constant 0 : index
    %15 = vector.load %arg4[%c0_6, %c0_7] : memref<256x32xf32, #tpu.memory_space<vmem>>, vector<256x32xf32>
    tpu.vector_store %arg4[%c0_6, %c0_7], %14 {strides = array<i32>} : memref<256x32xf32, #tpu.memory_space<vmem>>, vector<256x32xf32>,
    return
  }
  func.func @transform_0(%arg0: i32) -> (i32, i32) {
    %c0_i32 = arith.constant 0 : i32
    %c0_i32_0 = arith.constant 0 : i32
    return %arg0, %c0_i32 : i32, i32
  }
  func.func @transform_1(%arg0: i32) -> (i32, i32) {
    %c0_i32 = arith.constant 0 : i32
    %c0_i32_0 = arith.constant 0 : i32
    %c0_i32_1 = arith.constant 0 : i32
    return %c0_i32, %c0_i32_0 : i32, i32
  }
  func.func @transform_2(%arg0: i32) -> (i32, i32) {
    %c0_i32 = arith.constant 0 : i32
    %c0_i32_0 = arith.constant 0 : i32
    %c0_i32_1 = arith.constant 0 : i32
    return %c0_i32, %c0_i32_0 : i32, i32
  }
  func.func @transform_3(%arg0: i32) -> (i32, i32) {
    %c0_i32 = arith.constant 0 : i32
    %c0_i32_0 = arith.constant 0 : i32
    return %arg0, %c0_i32 : i32, i32
  }
}

module attributes {stable_mosaic.version = 11 : i64} {
  func.func @conv_relu_pool_kernel(%arg0: i32, %arg1: memref<512x288xbf16, #tpu.memory_space<vmem>>, %arg2: memref<288x64xbf16, #tpu.memory_space<vmem>>, %arg3: memref<1x64xf32, #tpu.memory_space<vmem>>, %arg4: memref<128x64xf32, #tpu.memory_space<vmem>>) attributes {dimension_semantics = [#tpu.dimension_semantics<parallel>], iteration_bounds = array<i64: 1>, scalar_prefetch = 0 : i64, scratch_operands = 0 : i64, tpu.core_type = #tpu.core_type<tc>, window_params = [{transform_indices = @transform_0, window_bounds = array<i64: 512, 288>}, {pipeline_mode = #tpu.pipeline_mode<synchronous>, transform_indices = @transform_1, window_bounds = array<i64: 288, 64>}, {pipeline_mode = #tpu.pipeline_mode<synchronous>, transform_indices = @transform_2, window_bounds = array<i64: 1, 64>}, {transform_indices = @transform_3, window_bounds = array<i64: 128, 64>}]} {
    %c0 = arith.constant 0 : index
    %c0_0 = arith.constant 0 : index
    %0 = vector.load %arg1[%c0, %c0_0] : memref<512x288xbf16, #tpu.memory_space<vmem>>, vector<512x288xbf16>
    %c0_1 = arith.constant 0 : index
    %c0_2 = arith.constant 0 : index
    %1 = vector.load %arg2[%c0_1, %c0_2] : memref<288x64xbf16, #tpu.memory_space<vmem>>, vector<288x64xbf16>
    %cst = arith.constant dense<0.000000e+00> : vector<512x64xf32>
    %2 = tpu.matmul %0, %1, %cst {dimension_numbers = #tpu.dot_dimension_numbers<[1], [0], [0], [1], [0, 0, 1, 1], [], []>} : vector<512x288xbf16>, vector<288x64xbf16>, vector<512x64xf32> -> vector<512x64xf32>
    %3 = vector.extract_strided_slice %2 {offsets = [0, 0], sizes = [128, 64], strides = [1, 1]} : vector<512x64xf32> to vector<128x64xf32>
    %4 = vector.extract_strided_slice %2 {offsets = [128, 0], sizes = [128, 64], strides = [1, 1]} : vector<512x64xf32> to vector<128x64xf32>
    %5 = arith.maximumf %3, %4 : vector<128x64xf32>
    %6 = vector.extract_strided_slice %2 {offsets = [256, 0], sizes = [128, 64], strides = [1, 1]} : vector<512x64xf32> to vector<128x64xf32>
    %7 = vector.extract_strided_slice %2 {offsets = [384, 0], sizes = [128, 64], strides = [1, 1]} : vector<512x64xf32> to vector<128x64xf32>
    %8 = arith.maximumf %6, %7 : vector<128x64xf32>
    %9 = arith.maximumf %5, %8 : vector<128x64xf32>
    %c0_3 = arith.constant 0 : index
    %c0_4 = arith.constant 0 : index
    %10 = vector.load %arg3[%c0_3, %c0_4] : memref<1x64xf32, #tpu.memory_space<vmem>>, vector<1x64xf32>
    %11 = vector.broadcast %10 : vector<1x64xf32> to vector<128x64xf32>
    %12 = arith.addf %9, %11 : vector<128x64xf32>
    %cst_5 = arith.constant 0.000000e+00 : f32
    %13 = vector.broadcast %cst_5 : f32 to vector<128x64xf32>
    %14 = arith.maximumf %12, %13 : vector<128x64xf32>
    %c0_6 = arith.constant 0 : index
    %c0_7 = arith.constant 0 : index
    %15 = vector.load %arg4[%c0_6, %c0_7] : memref<128x64xf32, #tpu.memory_space<vmem>>, vector<128x64xf32>
    tpu.vector_store %arg4[%c0_6, %c0_7], %14 {strides = array<i32>} : memref<128x64xf32, #tpu.memory_space<vmem>>, vector<128x64xf32>,
    return
  }
  func.func @transform_0(%arg0: i32) -> (i32, i32) {
    %c0_i32 = arith.constant 0 : i32
    %c0_i32_0 = arith.constant 0 : i32
    return %arg0, %c0_i32 : i32, i32
  }
  func.func @transform_1(%arg0: i32) -> (i32, i32) {
    %c0_i32 = arith.constant 0 : i32
    %c0_i32_0 = arith.constant 0 : i32
    %c0_i32_1 = arith.constant 0 : i32
    return %c0_i32, %c0_i32_0 : i32, i32
  }
  func.func @transform_2(%arg0: i32) -> (i32, i32) {
    %c0_i32 = arith.constant 0 : i32
    %c0_i32_0 = arith.constant 0 : i32
    %c0_i32_1 = arith.constant 0 : i32
    return %c0_i32, %c0_i32_0 : i32, i32
  }
  func.func @transform_3(%arg0: i32) -> (i32, i32) {
    %c0_i32 = arith.constant 0 : i32
    %c0_i32_0 = arith.constant 0 : i32
    return %arg0, %c0_i32 : i32, i32
  }
}

module attributes {stable_mosaic.version = 11 : i64} {
  func.func @conv_relu_pool_kernel(%arg0: i32, %arg1: memref<128x576xbf16, #tpu.memory_space<vmem>>, %arg2: memref<576x128xbf16, #tpu.memory_space<vmem>>, %arg3: memref<1x128xf32, #tpu.memory_space<vmem>>, %arg4: memref<32x128xf32, #tpu.memory_space<vmem>>) attributes {dimension_semantics = [#tpu.dimension_semantics<parallel>], iteration_bounds = array<i64: 1>, scalar_prefetch = 0 : i64, scratch_operands = 0 : i64, tpu.core_type = #tpu.core_type<tc>, window_params = [{transform_indices = @transform_0, window_bounds = array<i64: 128, 576>}, {pipeline_mode = #tpu.pipeline_mode<synchronous>, transform_indices = @transform_1, window_bounds = array<i64: 576, 128>}, {pipeline_mode = #tpu.pipeline_mode<synchronous>, transform_indices = @transform_2, window_bounds = array<i64: 1, 128>}, {transform_indices = @transform_3, window_bounds = array<i64: 32, 128>}]} {
    %c0 = arith.constant 0 : index
    %c0_0 = arith.constant 0 : index
    %0 = vector.load %arg1[%c0, %c0_0] : memref<128x576xbf16, #tpu.memory_space<vmem>>, vector<128x576xbf16>
    %c0_1 = arith.constant 0 : index
    %c0_2 = arith.constant 0 : index
    %1 = vector.load %arg2[%c0_1, %c0_2] : memref<576x128xbf16, #tpu.memory_space<vmem>>, vector<576x128xbf16>
    %cst = arith.constant dense<0.000000e+00> : vector<128x128xf32>
    %2 = tpu.matmul %0, %1, %cst {dimension_numbers = #tpu.dot_dimension_numbers<[1], [0], [0], [1], [0, 0, 1, 1], [], []>} : vector<128x576xbf16>, vector<576x128xbf16>, vector<128x128xf32> -> vector<128x128xf32>
    %3 = vector.extract_strided_slice %2 {offsets = [0, 0], sizes = [32, 128], strides = [1, 1]} : vector<128x128xf32> to vector<32x128xf32>
    %4 = vector.extract_strided_slice %2 {offsets = [32, 0], sizes = [32, 128], strides = [1, 1]} : vector<128x128xf32> to vector<32x128xf32>
    %5 = arith.maximumf %3, %4 : vector<32x128xf32>
    %6 = vector.extract_strided_slice %2 {offsets = [64, 0], sizes = [32, 128], strides = [1, 1]} : vector<128x128xf32> to vector<32x128xf32>
    %7 = vector.extract_strided_slice %2 {offsets = [96, 0], sizes = [32, 128], strides = [1, 1]} : vector<128x128xf32> to vector<32x128xf32>
    %8 = arith.maximumf %6, %7 : vector<32x128xf32>
    %9 = arith.maximumf %5, %8 : vector<32x128xf32>
    %c0_3 = arith.constant 0 : index
    %c0_4 = arith.constant 0 : index
    %10 = vector.load %arg3[%c0_3, %c0_4] : memref<1x128xf32, #tpu.memory_space<vmem>>, vector<1x128xf32>
    %11 = vector.broadcast %10 : vector<1x128xf32> to vector<32x128xf32>
    %12 = arith.addf %9, %11 : vector<32x128xf32>
    %cst_5 = arith.constant 0.000000e+00 : f32
    %13 = vector.broadcast %cst_5 : f32 to vector<32x128xf32>
    %14 = arith.maximumf %12, %13 : vector<32x128xf32>
    %c0_6 = arith.constant 0 : index
    %c0_7 = arith.constant 0 : index
    %15 = vector.load %arg4[%c0_6, %c0_7] : memref<32x128xf32, #tpu.memory_space<vmem>>, vector<32x128xf32>
    tpu.vector_store %arg4[%c0_6, %c0_7], %14 {strides = array<i32>} : memref<32x128xf32, #tpu.memory_space<vmem>>, vector<32x128xf32>,
    return
  }
  func.func @transform_0(%arg0: i32) -> (i32, i32) {
    %c0_i32 = arith.constant 0 : i32
    %c0_i32_0 = arith.constant 0 : i32
    return %arg0, %c0_i32 : i32, i32
  }
  func.func @transform_1(%arg0: i32) -> (i32, i32) {
    %c0_i32 = arith.constant 0 : i32
    %c0_i32_0 = arith.constant 0 : i32
    %c0_i32_1 = arith.constant 0 : i32
    return %c0_i32, %c0_i32_0 : i32, i32
  }
  func.func @transform_2(%arg0: i32) -> (i32, i32) {
    %c0_i32 = arith.constant 0 : i32
    %c0_i32_0 = arith.constant 0 : i32
    %c0_i32_1 = arith.constant 0 : i32
    return %c0_i32, %c0_i32_0 : i32, i32
  }
  func.func @transform_3(%arg0: i32) -> (i32, i32) {
    %c0_i32 = arith.constant 0 : i32
    %c0_i32_0 = arith.constant 0 : i32
    return %arg0, %c0_i32 : i32, i32
  }
}

module attributes {stable_mosaic.version = 11 : i64} {
  func.func @mlp_kernel(%arg0: i32, %arg1: memref<8x1152xbf16, #tpu.memory_space<vmem>>, %arg2: memref<1152x256xbf16, #tpu.memory_space<vmem>>, %arg3: memref<1x256xf32, #tpu.memory_space<vmem>>, %arg4: memref<256x10xbf16, #tpu.memory_space<vmem>>, %arg5: memref<1x10xf32, #tpu.memory_space<vmem>>, %arg6: memref<8x10xf32, #tpu.memory_space<vmem>>) attributes {dimension_semantics = [#tpu.dimension_semantics<parallel>], iteration_bounds = array<i64: 1>, scalar_prefetch = 0 : i64, scratch_operands = 0 : i64, tpu.core_type = #tpu.core_type<tc>, window_params = [{transform_indices = @transform_0, window_bounds = array<i64: 8, 1152>}, {pipeline_mode = #tpu.pipeline_mode<synchronous>, transform_indices = @transform_1, window_bounds = array<i64: 1152, 256>}, {pipeline_mode = #tpu.pipeline_mode<synchronous>, transform_indices = @transform_2, window_bounds = array<i64: 1, 256>}, {pipeline_mode = #tpu.pipeline_mode<synchronous>, transform_indices = @transform_3, window_bounds = array<i64: 256, 10>}, {pipeline_mode = #tpu.pipeline_mode<synchronous>, transform_indices = @transform_4, window_bounds = array<i64: 1, 10>}, {transform_indices = @transform_5, window_bounds = array<i64: 8, 10>}]} {
    %c0 = arith.constant 0 : index
    %c0_0 = arith.constant 0 : index
    %0 = vector.load %arg1[%c0, %c0_0] : memref<8x1152xbf16, #tpu.memory_space<vmem>>, vector<8x1152xbf16>
    %c0_1 = arith.constant 0 : index
    %c0_2 = arith.constant 0 : index
    %1 = vector.load %arg2[%c0_1, %c0_2] : memref<1152x256xbf16, #tpu.memory_space<vmem>>, vector<1152x256xbf16>
    %cst = arith.constant dense<0.000000e+00> : vector<8x256xf32>
    %2 = tpu.matmul %0, %1, %cst {dimension_numbers = #tpu.dot_dimension_numbers<[1], [0], [0], [1], [0, 0, 1, 1], [], []>} : vector<8x1152xbf16>, vector<1152x256xbf16>, vector<8x256xf32> -> vector<8x256xf32>
    %c0_3 = arith.constant 0 : index
    %c0_4 = arith.constant 0 : index
    %3 = vector.load %arg3[%c0_3, %c0_4] : memref<1x256xf32, #tpu.memory_space<vmem>>, vector<1x256xf32>
    %4 = vector.broadcast %3 : vector<1x256xf32> to vector<8x256xf32>
    %5 = arith.addf %2, %4 : vector<8x256xf32>
    %cst_5 = arith.constant 0.000000e+00 : f32
    %6 = vector.broadcast %cst_5 : f32 to vector<8x256xf32>
    %7 = arith.maximumf %5, %6 : vector<8x256xf32>
    %8 = arith.truncf %7 : vector<8x256xf32> to vector<8x256xbf16>
    %c0_6 = arith.constant 0 : index
    %c0_7 = arith.constant 0 : index
    %9 = vector.load %arg4[%c0_6, %c0_7] : memref<256x10xbf16, #tpu.memory_space<vmem>>, vector<256x10xbf16>
    %cst_8 = arith.constant dense<0.000000e+00> : vector<8x10xf32>
    %10 = tpu.matmul %8, %9, %cst_8 {dimension_numbers = #tpu.dot_dimension_numbers<[1], [0], [0], [1], [0, 0, 1, 1], [], []>} : vector<8x256xbf16>, vector<256x10xbf16>, vector<8x10xf32> -> vector<8x10xf32>
    %c0_9 = arith.constant 0 : index
    %c0_10 = arith.constant 0 : index
    %11 = vector.load %arg5[%c0_9, %c0_10] : memref<1x10xf32, #tpu.memory_space<vmem>>, vector<1x10xf32>
    %12 = vector.broadcast %11 : vector<1x10xf32> to vector<8x10xf32>
    %13 = arith.addf %10, %12 : vector<8x10xf32>
    %c0_11 = arith.constant 0 : index
    %c0_12 = arith.constant 0 : index
    %14 = vector.load %arg6[%c0_11, %c0_12] : memref<8x10xf32, #tpu.memory_space<vmem>>, vector<8x10xf32>
    tpu.vector_store %arg6[%c0_11, %c0_12], %13 {strides = array<i32>} : memref<8x10xf32, #tpu.memory_space<vmem>>, vector<8x10xf32>,
    return
  }
  func.func @transform_0(%arg0: i32) -> (i32, i32) {
    %c0_i32 = arith.constant 0 : i32
    %c0_i32_0 = arith.constant 0 : i32
    return %arg0, %c0_i32 : i32, i32
  }
  func.func @transform_1(%arg0: i32) -> (i32, i32) {
    %c0_i32 = arith.constant 0 : i32
    %c0_i32_0 = arith.constant 0 : i32
    %c0_i32_1 = arith.constant 0 : i32
    return %c0_i32, %c0_i32_0 : i32, i32
  }
  func.func @transform_2(%arg0: i32) -> (i32, i32) {
    %c0_i32 = arith.constant 0 : i32
    %c0_i32_0 = arith.constant 0 : i32
    %c0_i32_1 = arith.constant 0 : i32
    return %c0_i32, %c0_i32_0 : i32, i32
  }
  func.func @transform_3(%arg0: i32) -> (i32, i32) {
    %c0_i32 = arith.constant 0 : i32
    %c0_i32_0 = arith.constant 0 : i32
    %c0_i32_1 = arith.constant 0 : i32
    return %c0_i32, %c0_i32_0 : i32, i32
  }
  func.func @transform_4(%arg0: i32) -> (i32, i32) {
    %c0_i32 = arith.constant 0 : i32
    %c0_i32_0 = arith.constant 0 : i32
    %c0_i32_1 = arith.constant 0 : i32
    return %c0_i32, %c0_i32_0 : i32, i32
  }
  func.func @transform_5(%arg0: i32) -> (i32, i32) {
    %c0_i32 = arith.constant 0 : i32
    %c0_i32_0 = arith.constant 0 : i32
    return %arg0, %c0_i32 : i32, i32
  }
}

</mosaic_0001>

<llo_original>
// kernel: torch_cnn_forward.4
$region0: #{torch_cnn_forward.4}
  #allocation0 [shape = 'u32[]', space=smem, size = 0x4, offset = 0x4, fixed_abs, tag = 'smem constant byte address 0x4 - core index']
  #allocation1 [shape = 'u32[72,128]{1,0:T(1,128)}', space=vmem, size = 0x9000, scoped, tag = 'internal scratch']
  %s0 = inlined_call_operand.vmem [shape: bf16[2048,9], index: 0, kind: input, shape index: {}]
  %s1 = inlined_call_operand.vmem [shape: bf16[9,32], index: 1, kind: input, shape index: {}]
  %s2 = inlined_call_operand.vmem [shape: f32[1,32], index: 2, kind: input, shape index: {}]
  %s3 = inlined_call_operand.vmem [shape: f32[512,32], index: 3, kind: output, shape index: {}]
  %s4 = sld [smem:[#allocation0]]
  $region45: #{torch_cnn_forward.4} parent=0
    _
  %s6 = ssub.s32 1, %s4
  %s7 = scalar_select 0, %s6, %s4
  loop: start=0, step=1, limit=4
  $region2: #{torch_cnn_forward.4} parent=0 // loop_pre_header
    _
  $region3: #{torch_cnn_forward.4} parent=0 // loop_header
    %s9 = sphi 0, %s13
    %p10 = scmp.ge.s32.totalorder %s9, 4
    %s19 = sphi 0, %s21
    %s22 = sphi 0, %s19
    %s23 = sphi 0, %s22
    %s39 = sphi 0, %s23
    %s43 = sphi 0, %s43
    %s45 = sphi 0, %s43
    %s46 = sphi 0, %s45
    %s60 = sphi 0, %s46
    %s64 = sphi 0, %s64
    %s66 = sphi 0, %s64
    %s67 = sphi 0, %s66
    %s81 = sphi 0, %s67
    %s87 = sphi 0, %s89
    %s90 = sphi 0, %s87
    %s91 = sphi 0, %s90
    %s107 = sphi 0, %s91
  $region4: #{torch_cnn_forward.4} parent=0 // loop_header_branch
    %12 = sbr.rel (%p10) target = $region8
  $region5: #{torch_cnn_forward.4} parent=0 // loop_body
    %s14 = ssub.s32 %s9, 1
    %s15 = ssub.s32 %s9, 2
    %s16 = sadd.s32 %s9, 1
    %s17 = ssub.s32 %s9, %s16
    %p18 = scmp.eq.s32.totalorder %s17, 0
    %s20 = sadd.s32 %s19, 1
    %s21 = scalar_select %p18, %s19, %s20
    %p24 = pneg %p18
    %p25 = scmp.eq.s32.totalorder %s9, 1
    %p26 = por %p24, %p25
    %p27 = scmp.ne.s32.totalorder %s19, %s22
    %p28 = scmp.eq.s32.totalorder %s9, 0
    %p29 = por %p27, %p28
    %p30 = scmp.ne.s32.totalorder %s19, %s22
    %p31 = scmp.eq.s32.totalorder %s14, 1
    %p32 = por %p30, %p31
    %p33 = scmp.ne.s32.totalorder %s22, %s23
    %p34 = scmp.eq.s32.totalorder %s14, 0
    %p35 = por %p33, %p34
    %p36 = scmp.ne.s32.totalorder %s22, %s23
    %p37 = scmp.eq.s32.totalorder %s15, 1
    %p38 = por %p36, %p37
    %p40 = scmp.ne.s32.totalorder %s23, %s39
    %p41 = scmp.eq.s32.totalorder %s15, 0
    %p42 = por %p40, %p41
    %s44 = sadd.s32 %s43, 1
    %p47 = scmp.eq.s32.totalorder %s9, 1
    %p48 = scmp.ne.s32.totalorder %s43, %s45
    %p49 = scmp.eq.s32.totalorder %s9, 0
    %p50 = por %p48, %p49
    %p51 = scmp.ne.s32.totalorder %s43, %s45
    %p52 = scmp.eq.s32.totalorder %s14, 1
    %p53 = por %p51, %p52
    %p54 = scmp.ne.s32.totalorder %s45, %s46
    %p55 = scmp.eq.s32.totalorder %s14, 0
    %p56 = por %p54, %p55
    %p57 = scmp.ne.s32.totalorder %s45, %s46
    %p58 = scmp.eq.s32.totalorder %s15, 1
    %p59 = por %p57, %p58
    %p61 = scmp.ne.s32.totalorder %s46, %s60
    %p62 = scmp.eq.s32.totalorder %s15, 0
    %p63 = por %p61, %p62
    %s65 = sadd.s32 %s64, 1
    %p68 = scmp.eq.s32.totalorder %s9, 1
    %p69 = scmp.ne.s32.totalorder %s64, %s66
    %p70 = scmp.eq.s32.totalorder %s9, 0
    %p71 = por %p69, %p70
    %p72 = scmp.ne.s32.totalorder %s64, %s66
    %p73 = scmp.eq.s32.totalorder %s14, 1
    %p74 = por %p72, %p73
    %p75 = scmp.ne.s32.totalorder %s66, %s67
    %p76 = scmp.eq.s32.totalorder %s14, 0
    %p77 = por %p75, %p76
    %p78 = scmp.ne.s32.totalorder %s66, %s67
    %p79 = scmp.eq.s32.totalorder %s15, 1
    %p80 = por %p78, %p79
    %p82 = scmp.ne.s32.totalorder %s67, %s81
    %p83 = scmp.eq.s32.totalorder %s15, 0
    %p84 = por %p82, %p83
    %s85 = ssub.s32 %s9, %s16
    %p86 = scmp.eq.s32.totalorder %s85, 0
    %s88 = sadd.s32 %s87, 1
    %s89 = scalar_select %p86, %s87, %s88
    %p92 = pneg %p86
    %p93 = scmp.eq.s32.totalorder %s9, 1
    %p94 = por %p92, %p93
    %p95 = scmp.ne.s32.totalorder %s87, %s90
    %p96 = scmp.eq.s32.totalorder %s9, 0
    %p97 = por %p95, %p96
    %p98 = scmp.ne.s32.totalorder %s87, %s90
    %p99 = scmp.eq.s32.totalorder %s14, 1
    %p100 = por %p98, %p99
    %p101 = scmp.ne.s32.totalorder %s90, %s91
    %p102 = scmp.eq.s32.totalorder %s14, 0
    %p103 = por %p101, %p102
    %p104 = scmp.ne.s32.totalorder %s90, %s91
    %p105 = scmp.eq.s32.totalorder %s15, 1
    %p106 = por %p104, %p105
    %p108 = scmp.ne.s32.totalorder %s91, %s107
    %p109 = scmp.eq.s32.totalorder %s15, 0
    %p110 = por %p108, %p109
    %p111 = scmp.le.s32.totalorder 1, %s9
    %p112 = scmp.lt.s32.totalorder %s9, 3
    %p113 = pnand %p111, %p112
    %p114 = pneg %p113
    // Predicated region
    $region9: #{torch_cnn_forward.4} parent=5 // pred_check
      _
    $region10: #{torch_cnn_forward.4} parent=5 // pred_check_branch
      %116 = sbr.rel (%p113) target = $region12
    $region11: #{torch_cnn_forward.4} parent=5 // pred_region
      %s117 = ssub.s32 %s9, 1
      // Predicated region
      $region13: #{torch_cnn_forward.4} parent=11 // pred_check
        %p118 = pneg %p56
      $region14: #{torch_cnn_forward.4} parent=11 // pred_check_branch
        %120 = sbr.rel (%p118) target = $region16
      $region15: #{torch_cnn_forward.4} parent=11 // pred_region
        _
      $region16: #{torch_cnn_forward.4} parent=11 // pred_fallthru
        _
      // Predicated region
      $region17: #{torch_cnn_forward.4} parent=11 // pred_check
        %p121 = pneg %p77
      $region18: #{torch_cnn_forward.4} parent=11 // pred_check_branch
        %123 = sbr.rel (%p121) target = $region20
      $region19: #{torch_cnn_forward.4} parent=11 // pred_region
        _
      $region20: #{torch_cnn_forward.4} parent=11 // pred_fallthru
        _
    $region12: #{torch_cnn_forward.4} parent=5 // pred_fallthru
      _
    %p124 = scmp.lt.s32.totalorder %s9, 2
    // Predicated region
    $region21: #{torch_cnn_forward.4} parent=5 // pred_check
      %p125 = pneg %p124
    $region22: #{torch_cnn_forward.4} parent=5 // pred_check_branch
      %127 = sbr.rel (%p125) target = $region24
    $region23: #{torch_cnn_forward.4} parent=5 // pred_region
      // Predicated region
      $region25: #{torch_cnn_forward.4} parent=23 // pred_check
        %p128 = pneg %p29
      $region26: #{torch_cnn_forward.4} parent=23 // pred_check_branch
        %130 = sbr.rel (%p128) target = $region28
      $region27: #{torch_cnn_forward.4} parent=23 // pred_region
        %s131 = smul.u32 128, %s9
        %p132 = scmp.lt.s32.totalorder %s131, 255
        %s133 = scalar_select %p132, %s131, 255
        %s134 = smul.addr %s133, 4
        %s135 = scalar_lea.vmem %s0, %s134
        %s136 = smul.u32 128, %s9
      $region28: #{torch_cnn_forward.4} parent=23 // pred_fallthru
        _
    $region24: #{torch_cnn_forward.4} parent=5 // pred_fallthru
      _
    %p137 = scmp.le.s32.totalorder 1, %s9
    %p138 = scmp.lt.s32.totalorder %s9, 3
    %p139 = pnand %p137, %p138
    %p140 = pneg %p139
    // Predicated region
    $region29: #{torch_cnn_forward.4} parent=5 // pred_check
      _
    $region30: #{torch_cnn_forward.4} parent=5 // pred_check_branch
      %142 = sbr.rel (%p139) target = $region32
    $region31: #{torch_cnn_forward.4} parent=5 // pred_region
      %s143 = ssub.s32 %s9, 1
      %s144 = smul.u32 128, %s14
      %p145 = scmp.lt.s32.totalorder %s144, 255
      %s146 = scalar_select %p145, %s144, 255
      %s147 = smul.addr %s146, 4
      %s148 = scalar_lea.vmem %s0, %s147
      %p149 = pneg %p35
      %p150 = pneg %p32
      %p151 = pneg %p56
      %p152 = pneg %p53
      %p153 = pneg %p77
      %p154 = pneg %p74
      %p155 = pneg %p103
      %p156 = pneg %p100
      %s157 = smul.u32 32, %s14
      %p158 = scmp.lt.s32.totalorder %s157, 63
      %s159 = scalar_select %p158, %s157, 63
      %s160 = smul.addr %s159, 8
      %s161 = scalar_lea.vmem %s3, %s160
      %s162 = smul.u32 128, %s14
      %p163 = scmp.lt.s32.totalorder %s162, 255
      %s164 = scalar_select %p163, %s162, 255
      %s165 = smul.addr %s164, 4
      %s166 = scalar_lea.vmem %s0, %s165
      %s167 = smul.u32 128, %s14
      %s168 = smul.u32 32, %s14
      %p169 = scmp.lt.s32.totalorder %s168, 63
      %s170 = scalar_select %p169, %s168, 63
      %s171 = smul.addr %s170, 8
      %s172 = scalar_lea.vmem %s3, %s171
      %s173 = smul.u32 32, %s14
      %v175 = vld [vmem:[%s166] sm:$0xf]
      %v176 = vld [vmem:[%s166 + $0x4] sm:$0xf]
      %v177 = vld [vmem:[%s166 + $0x8] sm:$0xf]
      %v178 = vld [vmem:[%s166 + $0xc] sm:$0xf]
      %v179 = vld [vmem:[%s166 + $0x10] sm:$0xf]
      %v180 = vld [vmem:[%s166 + $0x14] sm:$0xf]
      %v181 = vld [vmem:[%s166 + $0x18] sm:$0xf]
      %v182 = vld [vmem:[%s166 + $0x1c] sm:$0xf]
      %v183 = vld [vmem:[%s166 + $0x20] sm:$0xf]
      %v184 = vld [vmem:[%s166 + $0x24] sm:$0xf]
      %v185 = vld [vmem:[%s166 + $0x28] sm:$0xf]
      %v186 = vld [vmem:[%s166 + $0x2c] sm:$0xf]
      %v187 = vld [vmem:[%s166 + $0x30] sm:$0xf]
      %v188 = vld [vmem:[%s166 + $0x34] sm:$0xf]
      %v189 = vld [vmem:[%s166 + $0x38] sm:$0xf]
      %v190 = vld [vmem:[%s166 + $0x3c] sm:$0xf]
      %v191 = vld [vmem:[%s166 + $0x40] sm:$0xf]
      %v192 = vld [vmem:[%s166 + $0x44] sm:$0xf]
      %v193 = vld [vmem:[%s166 + $0x48] sm:$0xf]
      %v194 = vld [vmem:[%s166 + $0x4c] sm:$0xf]
      %v195 = vld [vmem:[%s166 + $0x50] sm:$0xf]
      %v196 = vld [vmem:[%s166 + $0x54] sm:$0xf]
      %v197 = vld [vmem:[%s166 + $0x58] sm:$0xf]
      %v198 = vld [vmem:[%s166 + $0x5c] sm:$0xf]
      %v199 = vld [vmem:[%s166 + $0x60] sm:$0xf]
      %v200 = vld [vmem:[%s166 + $0x64] sm:$0xf]
      %v201 = vld [vmem:[%s166 + $0x68] sm:$0xf]
      %v202 = vld [vmem:[%s166 + $0x6c] sm:$0xf]
      %v203 = vld [vmem:[%s166 + $0x70] sm:$0xf]
      %v204 = vld [vmem:[%s166 + $0x74] sm:$0xf]
      %v205 = vld [vmem:[%s166 + $0x78] sm:$0xf]
      %v206 = vld [vmem:[%s166 + $0x7c] sm:$0xf]
      %v207 = vld [vmem:[%s166 + $0x80] sm:$0xf]
      %v208 = vld [vmem:[%s166 + $0x84] sm:$0xf]
      %v209 = vld [vmem:[%s166 + $0x88] sm:$0xf]
      %v210 = vld [vmem:[%s166 + $0x8c] sm:$0xf]
      %v211 = vld [vmem:[%s166 + $0x90] sm:$0xf]
      %v212 = vld [vmem:[%s166 + $0x94] sm:$0xf]
      %v213 = vld [vmem:[%s166 + $0x98] sm:$0xf]
      %v214 = vld [vmem:[%s166 + $0x9c] sm:$0xf]
      %v215 = vld [vmem:[%s166 + $0xa0] sm:$0xf]
      %v216 = vld [vmem:[%s166 + $0xa4] sm:$0xf]
      %v217 = vld [vmem:[%s166 + $0xa8] sm:$0xf]
      %v218 = vld [vmem:[%s166 + $0xac] sm:$0xf]
      %v219 = vld [vmem:[%s166 + $0xb0] sm:$0xf]
      %v220 = vld [vmem:[%s166 + $0xb4] sm:$0xf]
      %v221 = vld [vmem:[%s166 + $0xb8] sm:$0xf]
      %v222 = vld [vmem:[%s166 + $0xbc] sm:$0xf]
      %v223 = vld [vmem:[%s166 + $0xc0] sm:$0xf]
      %v224 = vld [vmem:[%s166 + $0xc4] sm:$0xf]
      %v225 = vld [vmem:[%s166 + $0xc8] sm:$0xf]
      %v226 = vld [vmem:[%s166 + $0xcc] sm:$0xf]
      %v227 = vld [vmem:[%s166 + $0xd0] sm:$0xf]
      %v228 = vld [vmem:[%s166 + $0xd4] sm:$0xf]
      %v229 = vld [vmem:[%s166 + $0xd8] sm:$0xf]
      %v230 = vld [vmem:[%s166 + $0xdc] sm:$0xf]
      %v231 = vld [vmem:[%s166 + $0xe0] sm:$0xf]
      %v232 = vld [vmem:[%s166 + $0xe4] sm:$0xf]
      %v233 = vld [vmem:[%s166 + $0xe8] sm:$0xf]
      %v234 = vld [vmem:[%s166 + $0xec] sm:$0xf]
      %v235 = vld [vmem:[%s166 + $0xf0] sm:$0xf]
      %v236 = vld [vmem:[%s166 + $0xf4] sm:$0xf]
      %v237 = vld [vmem:[%s166 + $0xf8] sm:$0xf]
      %v238 = vld [vmem:[%s166 + $0xfc] sm:$0xf]
      %v239 = vld [vmem:[%s166 + $0x100] sm:$0xf]
      %v240 = vld [vmem:[%s166 + $0x104] sm:$0xf]
      %v241 = vld [vmem:[%s166 + $0x108] sm:$0xf]
      %v242 = vld [vmem:[%s166 + $0x10c] sm:$0xf]
      %v243 = vld [vmem:[%s166 + $0x110] sm:$0xf]
      %v244 = vld [vmem:[%s166 + $0x114] sm:$0xf]
      %v245 = vld [vmem:[%s166 + $0x118] sm:$0xf]
      %v246 = vld [vmem:[%s166 + $0x11c] sm:$0xf]
      %v247 = vld [vmem:[%s166 + $0x120] sm:$0xf]
      %v248 = vld [vmem:[%s166 + $0x124] sm:$0xf]
      %v249 = vld [vmem:[%s166 + $0x128] sm:$0xf]
      %v250 = vld [vmem:[%s166 + $0x12c] sm:$0xf]
      %v251 = vld [vmem:[%s166 + $0x130] sm:$0xf]
      %v252 = vld [vmem:[%s166 + $0x134] sm:$0xf]
      %v253 = vld [vmem:[%s166 + $0x138] sm:$0xf]
      %v254 = vld [vmem:[%s166 + $0x13c] sm:$0xf]
      %v255 = vld [vmem:[%s166 + $0x140] sm:$0xf]
      %v256 = vld [vmem:[%s166 + $0x144] sm:$0xf]
      %v257 = vld [vmem:[%s166 + $0x148] sm:$0xf]
      %v258 = vld [vmem:[%s166 + $0x14c] sm:$0xf]
      %v259 = vld [vmem:[%s166 + $0x150] sm:$0xf]
      %v260 = vld [vmem:[%s166 + $0x154] sm:$0xf]
      %v261 = vld [vmem:[%s166 + $0x158] sm:$0xf]
      %v262 = vld [vmem:[%s166 + $0x15c] sm:$0xf]
      %v263 = vld [vmem:[%s166 + $0x160] sm:$0xf]
      %v264 = vld [vmem:[%s166 + $0x164] sm:$0xf]
      %v265 = vld [vmem:[%s166 + $0x168] sm:$0xf]
      %v266 = vld [vmem:[%s166 + $0x16c] sm:$0xf]
      %v267 = vld [vmem:[%s166 + $0x170] sm:$0xf]
      %v268 = vld [vmem:[%s166 + $0x174] sm:$0xf]
      %v269 = vld [vmem:[%s166 + $0x178] sm:$0xf]
      %v270 = vld [vmem:[%s166 + $0x17c] sm:$0xf]
      %v271 = vld [vmem:[%s166 + $0x180] sm:$0xf]
      %v272 = vld [vmem:[%s166 + $0x184] sm:$0xf]
      %v273 = vld [vmem:[%s166 + $0x188] sm:$0xf]
      %v274 = vld [vmem:[%s166 + $0x18c] sm:$0xf]
      %v275 = vld [vmem:[%s166 + $0x190] sm:$0xf]
      %v276 = vld [vmem:[%s166 + $0x194] sm:$0xf]
      %v277 = vld [vmem:[%s166 + $0x198] sm:$0xf]
      %v278 = vld [vmem:[%s166 + $0x19c] sm:$0xf]
      %v279 = vld [vmem:[%s166 + $0x1a0] sm:$0xf]
      %v280 = vld [vmem:[%s166 + $0x1a4] sm:$0xf]
      %v281 = vld [vmem:[%s166 + $0x1a8] sm:$0xf]
      %v282 = vld [vmem:[%s166 + $0x1ac] sm:$0xf]
      %v283 = vld [vmem:[%s166 + $0x1b0] sm:$0xf]
      %v284 = vld [vmem:[%s166 + $0x1b4] sm:$0xf]
      %v285 = vld [vmem:[%s166 + $0x1b8] sm:$0xf]
      %v286 = vld [vmem:[%s166 + $0x1bc] sm:$0xf]
      %v287 = vld [vmem:[%s166 + $0x1c0] sm:$0xf]
      %v288 = vld [vmem:[%s166 + $0x1c4] sm:$0xf]
      %v289 = vld [vmem:[%s166 + $0x1c8] sm:$0xf]
      %v290 = vld [vmem:[%s166 + $0x1cc] sm:$0xf]
      %v291 = vld [vmem:[%s166 + $0x1d0] sm:$0xf]
      %v292 = vld [vmem:[%s166 + $0x1d4] sm:$0xf]
      %v293 = vld [vmem:[%s166 + $0x1d8] sm:$0xf]
      %v294 = vld [vmem:[%s166 + $0x1dc] sm:$0xf]
      %v295 = vld [vmem:[%s166 + $0x1e0] sm:$0xf]
      %v296 = vld [vmem:[%s166 + $0x1e4] sm:$0xf]
      %v297 = vld [vmem:[%s166 + $0x1e8] sm:$0xf]
      %v298 = vld [vmem:[%s166 + $0x1ec] sm:$0xf]
      %v299 = vld [vmem:[%s166 + $0x1f0] sm:$0xf]
      %v300 = vld [vmem:[%s166 + $0x1f4] sm:$0xf]
      %v301 = vld [vmem:[%s166 + $0x1f8] sm:$0xf]
      %v302 = vld [vmem:[%s166 + $0x1fc] sm:$0xf]
      %v303 = vld [vmem:[%s1] sm:$0xf]
      %v304 = vld [vmem:[%s1 + $0x4] sm:$0x1]
      %v433 = vunpack.c.l.b16 %v175
      %v434 = vunpack.c.l.b16 %v176
      %v435 = vunpack.c.l.b16 %v177
      %v436 = vunpack.c.l.b16 %v178
      %v437 = vunpack.c.l.b16 %v179
      %v438 = vunpack.c.l.b16 %v180
      %v439 = vunpack.c.l.b16 %v181
      %v440 = vunpack.c.l.b16 %v182
      %v441 = vunpack.c.l.b16 %v183
      %v442 = vunpack.c.l.b16 %v184
      %v443 = vunpack.c.l.b16 %v185
      %v444 = vunpack.c.l.b16 %v186
      %v445 = vunpack.c.l.b16 %v187
      %v446 = vunpack.c.l.b16 %v188
      %v447 = vunpack.c.l.b16 %v189
      %v448 = vunpack.c.l.b16 %v190
      %v449 = vunpack.c.l.b16 %v191
      %v450 = vunpack.c.l.b16 %v192
      %v451 = vunpack.c.l.b16 %v193
      %v452 = vunpack.c.l.b16 %v194
      %v453 = vunpack.c.l.b16 %v195
      %v454 = vunpack.c.l.b16 %v196
      %v455 = vunpack.c.l.b16 %v197
      %v456 = vunpack.c.l.b16 %v198
      %v457 = vunpack.c.l.b16 %v199
      %v458 = vunpack.c.l.b16 %v200
      %v459 = vunpack.c.l.b16 %v201
      %v460 = vunpack.c.l.b16 %v202
      %v461 = vunpack.c.l.b16 %v203
      %v462 = vunpack.c.l.b16 %v204
      %v463 = vunpack.c.l.b16 %v205
      %v464 = vunpack.c.l.b16 %v206
      %v465 = vunpack.c.l.b16 %v207
      %v466 = vunpack.c.l.b16 %v208
      %v467 = vunpack.c.l.b16 %v209
      %v468 = vunpack.c.l.b16 %v210
      %v469 = vunpack.c.l.b16 %v211
      %v470 = vunpack.c.l.b16 %v212
      %v471 = vunpack.c.l.b16 %v213
      %v472 = vunpack.c.l.b16 %v214
      %v473 = vunpack.c.l.b16 %v215
      %v474 = vunpack.c.l.b16 %v216
      %v475 = vunpack.c.l.b16 %v217
      %v476 = vunpack.c.l.b16 %v218
      %v477 = vunpack.c.l.b16 %v219
      %v478 = vunpack.c.l.b16 %v220
      %v479 = vunpack.c.l.b16 %v221
      %v480 = vunpack.c.l.b16 %v222
      %v481 = vunpack.c.l.b16 %v223
      %v482 = vunpack.c.l.b16 %v224
      %v483 = vunpack.c.l.b16 %v225
      %v484 = vunpack.c.l.b16 %v226
      %v485 = vunpack.c.l.b16 %v227
      %v486 = vunpack.c.l.b16 %v228
      %v487 = vunpack.c.l.b16 %v229
      %v488 = vunpack.c.l.b16 %v230
      %v489 = vunpack.c.l.b16 %v231
      %v490 = vunpack.c.l.b16 %v232
      %v491 = vunpack.c.l.b16 %v233
      %v492 = vunpack.c.l.b16 %v234
      %v493 = vunpack.c.l.b16 %v235
      %v494 = vunpack.c.l.b16 %v236
      %v495 = vunpack.c.l.b16 %v237
      %v496 = vunpack.c.l.b16 %v238
      %v497 = vunpack.c.l.b16 %v239
      %v498 = vunpack.c.l.b16 %v240
      %v499 = vunpack.c.l.b16 %v241
      %v500 = vunpack.c.l.b16 %v242
      %v501 = vunpack.c.l.b16 %v243
      %v502 = vunpack.c.l.b16 %v244
      %v503 = vunpack.c.l.b16 %v245
      %v504 = vunpack.c.l.b16 %v246
      %v505 = vunpack.c.l.b16 %v247
      %v506 = vunpack.c.l.b16 %v248
      %v507 = vunpack.c.l.b16 %v249
      %v508 = vunpack.c.l.b16 %v250
      %v509 = vunpack.c.l.b16 %v251
      %v510 = vunpack.c.l.b16 %v252
      %v511 = vunpack.c.l.b16 %v253
      %v512 = vunpack.c.l.b16 %v254
      %v513 = vunpack.c.l.b16 %v255
      %v514 = vunpack.c.l.b16 %v256
      %v515 = vunpack.c.l.b16 %v257
      %v516 = vunpack.c.l.b16 %v258
      %v517 = vunpack.c.l.b16 %v259
      %v518 = vunpack.c.l.b16 %v260
      %v519 = vunpack.c.l.b16 %v261
      %v520 = vunpack.c.l.b16 %v262
      %v521 = vunpack.c.l.b16 %v263
      %v522 = vunpack.c.l.b16 %v264
      %v523 = vunpack.c.l.b16 %v265
      %v524 = vunpack.c.l.b16 %v266
      %v525 = vunpack.c.l.b16 %v267
      %v526 = vunpack.c.l.b16 %v268
      %v527 = vunpack.c.l.b16 %v269
      %v528 = vunpack.c.l.b16 %v270
      %v529 = vunpack.c.l.b16 %v271
      %v530 = vunpack.c.l.b16 %v272
      %v531 = vunpack.c.l.b16 %v273
      %v532 = vunpack.c.l.b16 %v274
      %v533 = vunpack.c.l.b16 %v275
      %v534 = vunpack.c.l.b16 %v276
      %v535 = vunpack.c.l.b16 %v277
      %v536 = vunpack.c.l.b16 %v278
      %v537 = vunpack.c.l.b16 %v279
      %v538 = vunpack.c.l.b16 %v280
      %v539 = vunpack.c.l.b16 %v281
      %v540 = vunpack.c.l.b16 %v282
      %v541 = vunpack.c.l.b16 %v283
      %v542 = vunpack.c.l.b16 %v284
      %v543 = vunpack.c.l.b16 %v285
      %v544 = vunpack.c.l.b16 %v286
      %v545 = vunpack.c.l.b16 %v287
      %v546 = vunpack.c.l.b16 %v288
      %v547 = vunpack.c.l.b16 %v289
      %v548 = vunpack.c.l.b16 %v290
      %v549 = vunpack.c.l.b16 %v291
      %v550 = vunpack.c.l.b16 %v292
      %v551 = vunpack.c.l.b16 %v293
      %v552 = vunpack.c.l.b16 %v294
      %v553 = vunpack.c.l.b16 %v295
      %v554 = vunpack.c.l.b16 %v296
      %v555 = vunpack.c.l.b16 %v297
      %v556 = vunpack.c.l.b16 %v298
      %v557 = vunpack.c.l.b16 %v299
      %v558 = vunpack.c.l.b16 %v300
      %v559 = vunpack.c.l.b16 %v301
      %v560 = vunpack.c.l.b16 %v302
      %v561 = vpack.c.b16 %v434, %v433
      %v562 = vpack.c.b16 %v436, %v435
      %v563 = vpack.c.b16 %v438, %v437
      %v564 = vpack.c.b16 %v440, %v439
      %v565 = vpack.c.b16 %v442, %v441
      %v566 = vpack.c.b16 %v444, %v443
      %v567 = vpack.c.b16 %v446, %v445
      %v568 = vpack.c.b16 %v448, %v447
      %v569 = vpack.c.b16 %v450, %v449
      %v570 = vpack.c.b16 %v452, %v451
      %v571 = vpack.c.b16 %v454, %v453
      %v572 = vpack.c.b16 %v456, %v455
      %v573 = vpack.c.b16 %v458, %v457
      %v574 = vpack.c.b16 %v460, %v459
      %v575 = vpack.c.b16 %v462, %v461
      %v576 = vpack.c.b16 %v464, %v463
      %v577 = vpack.c.b16 %v466, %v465
      %v578 = vpack.c.b16 %v468, %v467
      %v579 = vpack.c.b16 %v470, %v469
      %v580 = vpack.c.b16 %v472, %v471
      %v581 = vpack.c.b16 %v474, %v473
      %v582 = vpack.c.b16 %v476, %v475
      %v583 = vpack.c.b16 %v478, %v477
      %v584 = vpack.c.b16 %v480, %v479
      %v585 = vpack.c.b16 %v482, %v481
      %v586 = vpack.c.b16 %v484, %v483
      %v587 = vpack.c.b16 %v486, %v485
      %v588 = vpack.c.b16 %v488, %v487
      %v589 = vpack.c.b16 %v490, %v489
      %v590 = vpack.c.b16 %v492, %v491
      %v591 = vpack.c.b16 %v494, %v493
      %v592 = vpack.c.b16 %v496, %v495
      %v593 = vpack.c.b16 %v498, %v497
      %v594 = vpack.c.b16 %v500, %v499
      %v595 = vpack.c.b16 %v502, %v501
      %v596 = vpack.c.b16 %v504, %v503
      %v597 = vpack.c.b16 %v506, %v505
      %v598 = vpack.c.b16 %v508, %v507
      %v599 = vpack.c.b16 %v510, %v509
      %v600 = vpack.c.b16 %v512, %v511
      %v601 = vpack.c.b16 %v514, %v513
      %v602 = vpack.c.b16 %v516, %v515
      %v603 = vpack.c.b16 %v518, %v517
      %v604 = vpack.c.b16 %v520, %v519
      %v605 = vpack.c.b16 %v522, %v521
      %v606 = vpack.c.b16 %v524, %v523
      %v607 = vpack.c.b16 %v526, %v525
      %v608 = vpack.c.b16 %v528, %v527
      %v609 = vpack.c.b16 %v530, %v529
      %v610 = vpack.c.b16 %v532, %v531
      %v611 = vpack.c.b16 %v534, %v533
      %v612 = vpack.c.b16 %v536, %v535
      %v613 = vpack.c.b16 %v538, %v537
      %v614 = vpack.c.b16 %v540, %v539
      %v615 = vpack.c.b16 %v542, %v541
      %v616 = vpack.c.b16 %v544, %v543
      %v617 = vpack.c.b16 %v546, %v545
      %v618 = vpack.c.b16 %v548, %v547
      %v619 = vpack.c.b16 %v550, %v549
      %v620 = vpack.c.b16 %v552, %v551
      %v621 = vpack.c.b16 %v554, %v553
      %v622 = vpack.c.b16 %v556, %v555
      %v623 = vpack.c.b16 %v558, %v557
      %v624 = vpack.c.b16 %v560, %v559
      %v627 = vunpack.c.l.b16 %v303
      %v628 = vunpack.c.l.b16 %v304
      %v629 = vpack.c.b16 %v628, %v627
      %vm630 = vcmask 72704
      %v632 = vsel %vm630, %v561, 0
      %v635 = vsel %vm630, %v562, 0
      %v638 = vsel %vm630, %v563, 0
      %v641 = vsel %vm630, %v564, 0
      %v644 = vsel %vm630, %v565, 0
      %v647 = vsel %vm630, %v566, 0
      %v650 = vsel %vm630, %v567, 0
      %v653 = vsel %vm630, %v568, 0
      %v656 = vsel %vm630, %v569, 0
      %v659 = vsel %vm630, %v570, 0
      %v662 = vsel %vm630, %v571, 0
      %v665 = vsel %vm630, %v572, 0
      %v668 = vsel %vm630, %v573, 0
      %v671 = vsel %vm630, %v574, 0
      %v674 = vsel %vm630, %v575, 0
      %v677 = vsel %vm630, %v576, 0
      %v680 = vsel %vm630, %v577, 0
      %v683 = vsel %vm630, %v578, 0
      %v686 = vsel %vm630, %v579, 0
      %v689 = vsel %vm630, %v580, 0
      %v692 = vsel %vm630, %v581, 0
      %v695 = vsel %vm630, %v582, 0
      %v698 = vsel %vm630, %v583, 0
      %v701 = vsel %vm630, %v584, 0
      %v704 = vsel %vm630, %v585, 0
      %v707 = vsel %vm630, %v586, 0
      %v710 = vsel %vm630, %v587, 0
      %v713 = vsel %vm630, %v588, 0
      %v716 = vsel %vm630, %v589, 0
      %v719 = vsel %vm630, %v590, 0
      %v722 = vsel %vm630, %v591, 0
      %v725 = vsel %vm630, %v592, 0
      %v728 = vsel %vm630, %v593, 0
      %v731 = vsel %vm630, %v594, 0
      %v734 = vsel %vm630, %v595, 0
      %v737 = vsel %vm630, %v596, 0
      %v740 = vsel %vm630, %v597, 0
      %v743 = vsel %vm630, %v598, 0
      %v746 = vsel %vm630, %v599, 0
      %v749 = vsel %vm630, %v600, 0
      %v752 = vsel %vm630, %v601, 0
      %v755 = vsel %vm630, %v602, 0
      %v758 = vsel %vm630, %v603, 0
      %v761 = vsel %vm630, %v604, 0
      %v764 = vsel %vm630, %v605, 0
      %v767 = vsel %vm630, %v606, 0
      %v770 = vsel %vm630, %v607, 0
      %v773 = vsel %vm630, %v608, 0
      %v776 = vsel %vm630, %v609, 0
      %v779 = vsel %vm630, %v610, 0
      %v782 = vsel %vm630, %v611, 0
      %v785 = vsel %vm630, %v612, 0
      %v788 = vsel %vm630, %v613, 0
      %v791 = vsel %vm630, %v614, 0
      %v794 = vsel %vm630, %v615, 0
      %v797 = vsel %vm630, %v616, 0
      %v800 = vsel %vm630, %v617, 0
      %v803 = vsel %vm630, %v618, 0
      %v806 = vsel %vm630, %v619, 0
      %v809 = vsel %vm630, %v620, 0
      %v812 = vsel %vm630, %v621, 0
      %v815 = vsel %vm630, %v622, 0
      %v818 = vsel %vm630, %v623, 0
      %v821 = vsel %vm630, %v624, 0
      %vm823 = vcmask 1043456
      %vm824 = vcmask 1044480
      %v825 = vsel %vm823, 4294967295, 65535
      %v826 = vsel %vm824, %v825, 0
      %v828 = vand.u32 %v629, %v826
      %830 = vmatpush.bf16.msra.mxu0 0
      %831 = vmatpush.bf16.msra.mxu0 0
      %832 = vmatpush.bf16.msra.mxu0 0
      %833 = vmatpush.bf16.msra.mxu0 0
      %834 = vmatpush.bf16.msra.mxu0 0
      %835 = vmatpush.bf16.msra.mxu0 0
      %836 = vmatpush.bf16.msra.mxu0 0
      %837 = vmatpush.bf16.msra.mxu0 %v828
      %838 = vmatmul.bf16.gmra.mxu0 %v632
      %v839 = vpop.f32.mrf.mxu0
      %v840 = vadd.f32 0.0, %v839
      %v841 = vpop.f32.mrf.mxu0
      %v842 = vadd.f32 0.0, %v841
      %843 = vmatmul.bf16.gmra.mxu0 %v635
      %v844 = vpop.f32.mrf.mxu0
      %v845 = vadd.f32 0.0, %v844
      %v846 = vpop.f32.mrf.mxu0
      %v847 = vadd.f32 0.0, %v846
      %848 = vmatmul.bf16.gmra.mxu0 %v638
      %v849 = vpop.f32.mrf.mxu0
      %v850 = vadd.f32 0.0, %v849
      %v851 = vpop.f32.mrf.mxu0
      %v852 = vadd.f32 0.0, %v851
      %853 = vmatmul.bf16.gmra.mxu0 %v641
      %v854 = vpop.f32.mrf.mxu0
      %v855 = vadd.f32 0.0, %v854
      %v856 = vpop.f32.mrf.mxu0
      %v857 = vadd.f32 0.0, %v856
      %858 = vmatmul.bf16.gmra.mxu0 %v644
      %v859 = vpop.f32.mrf.mxu0
      %v860 = vadd.f32 0.0, %v859
      %v861 = vpop.f32.mrf.mxu0
      %v862 = vadd.f32 0.0, %v861
      %863 = vmatmul.bf16.gmra.mxu0 %v647
      %v864 = vpop.f32.mrf.mxu0
      %v865 = vadd.f32 0.0, %v864
      %v866 = vpop.f32.mrf.mxu0
      %v867 = vadd.f32 0.0, %v866
      %868 = vmatmul.bf16.gmra.mxu0 %v650
      %v869 = vpop.f32.mrf.mxu0
      %v870 = vadd.f32 0.0, %v869
      %v871 = vpop.f32.mrf.mxu0
      %v872 = vadd.f32 0.0, %v871
      %873 = vmatmul.bf16.gmra.mxu0 %v653
      %v874 = vpop.f32.mrf.mxu0
      %v875 = vadd.f32 0.0, %v874
      %v876 = vpop.f32.mrf.mxu0
      %v877 = vadd.f32 0.0, %v876
      %878 = vmatmul.bf16.gmra.mxu0 %v656
      %v879 = vpop.f32.mrf.mxu0
      %v880 = vadd.f32 0.0, %v879
      %v881 = vpop.f32.mrf.mxu0
      %v882 = vadd.f32 0.0, %v881
      %883 = vmatmul.bf16.gmra.mxu0 %v659
      %v884 = vpop.f32.mrf.mxu0
      %v885 = vadd.f32 0.0, %v884
      %v886 = vpop.f32.mrf.mxu0
      %v887 = vadd.f32 0.0, %v886
      %888 = vmatmul.bf16.gmra.mxu0 %v662
      %v889 = vpop.f32.mrf.mxu0
      %v890 = vadd.f32 0.0, %v889
      %v891 = vpop.f32.mrf.mxu0
      %v892 = vadd.f32 0.0, %v891
      %893 = vmatmul.bf16.gmra.mxu0 %v665
      %v894 = vpop.f32.mrf.mxu0
      %v895 = vadd.f32 0.0, %v894
      %v896 = vpop.f32.mrf.mxu0
      %v897 = vadd.f32 0.0, %v896
      %898 = vmatmul.bf16.gmra.mxu0 %v668
      %v899 = vpop.f32.mrf.mxu0
      %v900 = vadd.f32 0.0, %v899
      %v901 = vpop.f32.mrf.mxu0
      %v902 = vadd.f32 0.0, %v901
      %903 = vmatmul.bf16.gmra.mxu0 %v671
      %v904 = vpop.f32.mrf.mxu0
      %v905 = vadd.f32 0.0, %v904
      %v906 = vpop.f32.mrf.mxu0
      %v907 = vadd.f32 0.0, %v906
      %908 = vmatmul.bf16.gmra.mxu0 %v674
      %v909 = vpop.f32.mrf.mxu0
      %v910 = vadd.f32 0.0, %v909
      %v911 = vpop.f32.mrf.mxu0
      %v912 = vadd.f32 0.0, %v911
      %913 = vmatmul.bf16.gmra.mxu0 %v677
      %v914 = vpop.f32.mrf.mxu0
      %v915 = vadd.f32 0.0, %v914
      %v916 = vpop.f32.mrf.mxu0
      %v917 = vadd.f32 0.0, %v916
      %918 = vmatmul.bf16.gmra.mxu0 %v680
      %v919 = vpop.f32.mrf.mxu0
      %v920 = vadd.f32 0.0, %v919
      %v921 = vpop.f32.mrf.mxu0
      %v922 = vadd.f32 0.0, %v921
      %923 = vmatmul.bf16.gmra.mxu0 %v683
      %v924 = vpop.f32.mrf.mxu0
      %v925 = vadd.f32 0.0, %v924
      %v926 = vpop.f32.mrf.mxu0
      %v927 = vadd.f32 0.0, %v926
      %928 = vmatmul.bf16.gmra.mxu0 %v686
      %v929 = vpop.f32.mrf.mxu0
      %v930 = vadd.f32 0.0, %v929
      %v931 = vpop.f32.mrf.mxu0
      %v932 = vadd.f32 0.0, %v931
      %933 = vmatmul.bf16.gmra.mxu0 %v689
      %v934 = vpop.f32.mrf.mxu0
      %v935 = vadd.f32 0.0, %v934
      %v936 = vpop.f32.mrf.mxu0
      %v937 = vadd.f32 0.0, %v936
      %938 = vmatmul.bf16.gmra.mxu0 %v692
      %v939 = vpop.f32.mrf.mxu0
      %v940 = vadd.f32 0.0, %v939
      %v941 = vpop.f32.mrf.mxu0
      %v942 = vadd.f32 0.0, %v941
      %943 = vmatmul.bf16.gmra.mxu0 %v695
      %v944 = vpop.f32.mrf.mxu0
      %v945 = vadd.f32 0.0, %v944
      %v946 = vpop.f32.mrf.mxu0
      %v947 = vadd.f32 0.0, %v946
      %948 = vmatmul.bf16.gmra.mxu0 %v698
      %v949 = vpop.f32.mrf.mxu0
      %v950 = vadd.f32 0.0, %v949
      %v951 = vpop.f32.mrf.mxu0
      %v952 = vadd.f32 0.0, %v951
      %953 = vmatmul.bf16.gmra.mxu0 %v701
      %v954 = vpop.f32.mrf.mxu0
      %v955 = vadd.f32 0.0, %v954
      %v956 = vpop.f32.mrf.mxu0
      %v957 = vadd.f32 0.0, %v956
      %958 = vmatmul.bf16.gmra.mxu0 %v704
      %v959 = vpop.f32.mrf.mxu0
      %v960 = vadd.f32 0.0, %v959
      %v961 = vpop.f32.mrf.mxu0
      %v962 = vadd.f32 0.0, %v961
      %963 = vmatmul.bf16.gmra.mxu0 %v707
      %v964 = vpop.f32.mrf.mxu0
      %v965 = vadd.f32 0.0, %v964
      %v966 = vpop.f32.mrf.mxu0
      %v967 = vadd.f32 0.0, %v966
      %968 = vmatmul.bf16.gmra.mxu0 %v710
      %v969 = vpop.f32.mrf.mxu0
      %v970 = vadd.f32 0.0, %v969
      %v971 = vpop.f32.mrf.mxu0
      %v972 = vadd.f32 0.0, %v971
      %973 = vmatmul.bf16.gmra.mxu0 %v713
      %v974 = vpop.f32.mrf.mxu0
      %v975 = vadd.f32 0.0, %v974
      %v976 = vpop.f32.mrf.mxu0
      %v977 = vadd.f32 0.0, %v976
      %978 = vmatmul.bf16.gmra.mxu0 %v716
      %v979 = vpop.f32.mrf.mxu0
      %v980 = vadd.f32 0.0, %v979
      %v981 = vpop.f32.mrf.mxu0
      %v982 = vadd.f32 0.0, %v981
      %983 = vmatmul.bf16.gmra.mxu0 %v719
      %v984 = vpop.f32.mrf.mxu0
      %v985 = vadd.f32 0.0, %v984
      %v986 = vpop.f32.mrf.mxu0
      %v987 = vadd.f32 0.0, %v986
      %988 = vmatmul.bf16.gmra.mxu0 %v722
      %v989 = vpop.f32.mrf.mxu0
      %v990 = vadd.f32 0.0, %v989
      %v991 = vpop.f32.mrf.mxu0
      %v992 = vadd.f32 0.0, %v991
      %993 = vmatmul.bf16.gmra.mxu0 %v725
      %v994 = vpop.f32.mrf.mxu0
      %v995 = vadd.f32 0.0, %v994
      %v996 = vpop.f32.mrf.mxu0
      %v997 = vadd.f32 0.0, %v996
      %998 = vmatmul.bf16.gmra.mxu0 %v728
      %v999 = vpop.f32.mrf.mxu0
      %v1000 = vadd.f32 0.0, %v999
      %v1001 = vpop.f32.mrf.mxu0
      %v1002 = vadd.f32 0.0, %v1001
      %1003 = vmatmul.bf16.gmra.mxu0 %v731
      %v1004 = vpop.f32.mrf.mxu0
      %v1005 = vadd.f32 0.0, %v1004
      %v1006 = vpop.f32.mrf.mxu0
      %v1007 = vadd.f32 0.0, %v1006
      %1008 = vmatmul.bf16.gmra.mxu0 %v734
      %v1009 = vpop.f32.mrf.mxu0
      %v1010 = vadd.f32 0.0, %v1009
      %v1011 = vpop.f32.mrf.mxu0
      %v1012 = vadd.f32 0.0, %v1011
      %1013 = vmatmul.bf16.gmra.mxu0 %v737
      %v1014 = vpop.f32.mrf.mxu0
      %v1015 = vadd.f32 0.0, %v1014
      %v1016 = vpop.f32.mrf.mxu0
      %v1017 = vadd.f32 0.0, %v1016
      %1018 = vmatmul.bf16.gmra.mxu0 %v740
      %v1019 = vpop.f32.mrf.mxu0
      %v1020 = vadd.f32 0.0, %v1019
      %v1021 = vpop.f32.mrf.mxu0
      %v1022 = vadd.f32 0.0, %v1021
      %1023 = vmatmul.bf16.gmra.mxu0 %v743
      %v1024 = vpop.f32.mrf.mxu0
      %v1025 = vadd.f32 0.0, %v1024
      %v1026 = vpop.f32.mrf.mxu0
      %v1027 = vadd.f32 0.0, %v1026
      %1028 = vmatmul.bf16.gmra.mxu0 %v746
      %v1029 = vpop.f32.mrf.mxu0
      %v1030 = vadd.f32 0.0, %v1029
      %v1031 = vpop.f32.mrf.mxu0
      %v1032 = vadd.f32 0.0, %v1031
      %1033 = vmatmul.bf16.gmra.mxu0 %v749
      %v1034 = vpop.f32.mrf.mxu0
      %v1035 = vadd.f32 0.0, %v1034
      %v1036 = vpop.f32.mrf.mxu0
      %v1037 = vadd.f32 0.0, %v1036
      %1038 = vmatmul.bf16.gmra.mxu0 %v752
      %v1039 = vpop.f32.mrf.mxu0
      %v1040 = vadd.f32 0.0, %v1039
      %v1041 = vpop.f32.mrf.mxu0
      %v1042 = vadd.f32 0.0, %v1041
      %1043 = vmatmul.bf16.gmra.mxu0 %v755
      %v1044 = vpop.f32.mrf.mxu0
      %v1045 = vadd.f32 0.0, %v1044
      %v1046 = vpop.f32.mrf.mxu0
      %v1047 = vadd.f32 0.0, %v1046
      %1048 = vmatmul.bf16.gmra.mxu0 %v758
      %v1049 = vpop.f32.mrf.mxu0
      %v1050 = vadd.f32 0.0, %v1049
      %v1051 = vpop.f32.mrf.mxu0
      %v1052 = vadd.f32 0.0, %v1051
      %1053 = vmatmul.bf16.gmra.mxu0 %v761
      %v1054 = vpop.f32.mrf.mxu0
      %v1055 = vadd.f32 0.0, %v1054
      %v1056 = vpop.f32.mrf.mxu0
      %v1057 = vadd.f32 0.0, %v1056
      %1058 = vmatmul.bf16.gmra.mxu0 %v764
      %v1059 = vpop.f32.mrf.mxu0
      %v1060 = vadd.f32 0.0, %v1059
      %v1061 = vpop.f32.mrf.mxu0
      %v1062 = vadd.f32 0.0, %v1061
      %1063 = vmatmul.bf16.gmra.mxu0 %v767
      %v1064 = vpop.f32.mrf.mxu0
      %v1065 = vadd.f32 0.0, %v1064
      %v1066 = vpop.f32.mrf.mxu0
      %v1067 = vadd.f32 0.0, %v1066
      %1068 = vmatmul.bf16.gmra.mxu0 %v770
      %v1069 = vpop.f32.mrf.mxu0
      %v1070 = vadd.f32 0.0, %v1069
      %v1071 = vpop.f32.mrf.mxu0
      %v1072 = vadd.f32 0.0, %v1071
      %1073 = vmatmul.bf16.gmra.mxu0 %v773
      %v1074 = vpop.f32.mrf.mxu0
      %v1075 = vadd.f32 0.0, %v1074
      %v1076 = vpop.f32.mrf.mxu0
      %v1077 = vadd.f32 0.0, %v1076
      %1078 = vmatmul.bf16.gmra.mxu0 %v776
      %v1079 = vpop.f32.mrf.mxu0
      %v1080 = vadd.f32 0.0, %v1079
      %v1081 = vpop.f32.mrf.mxu0
      %v1082 = vadd.f32 0.0, %v1081
      %1083 = vmatmul.bf16.gmra.mxu0 %v779
      %v1084 = vpop.f32.mrf.mxu0
      %v1085 = vadd.f32 0.0, %v1084
      %v1086 = vpop.f32.mrf.mxu0
      %v1087 = vadd.f32 0.0, %v1086
      %1088 = vmatmul.bf16.gmra.mxu0 %v782
      %v1089 = vpop.f32.mrf.mxu0
      %v1090 = vadd.f32 0.0, %v1089
      %v1091 = vpop.f32.mrf.mxu0
      %v1092 = vadd.f32 0.0, %v1091
      %1093 = vmatmul.bf16.gmra.mxu0 %v785
      %v1094 = vpop.f32.mrf.mxu0
      %v1095 = vadd.f32 0.0, %v1094
      %v1096 = vpop.f32.mrf.mxu0
      %v1097 = vadd.f32 0.0, %v1096
      %1098 = vmatmul.bf16.gmra.mxu0 %v788
      %v1099 = vpop.f32.mrf.mxu0
      %v1100 = vadd.f32 0.0, %v1099
      %v1101 = vpop.f32.mrf.mxu0
      %v1102 = vadd.f32 0.0, %v1101
      %1103 = vmatmul.bf16.gmra.mxu0 %v791
      %v1104 = vpop.f32.mrf.mxu0
      %v1105 = vadd.f32 0.0, %v1104
      %v1106 = vpop.f32.mrf.mxu0
      %v1107 = vadd.f32 0.0, %v1106
      %1108 = vmatmul.bf16.gmra.mxu0 %v794
      %v1109 = vpop.f32.mrf.mxu0
      %v1110 = vadd.f32 0.0, %v1109
      %v1111 = vpop.f32.mrf.mxu0
      %v1112 = vadd.f32 0.0, %v1111
      %1113 = vmatmul.bf16.gmra.mxu0 %v797
      %v1114 = vpop.f32.mrf.mxu0
      %v1115 = vadd.f32 0.0, %v1114
      %v1116 = vpop.f32.mrf.mxu0
      %v1117 = vadd.f32 0.0, %v1116
      %1118 = vmatmul.bf16.gmra.mxu0 %v800
      %v1119 = vpop.f32.mrf.mxu0
      %v1120 = vadd.f32 0.0, %v1119
      %v1121 = vpop.f32.mrf.mxu0
      %v1122 = vadd.f32 0.0, %v1121
      %1123 = vmatmul.bf16.gmra.mxu0 %v803
      %v1124 = vpop.f32.mrf.mxu0
      %v1125 = vadd.f32 0.0, %v1124
      %v1126 = vpop.f32.mrf.mxu0
      %v1127 = vadd.f32 0.0, %v1126
      %1128 = vmatmul.bf16.gmra.mxu0 %v806
      %v1129 = vpop.f32.mrf.mxu0
      %v1130 = vadd.f32 0.0, %v1129
      %v1131 = vpop.f32.mrf.mxu0
      %v1132 = vadd.f32 0.0, %v1131
      %1133 = vmatmul.bf16.gmra.mxu0 %v809
      %v1134 = vpop.f32.mrf.mxu0
      %v1135 = vadd.f32 0.0, %v1134
      %v1136 = vpop.f32.mrf.mxu0
      %v1137 = vadd.f32 0.0, %v1136
      %1138 = vmatmul.bf16.gmra.mxu0 %v812
      %v1139 = vpop.f32.mrf.mxu0
      %v1140 = vadd.f32 0.0, %v1139
      %v1141 = vpop.f32.mrf.mxu0
      %v1142 = vadd.f32 0.0, %v1141
      %1143 = vmatmul.bf16.gmra.mxu0 %v815
      %v1144 = vpop.f32.mrf.mxu0
      %v1145 = vadd.f32 0.0, %v1144
      %v1146 = vpop.f32.mrf.mxu0
      %v1147 = vadd.f32 0.0, %v1146
      %1148 = vmatmul.bf16.gmra.mxu0 %v818
      %v1149 = vpop.f32.mrf.mxu0
      %v1150 = vadd.f32 0.0, %v1149
      %v1151 = vpop.f32.mrf.mxu0
      %v1152 = vadd.f32 0.0, %v1151
      %1153 = vmatmul.bf16.gmra.mxu0 %v821
      %v1154 = vpop.f32.mrf.mxu0
      %v1155 = vadd.f32 0.0, %v1154
      %v1156 = vpop.f32.mrf.mxu0
      %v1157 = vadd.f32 0.0, %v1156
      %1158 = vdwg.mxu0
      %v1159 = vmax.f32 %v840, %v920
      %v1160 = vmax.f32 %v842, %v922
      %v1161 = vmax.f32 %v845, %v925
      %v1162 = vmax.f32 %v847, %v927
      %v1163 = vmax.f32 %v850, %v930
      %v1164 = vmax.f32 %v852, %v932
      %v1165 = vmax.f32 %v855, %v935
      %v1166 = vmax.f32 %v857, %v937
      %v1167 = vmax.f32 %v860, %v940
      %v1168 = vmax.f32 %v862, %v942
      %v1169 = vmax.f32 %v865, %v945
      %v1170 = vmax.f32 %v867, %v947
      %v1171 = vmax.f32 %v870, %v950
      %v1172 = vmax.f32 %v872, %v952
      %v1173 = vmax.f32 %v875, %v955
      %v1174 = vmax.f32 %v877, %v957
      %v1175 = vmax.f32 %v880, %v960
      %v1176 = vmax.f32 %v882, %v962
      %v1177 = vmax.f32 %v885, %v965
      %v1178 = vmax.f32 %v887, %v967
      %v1179 = vmax.f32 %v890, %v970
      %v1180 = vmax.f32 %v892, %v972
      %v1181 = vmax.f32 %v895, %v975
      %v1182 = vmax.f32 %v897, %v977
      %v1183 = vmax.f32 %v900, %v980
      %v1184 = vmax.f32 %v902, %v982
      %v1185 = vmax.f32 %v905, %v985
      %v1186 = vmax.f32 %v907, %v987
      %v1187 = vmax.f32 %v910, %v990
      %v1188 = vmax.f32 %v912, %v992
      %v1189 = vmax.f32 %v915, %v995
      %v1190 = vmax.f32 %v917, %v997
      %v1191 = vmax.f32 %v1000, %v1080
      %v1192 = vmax.f32 %v1002, %v1082
      %v1193 = vmax.f32 %v1005, %v1085
      %v1194 = vmax.f32 %v1007, %v1087
      %v1195 = vmax.f32 %v1010, %v1090
      %v1196 = vmax.f32 %v1012, %v1092
      %v1197 = vmax.f32 %v1015, %v1095
      %v1198 = vmax.f32 %v1017, %v1097
      %v1199 = vmax.f32 %v1020, %v1100
      %v1200 = vmax.f32 %v1022, %v1102
      %v1201 = vmax.f32 %v1025, %v1105
      %v1202 = vmax.f32 %v1027, %v1107
      %v1203 = vmax.f32 %v1030, %v1110
      %v1204 = vmax.f32 %v1032, %v1112
      %v1205 = vmax.f32 %v1035, %v1115
      %v1206 = vmax.f32 %v1037, %v1117
      %v1207 = vmax.f32 %v1040, %v1120
      %v1208 = vmax.f32 %v1042, %v1122
      %v1209 = vmax.f32 %v1045, %v1125
      %v1210 = vmax.f32 %v1047, %v1127
      %v1211 = vmax.f32 %v1050, %v1130
      %v1212 = vmax.f32 %v1052, %v1132
      %v1213 = vmax.f32 %v1055, %v1135
      %v1214 = vmax.f32 %v1057, %v1137
      %v1215 = vmax.f32 %v1060, %v1140
      %v1216 = vmax.f32 %v1062, %v1142
      %v1217 = vmax.f32 %v1065, %v1145
      %v1218 = vmax.f32 %v1067, %v1147
      %v1219 = vmax.f32 %v1070, %v1150
      %v1220 = vmax.f32 %v1072, %v1152
      %v1221 = vmax.f32 %v1075, %v1155
      %v1222 = vmax.f32 %v1077, %v1157
      %v1223 = vmax.f32 %v1159, %v1191
      %v1224 = vmax.f32 %v1160, %v1192
      %v1225 = vmax.f32 %v1161, %v1193
      %v1226 = vmax.f32 %v1162, %v1194
      %v1227 = vmax.f32 %v1163, %v1195
      %v1228 = vmax.f32 %v1164, %v1196
      %v1229 = vmax.f32 %v1165, %v1197
      %v1230 = vmax.f32 %v1166, %v1198
      %v1231 = vmax.f32 %v1167, %v1199
      %v1232 = vmax.f32 %v1168, %v1200
      %v1233 = vmax.f32 %v1169, %v1201
      %v1234 = vmax.f32 %v1170, %v1202
      %v1235 = vmax.f32 %v1171, %v1203
      %v1236 = vmax.f32 %v1172, %v1204
      %v1237 = vmax.f32 %v1173, %v1205
      %v1238 = vmax.f32 %v1174, %v1206
      %v1239 = vmax.f32 %v1175, %v1207
      %v1240 = vmax.f32 %v1176, %v1208
      %v1241 = vmax.f32 %v1177, %v1209
      %v1242 = vmax.f32 %v1178, %v1210
      %v1243 = vmax.f32 %v1179, %v1211
      %v1244 = vmax.f32 %v1180, %v1212
      %v1245 = vmax.f32 %v1181, %v1213
      %v1246 = vmax.f32 %v1182, %v1214
      %v1247 = vmax.f32 %v1183, %v1215
      %v1248 = vmax.f32 %v1184, %v1216
      %v1249 = vmax.f32 %v1185, %v1217
      %v1250 = vmax.f32 %v1186, %v1218
      %v1251 = vmax.f32 %v1187, %v1219
      %v1252 = vmax.f32 %v1188, %v1220
      %v1253 = vmax.f32 %v1189, %v1221
      %v1254 = vmax.f32 %v1190, %v1222
      %v1255 = vld [vmem:[%s2] sm:$0x1]
      %v1257 = vperm.slane %v1255, 0
      %v1259 = vadd.f32 %v1223, %v1257
      %v1260 = vadd.f32 %v1224, %v1257
      %v1261 = vadd.f32 %v1225, %v1257
      %v1262 = vadd.f32 %v1226, %v1257
      %v1263 = vadd.f32 %v1227, %v1257
      %v1264 = vadd.f32 %v1228, %v1257
      %v1265 = vadd.f32 %v1229, %v1257
      %v1266 = vadd.f32 %v1230, %v1257
      %v1267 = vadd.f32 %v1231, %v1257
      %v1268 = vadd.f32 %v1232, %v1257
      %v1269 = vadd.f32 %v1233, %v1257
      %v1270 = vadd.f32 %v1234, %v1257
      %v1271 = vadd.f32 %v1235, %v1257
      %v1272 = vadd.f32 %v1236, %v1257
      %v1273 = vadd.f32 %v1237, %v1257
      %v1274 = vadd.f32 %v1238, %v1257
      %v1275 = vadd.f32 %v1239, %v1257
      %v1276 = vadd.f32 %v1240, %v1257
      %v1277 = vadd.f32 %v1241, %v1257
      %v1278 = vadd.f32 %v1242, %v1257
      %v1279 = vadd.f32 %v1243, %v1257
      %v1280 = vadd.f32 %v1244, %v1257
      %v1281 = vadd.f32 %v1245, %v1257
      %v1282 = vadd.f32 %v1246, %v1257
      %v1283 = vadd.f32 %v1247, %v1257
      %v1284 = vadd.f32 %v1248, %v1257
      %v1285 = vadd.f32 %v1249, %v1257
      %v1286 = vadd.f32 %v1250, %v1257
      %v1287 = vadd.f32 %v1251, %v1257
      %v1288 = vadd.f32 %v1252, %v1257
      %v1289 = vadd.f32 %v1253, %v1257
      %v1290 = vadd.f32 %v1254, %v1257
      %v1291 = vmax.f32 %v1259, 0.0
      %v1292 = vmax.f32 %v1260, 0.0
      %v1293 = vmax.f32 %v1261, 0.0
      %v1294 = vmax.f32 %v1262, 0.0
      %v1295 = vmax.f32 %v1263, 0.0
      %v1296 = vmax.f32 %v1264, 0.0
      %v1297 = vmax.f32 %v1265, 0.0
      %v1298 = vmax.f32 %v1266, 0.0
      %v1299 = vmax.f32 %v1267, 0.0
      %v1300 = vmax.f32 %v1268, 0.0
      %v1301 = vmax.f32 %v1269, 0.0
      %v1302 = vmax.f32 %v1270, 0.0
      %v1303 = vmax.f32 %v1271, 0.0
      %v1304 = vmax.f32 %v1272, 0.0
      %v1305 = vmax.f32 %v1273, 0.0
      %v1306 = vmax.f32 %v1274, 0.0
      %v1307 = vmax.f32 %v1275, 0.0
      %v1308 = vmax.f32 %v1276, 0.0
      %v1309 = vmax.f32 %v1277, 0.0
      %v1310 = vmax.f32 %v1278, 0.0
      %v1311 = vmax.f32 %v1279, 0.0
      %v1312 = vmax.f32 %v1280, 0.0
      %v1313 = vmax.f32 %v1281, 0.0
      %v1314 = vmax.f32 %v1282, 0.0
      %v1315 = vmax.f32 %v1283, 0.0
      %v1316 = vmax.f32 %v1284, 0.0
      %v1317 = vmax.f32 %v1285, 0.0
      %v1318 = vmax.f32 %v1286, 0.0
      %v1319 = vmax.f32 %v1287, 0.0
      %v1320 = vmax.f32 %v1288, 0.0
      %v1321 = vmax.f32 %v1289, 0.0
      %v1322 = vmax.f32 %v1290, 0.0
      %vm1323 = vcmask 261120
      %1324 = vst.msk [vmem:[%s172] sm:$0xff] %vm1323, %v1291
      %1325 = vst.msk [vmem:[%s172 + $0x8] sm:$0xff] %vm1323, %v1292
      %1326 = vst.msk [vmem:[%s172 + $0x10] sm:$0xff] %vm1323, %v1293
      %1327 = vst.msk [vmem:[%s172 + $0x18] sm:$0xff] %vm1323, %v1294
      %1328 = vst.msk [vmem:[%s172 + $0x20] sm:$0xff] %vm1323, %v1295
      %1329 = vst.msk [vmem:[%s172 + $0x28] sm:$0xff] %vm1323, %v1296
      %1330 = vst.msk [vmem:[%s172 + $0x30] sm:$0xff] %vm1323, %v1297
      %1331 = vst.msk [vmem:[%s172 + $0x38] sm:$0xff] %vm1323, %v1298
      %1332 = vst.msk [vmem:[%s172 + $0x40] sm:$0xff] %vm1323, %v1299
      %1333 = vst.msk [vmem:[%s172 + $0x48] sm:$0xff] %vm1323, %v1300
      %1334 = vst.msk [vmem:[%s172 + $0x50] sm:$0xff] %vm1323, %v1301
      %1335 = vst.msk [vmem:[%s172 + $0x58] sm:$0xff] %vm1323, %v1302
      %1336 = vst.msk [vmem:[%s172 + $0x60] sm:$0xff] %vm1323, %v1303
      %1337 = vst.msk [vmem:[%s172 + $0x68] sm:$0xff] %vm1323, %v1304
      %1338 = vst.msk [vmem:[%s172 + $0x70] sm:$0xff] %vm1323, %v1305
      %1339 = vst.msk [vmem:[%s172 + $0x78] sm:$0xff] %vm1323, %v1306
      %1340 = vst.msk [vmem:[%s172 + $0x80] sm:$0xff] %vm1323, %v1307
      %1341 = vst.msk [vmem:[%s172 + $0x88] sm:$0xff] %vm1323, %v1308
      %1342 = vst.msk [vmem:[%s172 + $0x90] sm:$0xff] %vm1323, %v1309
      %1343 = vst.msk [vmem:[%s172 + $0x98] sm:$0xff] %vm1323, %v1310
      %1344 = vst.msk [vmem:[%s172 + $0xa0] sm:$0xff] %vm1323, %v1311
      %1345 = vst.msk [vmem:[%s172 + $0xa8] sm:$0xff] %vm1323, %v1312
      %1346 = vst.msk [vmem:[%s172 + $0xb0] sm:$0xff] %vm1323, %v1313
      %1347 = vst.msk [vmem:[%s172 + $0xb8] sm:$0xff] %vm1323, %v1314
      %1348 = vst.msk [vmem:[%s172 + $0xc0] sm:$0xff] %vm1323, %v1315
      %1349 = vst.msk [vmem:[%s172 + $0xc8] sm:$0xff] %vm1323, %v1316
      %1350 = vst.msk [vmem:[%s172 + $0xd0] sm:$0xff] %vm1323, %v1317
      %1351 = vst.msk [vmem:[%s172 + $0xd8] sm:$0xff] %vm1323, %v1318
      %1352 = vst.msk [vmem:[%s172 + $0xe0] sm:$0xff] %vm1323, %v1319
      %1353 = vst.msk [vmem:[%s172 + $0xe8] sm:$0xff] %vm1323, %v1320
      %1354 = vst.msk [vmem:[%s172 + $0xf0] sm:$0xff] %vm1323, %v1321
      %1355 = vst.msk [vmem:[%s172 + $0xf8] sm:$0xff] %vm1323, %v1322
      %s1356 = smul.u32 32, %s14
      %p1357 = scmp.lt.s32.totalorder %s1356, 63
      %s1358 = scalar_select %p1357, %s1356, 63
      %s1359 = smul.addr %s1358, 8
      %s1360 = scalar_lea.vmem %s3, %s1359
      // Predicated region
      $region33: #{torch_cnn_forward.4} parent=31 // pred_check
        %p1361 = pneg %p100
      $region34: #{torch_cnn_forward.4} parent=31 // pred_check_branch
        %1363 = sbr.rel (%p1361) target = $region36
      $region35: #{torch_cnn_forward.4} parent=31 // pred_region
        %s1364 = smul.u32 32, %s14
      $region36: #{torch_cnn_forward.4} parent=31 // pred_fallthru
        _
    $region32: #{torch_cnn_forward.4} parent=5 // pred_fallthru
      _
    %p1365 = scmp.le.s32.totalorder 2, %s9
    // Predicated region
    $region37: #{torch_cnn_forward.4} parent=5 // pred_check
      %p1366 = pneg %p1365
    $region38: #{torch_cnn_forward.4} parent=5 // pred_check_branch
      %1368 = sbr.rel (%p1366) target = $region40
    $region39: #{torch_cnn_forward.4} parent=5 // pred_region
      %s1369 = ssub.s32 %s9, 2
      // Predicated region
      $region41: #{torch_cnn_forward.4} parent=39 // pred_check
        %p1370 = pneg %p106
      $region42: #{torch_cnn_forward.4} parent=39 // pred_check_branch
        %1372 = sbr.rel (%p1370) target = $region44
      $region43: #{torch_cnn_forward.4} parent=39 // pred_region
        %s1373 = smul.u32 32, %s15
        %p1374 = scmp.lt.s32.totalorder %s1373, 63
        %s1375 = scalar_select %p1374, %s1373, 63
        %s1376 = smul.addr %s1375, 8
        %s1377 = scalar_lea.vmem %s3, %s1376
      $region44: #{torch_cnn_forward.4} parent=39 // pred_fallthru
        _
    $region40: #{torch_cnn_forward.4} parent=5 // pred_fallthru
      _
  $region6: #{torch_cnn_forward.4} parent=0 // loop_footer
    %s13 = sadd.s32 1, %s9
  $region7: #{torch_cnn_forward.4} parent=0 // loop_footer_branch
    %8 = sbr.rel target = $region3
  $region8: #{torch_cnn_forward.4} parent=0 // loop_exit
    _

// kernel: torch_cnn_forward.5
$region0: #{torch_cnn_forward.5}
  #allocation0 [shape = 'u32[]', space=smem, size = 0x4, offset = 0x4, fixed_abs, tag = 'smem constant byte address 0x4 - core index']
  #allocation1 [shape = 'u32[72,128]{1,0:T(1,128)}', space=vmem, size = 0x9000, scoped, tag = 'internal scratch']
  %s0 = inlined_call_operand.vmem [shape: bf16[512,288], index: 0, kind: input, shape index: {}]
  %s1 = inlined_call_operand.vmem [shape: bf16[288,64], index: 1, kind: input, shape index: {}]
  %s2 = inlined_call_operand.vmem [shape: f32[1,64], index: 2, kind: input, shape index: {}]
  %s3 = inlined_call_operand.vmem [shape: f32[128,64], index: 3, kind: output, shape index: {}]
  %s4 = sld [smem:[#allocation0]]
  $region22: #{torch_cnn_forward.5} parent=0
    _
  %s6 = ssub.s32 1, %s4
  %s7 = scalar_select 0, %s6, %s4
  // Predicated region
  $region2: #{torch_cnn_forward.5} parent=0 // pred_check
    _
  $region3: #{torch_cnn_forward.5} parent=0 // pred_check_branch
    %9 = sbr.rel (0) target = $region5
  $region4: #{torch_cnn_forward.5} parent=0 // pred_region
    _
  $region5: #{torch_cnn_forward.5} parent=0 // pred_fallthru
    _
  // Predicated region
  $region6: #{torch_cnn_forward.5} parent=0 // pred_check
    _
  $region7: #{torch_cnn_forward.5} parent=0 // pred_check_branch
    %11 = sbr.rel (0) target = $region9
  $region8: #{torch_cnn_forward.5} parent=0 // pred_region
    _
  $region9: #{torch_cnn_forward.5} parent=0 // pred_fallthru
    _
  // Predicated region
  $region10: #{torch_cnn_forward.5} parent=0 // pred_check
    _
  $region11: #{torch_cnn_forward.5} parent=0 // pred_check_branch
    %13 = sbr.rel (0) target = $region13
  $region12: #{torch_cnn_forward.5} parent=0 // pred_region
    _
  $region13: #{torch_cnn_forward.5} parent=0 // pred_fallthru
    _
  %v15 = vld [vmem:[%s0] sm:$0xff]
  %v16 = vld [vmem:[%s0 + $0x8] sm:$0xf]
  %v17 = vld [vmem:[%s0 + $0xc] sm:$0xff]
  %v18 = vld [vmem:[%s0 + $0x14] sm:$0xf]
  %v19 = vld [vmem:[%s0 + $0x18] sm:$0xff]
  %v20 = vld [vmem:[%s0 + $0x20] sm:$0xf]
  %v21 = vld [vmem:[%s0 + $0x24] sm:$0xff]
  %v22 = vld [vmem:[%s0 + $0x2c] sm:$0xf]
  %v23 = vld [vmem:[%s0 + $0x30] sm:$0xff]
  %v24 = vld [vmem:[%s0 + $0x38] sm:$0xf]
  %v25 = vld [vmem:[%s0 + $0x3c] sm:$0xff]
  %v26 = vld [vmem:[%s0 + $0x44] sm:$0xf]
  %v27 = vld [vmem:[%s0 + $0x48] sm:$0xff]
  %v28 = vld [vmem:[%s0 + $0x50] sm:$0xf]
  %v29 = vld [vmem:[%s0 + $0x54] sm:$0xff]
  %v30 = vld [vmem:[%s0 + $0x5c] sm:$0xf]
  %v31 = vld [vmem:[%s0 + $0x60] sm:$0xff]
  %v32 = vld [vmem:[%s0 + $0x68] sm:$0xf]
  %v33 = vld [vmem:[%s0 + $0x6c] sm:$0xff]
  %v34 = vld [vmem:[%s0 + $0x74] sm:$0xf]
  %v35 = vld [vmem:[%s0 + $0x78] sm:$0xff]
  %v36 = vld [vmem:[%s0 + $0x80] sm:$0xf]
  %v37 = vld [vmem:[%s0 + $0x84] sm:$0xff]
  %v38 = vld [vmem:[%s0 + $0x8c] sm:$0xf]
  %v39 = vld [vmem:[%s0 + $0x90] sm:$0xff]
  %v40 = vld [vmem:[%s0 + $0x98] sm:$0xf]
  %v41 = vld [vmem:[%s0 + $0x9c] sm:$0xff]
  %v42 = vld [vmem:[%s0 + $0xa4] sm:$0xf]
  %v43 = vld [vmem:[%s0 + $0xa8] sm:$0xff]
  %v44 = vld [vmem:[%s0 + $0xb0] sm:$0xf]
  %v45 = vld [vmem:[%s0 + $0xb4] sm:$0xff]
  %v46 = vld [vmem:[%s0 + $0xbc] sm:$0xf]
  %v47 = vld [vmem:[%s0 + $0xc0] sm:$0xff]
  %v48 = vld [vmem:[%s0 + $0xc8] sm:$0xf]
  %v49 = vld [vmem:[%s0 + $0xcc] sm:$0xff]
  %v50 = vld [vmem:[%s0 + $0xd4] sm:$0xf]
  %v51 = vld [vmem:[%s0 + $0xd8] sm:$0xff]
  %v52 = vld [vmem:[%s0 + $0xe0] sm:$0xf]
  %v53 = vld [vmem:[%s0 + $0xe4] sm:$0xff]
  %v54 = vld [vmem:[%s0 + $0xec] sm:$0xf]
  %v55 = vld [vmem:[%s0 + $0xf0] sm:$0xff]
  %v56 = vld [vmem:[%s0 + $0xf8] sm:$0xf]
  %v57 = vld [vmem:[%s0 + $0xfc] sm:$0xff]
  %v58 = vld [vmem:[%s0 + $0x104] sm:$0xf]
  %v59 = vld [vmem:[%s0 + $0x108] sm:$0xff]
  %v60 = vld [vmem:[%s0 + $0x110] sm:$0xf]
  %v61 = vld [vmem:[%s0 + $0x114] sm:$0xff]
  %v62 = vld [vmem:[%s0 + $0x11c] sm:$0xf]
  %v63 = vld [vmem:[%s0 + $0x120] sm:$0xff]
  %v64 = vld [vmem:[%s0 + $0x128] sm:$0xf]
  %v65 = vld [vmem:[%s0 + $0x12c] sm:$0xff]
  %v66 = vld [vmem:[%s0 + $0x134] sm:$0xf]
  %v67 = vld [vmem:[%s0 + $0x138] sm:$0xff]
  %v68 = vld [vmem:[%s0 + $0x140] sm:$0xf]
  %v69 = vld [vmem:[%s0 + $0x144] sm:$0xff]
  %v70 = vld [vmem:[%s0 + $0x14c] sm:$0xf]
  %v71 = vld [vmem:[%s0 + $0x150] sm:$0xff]
  %v72 = vld [vmem:[%s0 + $0x158] sm:$0xf]
  %v73 = vld [vmem:[%s0 + $0x15c] sm:$0xff]
  %v74 = vld [vmem:[%s0 + $0x164] sm:$0xf]
  %v75 = vld [vmem:[%s0 + $0x168] sm:$0xff]
  %v76 = vld [vmem:[%s0 + $0x170] sm:$0xf]
  %v77 = vld [vmem:[%s0 + $0x174] sm:$0xff]
  %v78 = vld [vmem:[%s0 + $0x17c] sm:$0xf]
  %v79 = vld [vmem:[%s0 + $0x180] sm:$0xff]
  %v80 = vld [vmem:[%s0 + $0x188] sm:$0xf]
  %v81 = vld [vmem:[%s0 + $0x18c] sm:$0xff]
  %v82 = vld [vmem:[%s0 + $0x194] sm:$0xf]
  %v83 = vld [vmem:[%s0 + $0x198] sm:$0xff]
  %v84 = vld [vmem:[%s0 + $0x1a0] sm:$0xf]
  %v85 = vld [vmem:[%s0 + $0x1a4] sm:$0xff]
  %v86 = vld [vmem:[%s0 + $0x1ac] sm:$0xf]
  %v87 = vld [vmem:[%s0 + $0x1b0] sm:$0xff]
  %v88 = vld [vmem:[%s0 + $0x1b8] sm:$0xf]
  %v89 = vld [vmem:[%s0 + $0x1bc] sm:$0xff]
  %v90 = vld [vmem:[%s0 + $0x1c4] sm:$0xf]
  %v91 = vld [vmem:[%s0 + $0x1c8] sm:$0xff]
  %v92 = vld [vmem:[%s0 + $0x1d0] sm:$0xf]
  %v93 = vld [vmem:[%s0 + $0x1d4] sm:$0xff]
  %v94 = vld [vmem:[%s0 + $0x1dc] sm:$0xf]
  %v95 = vld [vmem:[%s0 + $0x1e0] sm:$0xff]
  %v96 = vld [vmem:[%s0 + $0x1e8] sm:$0xf]
  %v97 = vld [vmem:[%s0 + $0x1ec] sm:$0xff]
  %v98 = vld [vmem:[%s0 + $0x1f4] sm:$0xf]
  %v99 = vld [vmem:[%s0 + $0x1f8] sm:$0xff]
  %v100 = vld [vmem:[%s0 + $0x200] sm:$0xf]
  %v101 = vld [vmem:[%s0 + $0x204] sm:$0xff]
  %v102 = vld [vmem:[%s0 + $0x20c] sm:$0xf]
  %v103 = vld [vmem:[%s0 + $0x210] sm:$0xff]
  %v104 = vld [vmem:[%s0 + $0x218] sm:$0xf]
  %v105 = vld [vmem:[%s0 + $0x21c] sm:$0xff]
  %v106 = vld [vmem:[%s0 + $0x224] sm:$0xf]
  %v107 = vld [vmem:[%s0 + $0x228] sm:$0xff]
  %v108 = vld [vmem:[%s0 + $0x230] sm:$0xf]
  %v109 = vld [vmem:[%s0 + $0x234] sm:$0xff]
  %v110 = vld [vmem:[%s0 + $0x23c] sm:$0xf]
  %v111 = vld [vmem:[%s0 + $0x240] sm:$0xff]
  %v112 = vld [vmem:[%s0 + $0x248] sm:$0xf]
  %v113 = vld [vmem:[%s0 + $0x24c] sm:$0xff]
  %v114 = vld [vmem:[%s0 + $0x254] sm:$0xf]
  %v115 = vld [vmem:[%s0 + $0x258] sm:$0xff]
  %v116 = vld [vmem:[%s0 + $0x260] sm:$0xf]
  %v117 = vld [vmem:[%s0 + $0x264] sm:$0xff]
  %v118 = vld [vmem:[%s0 + $0x26c] sm:$0xf]
  %v119 = vld [vmem:[%s0 + $0x270] sm:$0xff]
  %v120 = vld [vmem:[%s0 + $0x278] sm:$0xf]
  %v121 = vld [vmem:[%s0 + $0x27c] sm:$0xff]
  %v122 = vld [vmem:[%s0 + $0x284] sm:$0xf]
  %v123 = vld [vmem:[%s0 + $0x288] sm:$0xff]
  %v124 = vld [vmem:[%s0 + $0x290] sm:$0xf]
  %v125 = vld [vmem:[%s0 + $0x294] sm:$0xff]
  %v126 = vld [vmem:[%s0 + $0x29c] sm:$0xf]
  %v127 = vld [vmem:[%s0 + $0x2a0] sm:$0xff]
  %v128 = vld [vmem:[%s0 + $0x2a8] sm:$0xf]
  %v129 = vld [vmem:[%s0 + $0x2ac] sm:$0xff]
  %v130 = vld [vmem:[%s0 + $0x2b4] sm:$0xf]
  %v131 = vld [vmem:[%s0 + $0x2b8] sm:$0xff]
  %v132 = vld [vmem:[%s0 + $0x2c0] sm:$0xf]
  %v133 = vld [vmem:[%s0 + $0x2c4] sm:$0xff]
  %v134 = vld [vmem:[%s0 + $0x2cc] sm:$0xf]
  %v135 = vld [vmem:[%s0 + $0x2d0] sm:$0xff]
  %v136 = vld [vmem:[%s0 + $0x2d8] sm:$0xf]
  %v137 = vld [vmem:[%s0 + $0x2dc] sm:$0xff]
  %v138 = vld [vmem:[%s0 + $0x2e4] sm:$0xf]
  %v139 = vld [vmem:[%s0 + $0x2e8] sm:$0xff]
  %v140 = vld [vmem:[%s0 + $0x2f0] sm:$0xf]
  %v141 = vld [vmem:[%s0 + $0x2f4] sm:$0xff]
  %v142 = vld [vmem:[%s0 + $0x2fc] sm:$0xf]
  %v143 = vld [vmem:[%s1] sm:$0xf]
  %v144 = vld [vmem:[%s1 + $0x4] sm:$0xf]
  %v145 = vld [vmem:[%s1 + $0x8] sm:$0xf]
  %v146 = vld [vmem:[%s1 + $0xc] sm:$0xf]
  %v147 = vld [vmem:[%s1 + $0x10] sm:$0xf]
  %v148 = vld [vmem:[%s1 + $0x14] sm:$0xf]
  %v149 = vld [vmem:[%s1 + $0x18] sm:$0xf]
  %v150 = vld [vmem:[%s1 + $0x1c] sm:$0xf]
  %v151 = vld [vmem:[%s1 + $0x20] sm:$0xf]
  %v152 = vld [vmem:[%s1 + $0x24] sm:$0xf]
  %v153 = vld [vmem:[%s1 + $0x28] sm:$0xf]
  %v154 = vld [vmem:[%s1 + $0x2c] sm:$0xf]
  %v155 = vld [vmem:[%s1 + $0x30] sm:$0xf]
  %v156 = vld [vmem:[%s1 + $0x34] sm:$0xf]
  %v157 = vld [vmem:[%s1 + $0x38] sm:$0xf]
  %v158 = vld [vmem:[%s1 + $0x3c] sm:$0xf]
  %v159 = vld [vmem:[%s1 + $0x40] sm:$0xf]
  %v160 = vld [vmem:[%s1 + $0x44] sm:$0xf]
  %v161 = vld [vmem:[%s1 + $0x48] sm:$0xf]
  %v162 = vld [vmem:[%s1 + $0x4c] sm:$0xf]
  %v163 = vld [vmem:[%s1 + $0x50] sm:$0xf]
  %v164 = vld [vmem:[%s1 + $0x54] sm:$0xf]
  %v165 = vld [vmem:[%s1 + $0x58] sm:$0xf]
  %v166 = vld [vmem:[%s1 + $0x5c] sm:$0xf]
  %v167 = vld [vmem:[%s1 + $0x60] sm:$0xf]
  %v168 = vld [vmem:[%s1 + $0x64] sm:$0xf]
  %v169 = vld [vmem:[%s1 + $0x68] sm:$0xf]
  %v170 = vld [vmem:[%s1 + $0x6c] sm:$0xf]
  %v171 = vld [vmem:[%s1 + $0x70] sm:$0xf]
  %v172 = vld [vmem:[%s1 + $0x74] sm:$0xf]
  %v173 = vld [vmem:[%s1 + $0x78] sm:$0xf]
  %v174 = vld [vmem:[%s1 + $0x7c] sm:$0xf]
  %v175 = vld [vmem:[%s1 + $0x80] sm:$0xf]
  %v176 = vld [vmem:[%s1 + $0x84] sm:$0xf]
  %v177 = vld [vmem:[%s1 + $0x88] sm:$0xf]
  %v178 = vld [vmem:[%s1 + $0x8c] sm:$0xf]
  %v307 = vunpack.c.l.b16 %v15
  %v308 = vunpack.c.h.b16 %v15
  %v309 = vunpack.c.l.b16 %v16
  %v310 = vunpack.c.l.b16 %v17
  %v311 = vunpack.c.h.b16 %v17
  %v312 = vunpack.c.l.b16 %v18
  %v313 = vunpack.c.l.b16 %v19
  %v314 = vunpack.c.h.b16 %v19
  %v315 = vunpack.c.l.b16 %v20
  %v316 = vunpack.c.l.b16 %v21
  %v317 = vunpack.c.h.b16 %v21
  %v318 = vunpack.c.l.b16 %v22
  %v319 = vunpack.c.l.b16 %v23
  %v320 = vunpack.c.h.b16 %v23
  %v321 = vunpack.c.l.b16 %v24
  %v322 = vunpack.c.l.b16 %v25
  %v323 = vunpack.c.h.b16 %v25
  %v324 = vunpack.c.l.b16 %v26
  %v325 = vunpack.c.l.b16 %v27
  %v326 = vunpack.c.h.b16 %v27
  %v327 = vunpack.c.l.b16 %v28
  %v328 = vunpack.c.l.b16 %v29
  %v329 = vunpack.c.h.b16 %v29
  %v330 = vunpack.c.l.b16 %v30
  %v331 = vunpack.c.l.b16 %v31
  %v332 = vunpack.c.h.b16 %v31
  %v333 = vunpack.c.l.b16 %v32
  %v334 = vunpack.c.l.b16 %v33
  %v335 = vunpack.c.h.b16 %v33
  %v336 = vunpack.c.l.b16 %v34
  %v337 = vunpack.c.l.b16 %v35
  %v338 = vunpack.c.h.b16 %v35
  %v339 = vunpack.c.l.b16 %v36
  %v340 = vunpack.c.l.b16 %v37
  %v341 = vunpack.c.h.b16 %v37
  %v342 = vunpack.c.l.b16 %v38
  %v343 = vunpack.c.l.b16 %v39
  %v344 = vunpack.c.h.b16 %v39
  %v345 = vunpack.c.l.b16 %v40
  %v346 = vunpack.c.l.b16 %v41
  %v347 = vunpack.c.h.b16 %v41
  %v348 = vunpack.c.l.b16 %v42
  %v349 = vunpack.c.l.b16 %v43
  %v350 = vunpack.c.h.b16 %v43
  %v351 = vunpack.c.l.b16 %v44
  %v352 = vunpack.c.l.b16 %v45
  %v353 = vunpack.c.h.b16 %v45
  %v354 = vunpack.c.l.b16 %v46
  %v355 = vunpack.c.l.b16 %v47
  %v356 = vunpack.c.h.b16 %v47
  %v357 = vunpack.c.l.b16 %v48
  %v358 = vunpack.c.l.b16 %v49
  %v359 = vunpack.c.h.b16 %v49
  %v360 = vunpack.c.l.b16 %v50
  %v361 = vunpack.c.l.b16 %v51
  %v362 = vunpack.c.h.b16 %v51
  %v363 = vunpack.c.l.b16 %v52
  %v364 = vunpack.c.l.b16 %v53
  %v365 = vunpack.c.h.b16 %v53
  %v366 = vunpack.c.l.b16 %v54
  %v367 = vunpack.c.l.b16 %v55
  %v368 = vunpack.c.h.b16 %v55
  %v369 = vunpack.c.l.b16 %v56
  %v370 = vunpack.c.l.b16 %v57
  %v371 = vunpack.c.h.b16 %v57
  %v372 = vunpack.c.l.b16 %v58
  %v373 = vunpack.c.l.b16 %v59
  %v374 = vunpack.c.h.b16 %v59
  %v375 = vunpack.c.l.b16 %v60
  %v376 = vunpack.c.l.b16 %v61
  %v377 = vunpack.c.h.b16 %v61
  %v378 = vunpack.c.l.b16 %v62
  %v379 = vunpack.c.l.b16 %v63
  %v380 = vunpack.c.h.b16 %v63
  %v381 = vunpack.c.l.b16 %v64
  %v382 = vunpack.c.l.b16 %v65
  %v383 = vunpack.c.h.b16 %v65
  %v384 = vunpack.c.l.b16 %v66
  %v385 = vunpack.c.l.b16 %v67
  %v386 = vunpack.c.h.b16 %v67
  %v387 = vunpack.c.l.b16 %v68
  %v388 = vunpack.c.l.b16 %v69
  %v389 = vunpack.c.h.b16 %v69
  %v390 = vunpack.c.l.b16 %v70
  %v391 = vunpack.c.l.b16 %v71
  %v392 = vunpack.c.h.b16 %v71
  %v393 = vunpack.c.l.b16 %v72
  %v394 = vunpack.c.l.b16 %v73
  %v395 = vunpack.c.h.b16 %v73
  %v396 = vunpack.c.l.b16 %v74
  %v397 = vunpack.c.l.b16 %v75
  %v398 = vunpack.c.h.b16 %v75
  %v399 = vunpack.c.l.b16 %v76
  %v400 = vunpack.c.l.b16 %v77
  %v401 = vunpack.c.h.b16 %v77
  %v402 = vunpack.c.l.b16 %v78
  %v403 = vunpack.c.l.b16 %v79
  %v404 = vunpack.c.h.b16 %v79
  %v405 = vunpack.c.l.b16 %v80
  %v406 = vunpack.c.l.b16 %v81
  %v407 = vunpack.c.h.b16 %v81
  %v408 = vunpack.c.l.b16 %v82
  %v409 = vunpack.c.l.b16 %v83
  %v410 = vunpack.c.h.b16 %v83
  %v411 = vunpack.c.l.b16 %v84
  %v412 = vunpack.c.l.b16 %v85
  %v413 = vunpack.c.h.b16 %v85
  %v414 = vunpack.c.l.b16 %v86
  %v415 = vunpack.c.l.b16 %v87
  %v416 = vunpack.c.h.b16 %v87
  %v417 = vunpack.c.l.b16 %v88
  %v418 = vunpack.c.l.b16 %v89
  %v419 = vunpack.c.h.b16 %v89
  %v420 = vunpack.c.l.b16 %v90
  %v421 = vunpack.c.l.b16 %v91
  %v422 = vunpack.c.h.b16 %v91
  %v423 = vunpack.c.l.b16 %v92
  %v424 = vunpack.c.l.b16 %v93
  %v425 = vunpack.c.h.b16 %v93
  %v426 = vunpack.c.l.b16 %v94
  %v427 = vunpack.c.l.b16 %v95
  %v428 = vunpack.c.h.b16 %v95
  %v429 = vunpack.c.l.b16 %v96
  %v430 = vunpack.c.l.b16 %v97
  %v431 = vunpack.c.h.b16 %v97
  %v432 = vunpack.c.l.b16 %v98
  %v433 = vunpack.c.l.b16 %v99
  %v434 = vunpack.c.h.b16 %v99
  %v435 = vunpack.c.l.b16 %v100
  %v436 = vunpack.c.l.b16 %v101
  %v437 = vunpack.c.h.b16 %v101
  %v438 = vunpack.c.l.b16 %v102
  %v439 = vunpack.c.l.b16 %v103
  %v440 = vunpack.c.h.b16 %v103
  %v441 = vunpack.c.l.b16 %v104
  %v442 = vunpack.c.l.b16 %v105
  %v443 = vunpack.c.h.b16 %v105
  %v444 = vunpack.c.l.b16 %v106
  %v445 = vunpack.c.l.b16 %v107
  %v446 = vunpack.c.h.b16 %v107
  %v447 = vunpack.c.l.b16 %v108
  %v448 = vunpack.c.l.b16 %v109
  %v449 = vunpack.c.h.b16 %v109
  %v450 = vunpack.c.l.b16 %v110
  %v451 = vunpack.c.l.b16 %v111
  %v452 = vunpack.c.h.b16 %v111
  %v453 = vunpack.c.l.b16 %v112
  %v454 = vunpack.c.l.b16 %v113
  %v455 = vunpack.c.h.b16 %v113
  %v456 = vunpack.c.l.b16 %v114
  %v457 = vunpack.c.l.b16 %v115
  %v458 = vunpack.c.h.b16 %v115
  %v459 = vunpack.c.l.b16 %v116
  %v460 = vunpack.c.l.b16 %v117
  %v461 = vunpack.c.h.b16 %v117
  %v462 = vunpack.c.l.b16 %v118
  %v463 = vunpack.c.l.b16 %v119
  %v464 = vunpack.c.h.b16 %v119
  %v465 = vunpack.c.l.b16 %v120
  %v466 = vunpack.c.l.b16 %v121
  %v467 = vunpack.c.h.b16 %v121
  %v468 = vunpack.c.l.b16 %v122
  %v469 = vunpack.c.l.b16 %v123
  %v470 = vunpack.c.h.b16 %v123
  %v471 = vunpack.c.l.b16 %v124
  %v472 = vunpack.c.l.b16 %v125
  %v473 = vunpack.c.h.b16 %v125
  %v474 = vunpack.c.l.b16 %v126
  %v475 = vunpack.c.l.b16 %v127
  %v476 = vunpack.c.h.b16 %v127
  %v477 = vunpack.c.l.b16 %v128
  %v478 = vunpack.c.l.b16 %v129
  %v479 = vunpack.c.h.b16 %v129
  %v480 = vunpack.c.l.b16 %v130
  %v481 = vunpack.c.l.b16 %v131
  %v482 = vunpack.c.h.b16 %v131
  %v483 = vunpack.c.l.b16 %v132
  %v484 = vunpack.c.l.b16 %v133
  %v485 = vunpack.c.h.b16 %v133
  %v486 = vunpack.c.l.b16 %v134
  %v487 = vunpack.c.l.b16 %v135
  %v488 = vunpack.c.h.b16 %v135
  %v489 = vunpack.c.l.b16 %v136
  %v490 = vunpack.c.l.b16 %v137
  %v491 = vunpack.c.h.b16 %v137
  %v492 = vunpack.c.l.b16 %v138
  %v493 = vunpack.c.l.b16 %v139
  %v494 = vunpack.c.h.b16 %v139
  %v495 = vunpack.c.l.b16 %v140
  %v496 = vunpack.c.l.b16 %v141
  %v497 = vunpack.c.h.b16 %v141
  %v498 = vunpack.c.l.b16 %v142
  %v499 = vpack.c.b16 %v310, %v307
  %v500 = vpack.c.b16 %v311, %v308
  %v501 = vpack.c.b16 %v312, %v309
  %v502 = vpack.c.b16 %v316, %v313
  %v503 = vpack.c.b16 %v317, %v314
  %v504 = vpack.c.b16 %v318, %v315
  %v505 = vpack.c.b16 %v322, %v319
  %v506 = vpack.c.b16 %v323, %v320
  %v507 = vpack.c.b16 %v324, %v321
  %v508 = vpack.c.b16 %v328, %v325
  %v509 = vpack.c.b16 %v329, %v326
  %v510 = vpack.c.b16 %v330, %v327
  %v511 = vpack.c.b16 %v334, %v331
  %v512 = vpack.c.b16 %v335, %v332
  %v513 = vpack.c.b16 %v336, %v333
  %v514 = vpack.c.b16 %v340, %v337
  %v515 = vpack.c.b16 %v341, %v338
  %v516 = vpack.c.b16 %v342, %v339
  %v517 = vpack.c.b16 %v346, %v343
  %v518 = vpack.c.b16 %v347, %v344
  %v519 = vpack.c.b16 %v348, %v345
  %v520 = vpack.c.b16 %v352, %v349
  %v521 = vpack.c.b16 %v353, %v350
  %v522 = vpack.c.b16 %v354, %v351
  %v523 = vpack.c.b16 %v358, %v355
  %v524 = vpack.c.b16 %v359, %v356
  %v525 = vpack.c.b16 %v360, %v357
  %v526 = vpack.c.b16 %v364, %v361
  %v527 = vpack.c.b16 %v365, %v362
  %v528 = vpack.c.b16 %v366, %v363
  %v529 = vpack.c.b16 %v370, %v367
  %v530 = vpack.c.b16 %v371, %v368
  %v531 = vpack.c.b16 %v372, %v369
  %v532 = vpack.c.b16 %v376, %v373
  %v533 = vpack.c.b16 %v377, %v374
  %v534 = vpack.c.b16 %v378, %v375
  %v535 = vpack.c.b16 %v382, %v379
  %v536 = vpack.c.b16 %v383, %v380
  %v537 = vpack.c.b16 %v384, %v381
  %v538 = vpack.c.b16 %v388, %v385
  %v539 = vpack.c.b16 %v389, %v386
  %v540 = vpack.c.b16 %v390, %v387
  %v541 = vpack.c.b16 %v394, %v391
  %v542 = vpack.c.b16 %v395, %v392
  %v543 = vpack.c.b16 %v396, %v393
  %v544 = vpack.c.b16 %v400, %v397
  %v545 = vpack.c.b16 %v401, %v398
  %v546 = vpack.c.b16 %v402, %v399
  %v547 = vpack.c.b16 %v406, %v403
  %v548 = vpack.c.b16 %v407, %v404
  %v549 = vpack.c.b16 %v408, %v405
  %v550 = vpack.c.b16 %v412, %v409
  %v551 = vpack.c.b16 %v413, %v410
  %v552 = vpack.c.b16 %v414, %v411
  %v553 = vpack.c.b16 %v418, %v415
  %v554 = vpack.c.b16 %v419, %v416
  %v555 = vpack.c.b16 %v420, %v417
  %v556 = vpack.c.b16 %v424, %v421
  %v557 = vpack.c.b16 %v425, %v422
  %v558 = vpack.c.b16 %v426, %v423
  %v559 = vpack.c.b16 %v430, %v427
  %v560 = vpack.c.b16 %v431, %v428
  %v561 = vpack.c.b16 %v432, %v429
  %v562 = vpack.c.b16 %v436, %v433
  %v563 = vpack.c.b16 %v437, %v434
  %v564 = vpack.c.b16 %v438, %v435
  %v565 = vpack.c.b16 %v442, %v439
  %v566 = vpack.c.b16 %v443, %v440
  %v567 = vpack.c.b16 %v444, %v441
  %v568 = vpack.c.b16 %v448, %v445
  %v569 = vpack.c.b16 %v449, %v446
  %v570 = vpack.c.b16 %v450, %v447
  %v571 = vpack.c.b16 %v454, %v451
  %v572 = vpack.c.b16 %v455, %v452
  %v573 = vpack.c.b16 %v456, %v453
  %v574 = vpack.c.b16 %v460, %v457
  %v575 = vpack.c.b16 %v461, %v458
  %v576 = vpack.c.b16 %v462, %v459
  %v577 = vpack.c.b16 %v466, %v463
  %v578 = vpack.c.b16 %v467, %v464
  %v579 = vpack.c.b16 %v468, %v465
  %v580 = vpack.c.b16 %v472, %v469
  %v581 = vpack.c.b16 %v473, %v470
  %v582 = vpack.c.b16 %v474, %v471
  %v583 = vpack.c.b16 %v478, %v475
  %v584 = vpack.c.b16 %v479, %v476
  %v585 = vpack.c.b16 %v480, %v477
  %v586 = vpack.c.b16 %v484, %v481
  %v587 = vpack.c.b16 %v485, %v482
  %v588 = vpack.c.b16 %v486, %v483
  %v589 = vpack.c.b16 %v490, %v487
  %v590 = vpack.c.b16 %v491, %v488
  %v591 = vpack.c.b16 %v492, %v489
  %v592 = vpack.c.b16 %v496, %v493
  %v593 = vpack.c.b16 %v497, %v494
  %v594 = vpack.c.b16 %v498, %v495
  %v695 = vunpack.c.l.b16 %v143
  %v696 = vunpack.c.l.b16 %v144
  %v697 = vunpack.c.l.b16 %v145
  %v698 = vunpack.c.l.b16 %v146
  %v699 = vunpack.c.l.b16 %v147
  %v700 = vunpack.c.l.b16 %v148
  %v701 = vunpack.c.l.b16 %v149
  %v702 = vunpack.c.l.b16 %v150
  %v703 = vunpack.c.l.b16 %v151
  %v704 = vunpack.c.l.b16 %v152
  %v705 = vunpack.c.l.b16 %v153
  %v706 = vunpack.c.l.b16 %v154
  %v707 = vunpack.c.l.b16 %v155
  %v708 = vunpack.c.l.b16 %v156
  %v709 = vunpack.c.l.b16 %v157
  %v710 = vunpack.c.l.b16 %v158
  %v711 = vunpack.c.l.b16 %v159
  %v712 = vunpack.c.l.b16 %v160
  %v713 = vunpack.c.l.b16 %v161
  %v714 = vunpack.c.l.b16 %v162
  %v715 = vunpack.c.l.b16 %v163
  %v716 = vunpack.c.l.b16 %v164
  %v717 = vunpack.c.l.b16 %v165
  %v718 = vunpack.c.l.b16 %v166
  %v719 = vunpack.c.l.b16 %v167
  %v720 = vunpack.c.l.b16 %v168
  %v721 = vunpack.c.l.b16 %v169
  %v722 = vunpack.c.l.b16 %v170
  %v723 = vunpack.c.l.b16 %v171
  %v724 = vunpack.c.l.b16 %v172
  %v725 = vunpack.c.l.b16 %v173
  %v726 = vunpack.c.l.b16 %v174
  %v727 = vunpack.c.l.b16 %v175
  %v728 = vunpack.c.l.b16 %v176
  %v729 = vunpack.c.l.b16 %v177
  %v730 = vunpack.c.l.b16 %v178
  %v731 = vpack.c.b16 %v696, %v695
  %v732 = vpack.c.b16 %v698, %v697
  %v733 = vpack.c.b16 %v700, %v699
  %v734 = vpack.c.b16 %v702, %v701
  %v735 = vpack.c.b16 %v704, %v703
  %v736 = vpack.c.b16 %v706, %v705
  %v737 = vpack.c.b16 %v708, %v707
  %v738 = vpack.c.b16 %v710, %v709
  %v739 = vpack.c.b16 %v712, %v711
  %v740 = vpack.c.b16 %v714, %v713
  %v741 = vpack.c.b16 %v716, %v715
  %v742 = vpack.c.b16 %v718, %v717
  %v743 = vpack.c.b16 %v720, %v719
  %v744 = vpack.c.b16 %v722, %v721
  %v745 = vpack.c.b16 %v724, %v723
  %v746 = vpack.c.b16 %v726, %v725
  %v747 = vpack.c.b16 %v728, %v727
  %v748 = vpack.c.b16 %v730, %v729
  %vm767 = vcmask 261120
  %v769 = vsel %vm767, %v501, 0
  %v772 = vsel %vm767, %v504, 0
  %v775 = vsel %vm767, %v507, 0
  %v778 = vsel %vm767, %v510, 0
  %v781 = vsel %vm767, %v513, 0
  %v784 = vsel %vm767, %v516, 0
  %v787 = vsel %vm767, %v519, 0
  %v790 = vsel %vm767, %v522, 0
  %v793 = vsel %vm767, %v525, 0
  %v796 = vsel %vm767, %v528, 0
  %v799 = vsel %vm767, %v531, 0
  %v802 = vsel %vm767, %v534, 0
  %v805 = vsel %vm767, %v537, 0
  %v808 = vsel %vm767, %v540, 0
  %v811 = vsel %vm767, %v543, 0
  %v814 = vsel %vm767, %v546, 0
  %v817 = vsel %vm767, %v549, 0
  %v820 = vsel %vm767, %v552, 0
  %v823 = vsel %vm767, %v555, 0
  %v826 = vsel %vm767, %v558, 0
  %v829 = vsel %vm767, %v561, 0
  %v832 = vsel %vm767, %v564, 0
  %v835 = vsel %vm767, %v567, 0
  %v838 = vsel %vm767, %v570, 0
  %v841 = vsel %vm767, %v573, 0
  %v844 = vsel %vm767, %v576, 0
  %v847 = vsel %vm767, %v579, 0
  %v850 = vsel %vm767, %v582, 0
  %v853 = vsel %vm767, %v585, 0
  %v856 = vsel %vm767, %v588, 0
  %v859 = vsel %vm767, %v591, 0
  %v862 = vsel %vm767, %v594, 0
  %864 = vmatpush.bf16.msra.mxu0 %v738
  %865 = vmatpush.bf16.msra.mxu0 %v737
  %866 = vmatpush.bf16.msra.mxu0 %v736
  %867 = vmatpush.bf16.msra.mxu0 %v735
  %868 = vmatpush.bf16.msra.mxu0 %v734
  %869 = vmatpush.bf16.msra.mxu0 %v733
  %870 = vmatpush.bf16.msra.mxu0 %v732
  %871 = vmatpush.bf16.msra.mxu0 %v731
  %872 = vmatmul.bf16.gmra.mxu0 %v499
  %v873 = vpop.f32.mrf.mxu0
  %v874 = vadd.f32 0.0, %v873
  %v875 = vpop.f32.mrf.mxu0
  %v876 = vadd.f32 0.0, %v875
  %877 = vmatmul.bf16.gmra.mxu0 %v502
  %v878 = vpop.f32.mrf.mxu0
  %v879 = vadd.f32 0.0, %v878
  %v880 = vpop.f32.mrf.mxu0
  %v881 = vadd.f32 0.0, %v880
  %882 = vmatmul.bf16.gmra.mxu0 %v505
  %v883 = vpop.f32.mrf.mxu0
  %v884 = vadd.f32 0.0, %v883
  %v885 = vpop.f32.mrf.mxu0
  %v886 = vadd.f32 0.0, %v885
  %887 = vmatmul.bf16.gmra.mxu0 %v508
  %v888 = vpop.f32.mrf.mxu0
  %v889 = vadd.f32 0.0, %v888
  %v890 = vpop.f32.mrf.mxu0
  %v891 = vadd.f32 0.0, %v890
  %892 = vmatmul.bf16.gmra.mxu0 %v511
  %v893 = vpop.f32.mrf.mxu0
  %v894 = vadd.f32 0.0, %v893
  %v895 = vpop.f32.mrf.mxu0
  %v896 = vadd.f32 0.0, %v895
  %897 = vmatmul.bf16.gmra.mxu0 %v514
  %v898 = vpop.f32.mrf.mxu0
  %v899 = vadd.f32 0.0, %v898
  %v900 = vpop.f32.mrf.mxu0
  %v901 = vadd.f32 0.0, %v900
  %902 = vmatmul.bf16.gmra.mxu0 %v517
  %v903 = vpop.f32.mrf.mxu0
  %v904 = vadd.f32 0.0, %v903
  %v905 = vpop.f32.mrf.mxu0
  %v906 = vadd.f32 0.0, %v905
  %907 = vmatmul.bf16.gmra.mxu0 %v520
  %v908 = vpop.f32.mrf.mxu0
  %v909 = vadd.f32 0.0, %v908
  %v910 = vpop.f32.mrf.mxu0
  %v911 = vadd.f32 0.0, %v910
  %912 = vmatmul.bf16.gmra.mxu0 %v523
  %v913 = vpop.f32.mrf.mxu0
  %v914 = vadd.f32 0.0, %v913
  %v915 = vpop.f32.mrf.mxu0
  %v916 = vadd.f32 0.0, %v915
  %917 = vmatmul.bf16.gmra.mxu0 %v526
  %v918 = vpop.f32.mrf.mxu0
  %v919 = vadd.f32 0.0, %v918
  %v920 = vpop.f32.mrf.mxu0
  %v921 = vadd.f32 0.0, %v920
  %922 = vmatmul.bf16.gmra.mxu0 %v529
  %v923 = vpop.f32.mrf.mxu0
  %v924 = vadd.f32 0.0, %v923
  %v925 = vpop.f32.mrf.mxu0
  %v926 = vadd.f32 0.0, %v925
  %927 = vmatmul.bf16.gmra.mxu0 %v532
  %v928 = vpop.f32.mrf.mxu0
  %v929 = vadd.f32 0.0, %v928
  %v930 = vpop.f32.mrf.mxu0
  %v931 = vadd.f32 0.0, %v930
  %932 = vmatmul.bf16.gmra.mxu0 %v535
  %v933 = vpop.f32.mrf.mxu0
  %v934 = vadd.f32 0.0, %v933
  %v935 = vpop.f32.mrf.mxu0
  %v936 = vadd.f32 0.0, %v935
  %937 = vmatmul.bf16.gmra.mxu0 %v538
  %v938 = vpop.f32.mrf.mxu0
  %v939 = vadd.f32 0.0, %v938
  %v940 = vpop.f32.mrf.mxu0
  %v941 = vadd.f32 0.0, %v940
  %942 = vmatmul.bf16.gmra.mxu0 %v541
  %v943 = vpop.f32.mrf.mxu0
  %v944 = vadd.f32 0.0, %v943
  %v945 = vpop.f32.mrf.mxu0
  %v946 = vadd.f32 0.0, %v945
  %947 = vmatmul.bf16.gmra.mxu0 %v544
  %v948 = vpop.f32.mrf.mxu0
  %v949 = vadd.f32 0.0, %v948
  %v950 = vpop.f32.mrf.mxu0
  %v951 = vadd.f32 0.0, %v950
  %952 = vmatmul.bf16.gmra.mxu0 %v547
  %v953 = vpop.f32.mrf.mxu0
  %v954 = vadd.f32 0.0, %v953
  %v955 = vpop.f32.mrf.mxu0
  %v956 = vadd.f32 0.0, %v955
  %957 = vmatmul.bf16.gmra.mxu0 %v550
  %v958 = vpop.f32.mrf.mxu0
  %v959 = vadd.f32 0.0, %v958
  %v960 = vpop.f32.mrf.mxu0
  %v961 = vadd.f32 0.0, %v960
  %962 = vmatmul.bf16.gmra.mxu0 %v553
  %v963 = vpop.f32.mrf.mxu0
  %v964 = vadd.f32 0.0, %v963
  %v965 = vpop.f32.mrf.mxu0
  %v966 = vadd.f32 0.0, %v965
  %967 = vmatmul.bf16.gmra.mxu0 %v556
  %v968 = vpop.f32.mrf.mxu0
  %v969 = vadd.f32 0.0, %v968
  %v970 = vpop.f32.mrf.mxu0
  %v971 = vadd.f32 0.0, %v970
  %972 = vmatmul.bf16.gmra.mxu0 %v559
  %v973 = vpop.f32.mrf.mxu0
  %v974 = vadd.f32 0.0, %v973
  %v975 = vpop.f32.mrf.mxu0
  %v976 = vadd.f32 0.0, %v975
  %977 = vmatmul.bf16.gmra.mxu0 %v562
  %v978 = vpop.f32.mrf.mxu0
  %v979 = vadd.f32 0.0, %v978
  %v980 = vpop.f32.mrf.mxu0
  %v981 = vadd.f32 0.0, %v980
  %982 = vmatmul.bf16.gmra.mxu0 %v565
  %v983 = vpop.f32.mrf.mxu0
  %v984 = vadd.f32 0.0, %v983
  %v985 = vpop.f32.mrf.mxu0
  %v986 = vadd.f32 0.0, %v985
  %987 = vmatmul.bf16.gmra.mxu0 %v568
  %v988 = vpop.f32.mrf.mxu0
  %v989 = vadd.f32 0.0, %v988
  %v990 = vpop.f32.mrf.mxu0
  %v991 = vadd.f32 0.0, %v990
  %992 = vmatmul.bf16.gmra.mxu0 %v571
  %v993 = vpop.f32.mrf.mxu0
  %v994 = vadd.f32 0.0, %v993
  %v995 = vpop.f32.mrf.mxu0
  %v996 = vadd.f32 0.0, %v995
  %997 = vmatmul.bf16.gmra.mxu0 %v574
  %v998 = vpop.f32.mrf.mxu0
  %v999 = vadd.f32 0.0, %v998
  %v1000 = vpop.f32.mrf.mxu0
  %v1001 = vadd.f32 0.0, %v1000
  %1002 = vmatmul.bf16.gmra.mxu0 %v577
  %v1003 = vpop.f32.mrf.mxu0
  %v1004 = vadd.f32 0.0, %v1003
  %v1005 = vpop.f32.mrf.mxu0
  %v1006 = vadd.f32 0.0, %v1005
  %1007 = vmatmul.bf16.gmra.mxu0 %v580
  %v1008 = vpop.f32.mrf.mxu0
  %v1009 = vadd.f32 0.0, %v1008
  %v1010 = vpop.f32.mrf.mxu0
  %v1011 = vadd.f32 0.0, %v1010
  %1012 = vmatmul.bf16.gmra.mxu0 %v583
  %v1013 = vpop.f32.mrf.mxu0
  %v1014 = vadd.f32 0.0, %v1013
  %v1015 = vpop.f32.mrf.mxu0
  %v1016 = vadd.f32 0.0, %v1015
  %1017 = vmatmul.bf16.gmra.mxu0 %v586
  %v1018 = vpop.f32.mrf.mxu0
  %v1019 = vadd.f32 0.0, %v1018
  %v1020 = vpop.f32.mrf.mxu0
  %v1021 = vadd.f32 0.0, %v1020
  %1022 = vmatmul.bf16.gmra.mxu0 %v589
  %v1023 = vpop.f32.mrf.mxu0
  %v1024 = vadd.f32 0.0, %v1023
  %v1025 = vpop.f32.mrf.mxu0
  %v1026 = vadd.f32 0.0, %v1025
  %1027 = vmatmul.bf16.gmra.mxu0 %v592
  %v1028 = vpop.f32.mrf.mxu0
  %v1029 = vadd.f32 0.0, %v1028
  %v1030 = vpop.f32.mrf.mxu0
  %v1031 = vadd.f32 0.0, %v1030
  %1032 = vdwg.mxu0
  %1033 = vmatpush.bf16.msra.mxu0 %v746
  %1034 = vmatpush.bf16.msra.mxu0 %v745
  %1035 = vmatpush.bf16.msra.mxu0 %v744
  %1036 = vmatpush.bf16.msra.mxu0 %v743
  %1037 = vmatpush.bf16.msra.mxu0 %v742
  %1038 = vmatpush.bf16.msra.mxu0 %v741
  %1039 = vmatpush.bf16.msra.mxu0 %v740
  %1040 = vmatpush.bf16.msra.mxu0 %v739
  %1041 = vmatmul.bf16.gmra.mxu0 %v500
  %v1042 = vpop.f32.mrf.mxu0
  %v1043 = vadd.f32 %v874, %v1042
  %v1044 = vpop.f32.mrf.mxu0
  %v1045 = vadd.f32 %v876, %v1044
  %1046 = vmatmul.bf16.gmra.mxu0 %v503
  %v1047 = vpop.f32.mrf.mxu0
  %v1048 = vadd.f32 %v879, %v1047
  %v1049 = vpop.f32.mrf.mxu0
  %v1050 = vadd.f32 %v881, %v1049
  %1051 = vmatmul.bf16.gmra.mxu0 %v506
  %v1052 = vpop.f32.mrf.mxu0
  %v1053 = vadd.f32 %v884, %v1052
  %v1054 = vpop.f32.mrf.mxu0
  %v1055 = vadd.f32 %v886, %v1054
  %1056 = vmatmul.bf16.gmra.mxu0 %v509
  %v1057 = vpop.f32.mrf.mxu0
  %v1058 = vadd.f32 %v889, %v1057
  %v1059 = vpop.f32.mrf.mxu0
  %v1060 = vadd.f32 %v891, %v1059
  %1061 = vmatmul.bf16.gmra.mxu0 %v512
  %v1062 = vpop.f32.mrf.mxu0
  %v1063 = vadd.f32 %v894, %v1062
  %v1064 = vpop.f32.mrf.mxu0
  %v1065 = vadd.f32 %v896, %v1064
  %1066 = vmatmul.bf16.gmra.mxu0 %v515
  %v1067 = vpop.f32.mrf.mxu0
  %v1068 = vadd.f32 %v899, %v1067
  %v1069 = vpop.f32.mrf.mxu0
  %v1070 = vadd.f32 %v901, %v1069
  %1071 = vmatmul.bf16.gmra.mxu0 %v518
  %v1072 = vpop.f32.mrf.mxu0
  %v1073 = vadd.f32 %v904, %v1072
  %v1074 = vpop.f32.mrf.mxu0
  %v1075 = vadd.f32 %v906, %v1074
  %1076 = vmatmul.bf16.gmra.mxu0 %v521
  %v1077 = vpop.f32.mrf.mxu0
  %v1078 = vadd.f32 %v909, %v1077
  %v1079 = vpop.f32.mrf.mxu0
  %v1080 = vadd.f32 %v911, %v1079
  %1081 = vmatmul.bf16.gmra.mxu0 %v524
  %v1082 = vpop.f32.mrf.mxu0
  %v1083 = vadd.f32 %v914, %v1082
  %v1084 = vpop.f32.mrf.mxu0
  %v1085 = vadd.f32 %v916, %v1084
  %1086 = vmatmul.bf16.gmra.mxu0 %v527
  %v1087 = vpop.f32.mrf.mxu0
  %v1088 = vadd.f32 %v919, %v1087
  %v1089 = vpop.f32.mrf.mxu0
  %v1090 = vadd.f32 %v921, %v1089
  %1091 = vmatmul.bf16.gmra.mxu0 %v530
  %v1092 = vpop.f32.mrf.mxu0
  %v1093 = vadd.f32 %v924, %v1092
  %v1094 = vpop.f32.mrf.mxu0
  %v1095 = vadd.f32 %v926, %v1094
  %1096 = vmatmul.bf16.gmra.mxu0 %v533
  %v1097 = vpop.f32.mrf.mxu0
  %v1098 = vadd.f32 %v929, %v1097
  %v1099 = vpop.f32.mrf.mxu0
  %v1100 = vadd.f32 %v931, %v1099
  %1101 = vmatmul.bf16.gmra.mxu0 %v536
  %v1102 = vpop.f32.mrf.mxu0
  %v1103 = vadd.f32 %v934, %v1102
  %v1104 = vpop.f32.mrf.mxu0
  %v1105 = vadd.f32 %v936, %v1104
  %1106 = vmatmul.bf16.gmra.mxu0 %v539
  %v1107 = vpop.f32.mrf.mxu0
  %v1108 = vadd.f32 %v939, %v1107
  %v1109 = vpop.f32.mrf.mxu0
  %v1110 = vadd.f32 %v941, %v1109
  %1111 = vmatmul.bf16.gmra.mxu0 %v542
  %v1112 = vpop.f32.mrf.mxu0
  %v1113 = vadd.f32 %v944, %v1112
  %v1114 = vpop.f32.mrf.mxu0
  %v1115 = vadd.f32 %v946, %v1114
  %1116 = vmatmul.bf16.gmra.mxu0 %v545
  %v1117 = vpop.f32.mrf.mxu0
  %v1118 = vadd.f32 %v949, %v1117
  %v1119 = vpop.f32.mrf.mxu0
  %v1120 = vadd.f32 %v951, %v1119
  %1121 = vmatmul.bf16.gmra.mxu0 %v548
  %v1122 = vpop.f32.mrf.mxu0
  %v1123 = vadd.f32 %v954, %v1122
  %v1124 = vpop.f32.mrf.mxu0
  %v1125 = vadd.f32 %v956, %v1124
  %1126 = vmatmul.bf16.gmra.mxu0 %v551
  %v1127 = vpop.f32.mrf.mxu0
  %v1128 = vadd.f32 %v959, %v1127
  %v1129 = vpop.f32.mrf.mxu0
  %v1130 = vadd.f32 %v961, %v1129
  %1131 = vmatmul.bf16.gmra.mxu0 %v554
  %v1132 = vpop.f32.mrf.mxu0
  %v1133 = vadd.f32 %v964, %v1132
  %v1134 = vpop.f32.mrf.mxu0
  %v1135 = vadd.f32 %v966, %v1134
  %1136 = vmatmul.bf16.gmra.mxu0 %v557
  %v1137 = vpop.f32.mrf.mxu0
  %v1138 = vadd.f32 %v969, %v1137
  %v1139 = vpop.f32.mrf.mxu0
  %v1140 = vadd.f32 %v971, %v1139
  %1141 = vmatmul.bf16.gmra.mxu0 %v560
  %v1142 = vpop.f32.mrf.mxu0
  %v1143 = vadd.f32 %v974, %v1142
  %v1144 = vpop.f32.mrf.mxu0
  %v1145 = vadd.f32 %v976, %v1144
  %1146 = vmatmul.bf16.gmra.mxu0 %v563
  %v1147 = vpop.f32.mrf.mxu0
  %v1148 = vadd.f32 %v979, %v1147
  %v1149 = vpop.f32.mrf.mxu0
  %v1150 = vadd.f32 %v981, %v1149
  %1151 = vmatmul.bf16.gmra.mxu0 %v566
  %v1152 = vpop.f32.mrf.mxu0
  %v1153 = vadd.f32 %v984, %v1152
  %v1154 = vpop.f32.mrf.mxu0
  %v1155 = vadd.f32 %v986, %v1154
  %1156 = vmatmul.bf16.gmra.mxu0 %v569
  %v1157 = vpop.f32.mrf.mxu0
  %v1158 = vadd.f32 %v989, %v1157
  %v1159 = vpop.f32.mrf.mxu0
  %v1160 = vadd.f32 %v991, %v1159
  %1161 = vmatmul.bf16.gmra.mxu0 %v572
  %v1162 = vpop.f32.mrf.mxu0
  %v1163 = vadd.f32 %v994, %v1162
  %v1164 = vpop.f32.mrf.mxu0
  %v1165 = vadd.f32 %v996, %v1164
  %1166 = vmatmul.bf16.gmra.mxu0 %v575
  %v1167 = vpop.f32.mrf.mxu0
  %v1168 = vadd.f32 %v999, %v1167
  %v1169 = vpop.f32.mrf.mxu0
  %v1170 = vadd.f32 %v1001, %v1169
  %1171 = vmatmul.bf16.gmra.mxu0 %v578
  %v1172 = vpop.f32.mrf.mxu0
  %v1173 = vadd.f32 %v1004, %v1172
  %v1174 = vpop.f32.mrf.mxu0
  %v1175 = vadd.f32 %v1006, %v1174
  %1176 = vmatmul.bf16.gmra.mxu0 %v581
  %v1177 = vpop.f32.mrf.mxu0
  %v1178 = vadd.f32 %v1009, %v1177
  %v1179 = vpop.f32.mrf.mxu0
  %v1180 = vadd.f32 %v1011, %v1179
  %1181 = vmatmul.bf16.gmra.mxu0 %v584
  %v1182 = vpop.f32.mrf.mxu0
  %v1183 = vadd.f32 %v1014, %v1182
  %v1184 = vpop.f32.mrf.mxu0
  %v1185 = vadd.f32 %v1016, %v1184
  %1186 = vmatmul.bf16.gmra.mxu0 %v587
  %v1187 = vpop.f32.mrf.mxu0
  %v1188 = vadd.f32 %v1019, %v1187
  %v1189 = vpop.f32.mrf.mxu0
  %v1190 = vadd.f32 %v1021, %v1189
  %1191 = vmatmul.bf16.gmra.mxu0 %v590
  %v1192 = vpop.f32.mrf.mxu0
  %v1193 = vadd.f32 %v1024, %v1192
  %v1194 = vpop.f32.mrf.mxu0
  %v1195 = vadd.f32 %v1026, %v1194
  %1196 = vmatmul.bf16.gmra.mxu0 %v593
  %v1197 = vpop.f32.mrf.mxu0
  %v1198 = vadd.f32 %v1029, %v1197
  %v1199 = vpop.f32.mrf.mxu0
  %v1200 = vadd.f32 %v1031, %v1199
  %1201 = vdwg.mxu0
  %1202 = vmatpush.bf16.msra.mxu0 0
  %1203 = vmatpush.bf16.msra.mxu0 0
  %1204 = vmatpush.bf16.msra.mxu0 0
  %1205 = vmatpush.bf16.msra.mxu0 0
  %1206 = vmatpush.bf16.msra.mxu0 0
  %1207 = vmatpush.bf16.msra.mxu0 0
  %1208 = vmatpush.bf16.msra.mxu0 %v748
  %1209 = vmatpush.bf16.msra.mxu0 %v747
  %1210 = vmatmul.bf16.gmra.mxu0 %v769
  %v1211 = vpop.f32.mrf.mxu0
  %v1212 = vadd.f32 %v1043, %v1211
  %v1213 = vpop.f32.mrf.mxu0
  %v1214 = vadd.f32 %v1045, %v1213
  %1215 = vmatmul.bf16.gmra.mxu0 %v772
  %v1216 = vpop.f32.mrf.mxu0
  %v1217 = vadd.f32 %v1048, %v1216
  %v1218 = vpop.f32.mrf.mxu0
  %v1219 = vadd.f32 %v1050, %v1218
  %1220 = vmatmul.bf16.gmra.mxu0 %v775
  %v1221 = vpop.f32.mrf.mxu0
  %v1222 = vadd.f32 %v1053, %v1221
  %v1223 = vpop.f32.mrf.mxu0
  %v1224 = vadd.f32 %v1055, %v1223
  %1225 = vmatmul.bf16.gmra.mxu0 %v778
  %v1226 = vpop.f32.mrf.mxu0
  %v1227 = vadd.f32 %v1058, %v1226
  %v1228 = vpop.f32.mrf.mxu0
  %v1229 = vadd.f32 %v1060, %v1228
  %1230 = vmatmul.bf16.gmra.mxu0 %v781
  %v1231 = vpop.f32.mrf.mxu0
  %v1232 = vadd.f32 %v1063, %v1231
  %v1233 = vpop.f32.mrf.mxu0
  %v1234 = vadd.f32 %v1065, %v1233
  %1235 = vmatmul.bf16.gmra.mxu0 %v784
  %v1236 = vpop.f32.mrf.mxu0
  %v1237 = vadd.f32 %v1068, %v1236
  %v1238 = vpop.f32.mrf.mxu0
  %v1239 = vadd.f32 %v1070, %v1238
  %1240 = vmatmul.bf16.gmra.mxu0 %v787
  %v1241 = vpop.f32.mrf.mxu0
  %v1242 = vadd.f32 %v1073, %v1241
  %v1243 = vpop.f32.mrf.mxu0
  %v1244 = vadd.f32 %v1075, %v1243
  %1245 = vmatmul.bf16.gmra.mxu0 %v790
  %v1246 = vpop.f32.mrf.mxu0
  %v1247 = vadd.f32 %v1078, %v1246
  %v1248 = vpop.f32.mrf.mxu0
  %v1249 = vadd.f32 %v1080, %v1248
  %1250 = vmatmul.bf16.gmra.mxu0 %v793
  %v1251 = vpop.f32.mrf.mxu0
  %v1252 = vadd.f32 %v1083, %v1251
  %v1253 = vpop.f32.mrf.mxu0
  %v1254 = vadd.f32 %v1085, %v1253
  %1255 = vmatmul.bf16.gmra.mxu0 %v796
  %v1256 = vpop.f32.mrf.mxu0
  %v1257 = vadd.f32 %v1088, %v1256
  %v1258 = vpop.f32.mrf.mxu0
  %v1259 = vadd.f32 %v1090, %v1258
  %1260 = vmatmul.bf16.gmra.mxu0 %v799
  %v1261 = vpop.f32.mrf.mxu0
  %v1262 = vadd.f32 %v1093, %v1261
  %v1263 = vpop.f32.mrf.mxu0
  %v1264 = vadd.f32 %v1095, %v1263
  %1265 = vmatmul.bf16.gmra.mxu0 %v802
  %v1266 = vpop.f32.mrf.mxu0
  %v1267 = vadd.f32 %v1098, %v1266
  %v1268 = vpop.f32.mrf.mxu0
  %v1269 = vadd.f32 %v1100, %v1268
  %1270 = vmatmul.bf16.gmra.mxu0 %v805
  %v1271 = vpop.f32.mrf.mxu0
  %v1272 = vadd.f32 %v1103, %v1271
  %v1273 = vpop.f32.mrf.mxu0
  %v1274 = vadd.f32 %v1105, %v1273
  %1275 = vmatmul.bf16.gmra.mxu0 %v808
  %v1276 = vpop.f32.mrf.mxu0
  %v1277 = vadd.f32 %v1108, %v1276
  %v1278 = vpop.f32.mrf.mxu0
  %v1279 = vadd.f32 %v1110, %v1278
  %1280 = vmatmul.bf16.gmra.mxu0 %v811
  %v1281 = vpop.f32.mrf.mxu0
  %v1282 = vadd.f32 %v1113, %v1281
  %v1283 = vpop.f32.mrf.mxu0
  %v1284 = vadd.f32 %v1115, %v1283
  %1285 = vmatmul.bf16.gmra.mxu0 %v814
  %v1286 = vpop.f32.mrf.mxu0
  %v1287 = vadd.f32 %v1118, %v1286
  %v1288 = vpop.f32.mrf.mxu0
  %v1289 = vadd.f32 %v1120, %v1288
  %1290 = vmatmul.bf16.gmra.mxu0 %v817
  %v1291 = vpop.f32.mrf.mxu0
  %v1292 = vadd.f32 %v1123, %v1291
  %v1293 = vpop.f32.mrf.mxu0
  %v1294 = vadd.f32 %v1125, %v1293
  %1295 = vmatmul.bf16.gmra.mxu0 %v820
  %v1296 = vpop.f32.mrf.mxu0
  %v1297 = vadd.f32 %v1128, %v1296
  %v1298 = vpop.f32.mrf.mxu0
  %v1299 = vadd.f32 %v1130, %v1298
  %1300 = vmatmul.bf16.gmra.mxu0 %v823
  %v1301 = vpop.f32.mrf.mxu0
  %v1302 = vadd.f32 %v1133, %v1301
  %v1303 = vpop.f32.mrf.mxu0
  %v1304 = vadd.f32 %v1135, %v1303
  %1305 = vmatmul.bf16.gmra.mxu0 %v826
  %v1306 = vpop.f32.mrf.mxu0
  %v1307 = vadd.f32 %v1138, %v1306
  %v1308 = vpop.f32.mrf.mxu0
  %v1309 = vadd.f32 %v1140, %v1308
  %1310 = vmatmul.bf16.gmra.mxu0 %v829
  %v1311 = vpop.f32.mrf.mxu0
  %v1312 = vadd.f32 %v1143, %v1311
  %v1313 = vpop.f32.mrf.mxu0
  %v1314 = vadd.f32 %v1145, %v1313
  %1315 = vmatmul.bf16.gmra.mxu0 %v832
  %v1316 = vpop.f32.mrf.mxu0
  %v1317 = vadd.f32 %v1148, %v1316
  %v1318 = vpop.f32.mrf.mxu0
  %v1319 = vadd.f32 %v1150, %v1318
  %1320 = vmatmul.bf16.gmra.mxu0 %v835
  %v1321 = vpop.f32.mrf.mxu0
  %v1322 = vadd.f32 %v1153, %v1321
  %v1323 = vpop.f32.mrf.mxu0
  %v1324 = vadd.f32 %v1155, %v1323
  %1325 = vmatmul.bf16.gmra.mxu0 %v838
  %v1326 = vpop.f32.mrf.mxu0
  %v1327 = vadd.f32 %v1158, %v1326
  %v1328 = vpop.f32.mrf.mxu0
  %v1329 = vadd.f32 %v1160, %v1328
  %1330 = vmatmul.bf16.gmra.mxu0 %v841
  %v1331 = vpop.f32.mrf.mxu0
  %v1332 = vadd.f32 %v1163, %v1331
  %v1333 = vpop.f32.mrf.mxu0
  %v1334 = vadd.f32 %v1165, %v1333
  %1335 = vmatmul.bf16.gmra.mxu0 %v844
  %v1336 = vpop.f32.mrf.mxu0
  %v1337 = vadd.f32 %v1168, %v1336
  %v1338 = vpop.f32.mrf.mxu0
  %v1339 = vadd.f32 %v1170, %v1338
  %1340 = vmatmul.bf16.gmra.mxu0 %v847
  %v1341 = vpop.f32.mrf.mxu0
  %v1342 = vadd.f32 %v1173, %v1341
  %v1343 = vpop.f32.mrf.mxu0
  %v1344 = vadd.f32 %v1175, %v1343
  %1345 = vmatmul.bf16.gmra.mxu0 %v850
  %v1346 = vpop.f32.mrf.mxu0
  %v1347 = vadd.f32 %v1178, %v1346
  %v1348 = vpop.f32.mrf.mxu0
  %v1349 = vadd.f32 %v1180, %v1348
  %1350 = vmatmul.bf16.gmra.mxu0 %v853
  %v1351 = vpop.f32.mrf.mxu0
  %v1352 = vadd.f32 %v1183, %v1351
  %v1353 = vpop.f32.mrf.mxu0
  %v1354 = vadd.f32 %v1185, %v1353
  %1355 = vmatmul.bf16.gmra.mxu0 %v856
  %v1356 = vpop.f32.mrf.mxu0
  %v1357 = vadd.f32 %v1188, %v1356
  %v1358 = vpop.f32.mrf.mxu0
  %v1359 = vadd.f32 %v1190, %v1358
  %1360 = vmatmul.bf16.gmra.mxu0 %v859
  %v1361 = vpop.f32.mrf.mxu0
  %v1362 = vadd.f32 %v1193, %v1361
  %v1363 = vpop.f32.mrf.mxu0
  %v1364 = vadd.f32 %v1195, %v1363
  %1365 = vmatmul.bf16.gmra.mxu0 %v862
  %v1366 = vpop.f32.mrf.mxu0
  %v1367 = vadd.f32 %v1198, %v1366
  %v1368 = vpop.f32.mrf.mxu0
  %v1369 = vadd.f32 %v1200, %v1368
  %1370 = vdwg.mxu0
  %v1371 = vmax.f32 %v1212, %v1252
  %v1372 = vmax.f32 %v1214, %v1254
  %v1373 = vmax.f32 %v1217, %v1257
  %v1374 = vmax.f32 %v1219, %v1259
  %v1375 = vmax.f32 %v1222, %v1262
  %v1376 = vmax.f32 %v1224, %v1264
  %v1377 = vmax.f32 %v1227, %v1267
  %v1378 = vmax.f32 %v1229, %v1269
  %v1379 = vmax.f32 %v1232, %v1272
  %v1380 = vmax.f32 %v1234, %v1274
  %v1381 = vmax.f32 %v1237, %v1277
  %v1382 = vmax.f32 %v1239, %v1279
  %v1383 = vmax.f32 %v1242, %v1282
  %v1384 = vmax.f32 %v1244, %v1284
  %v1385 = vmax.f32 %v1247, %v1287
  %v1386 = vmax.f32 %v1249, %v1289
  %v1387 = vmax.f32 %v1292, %v1332
  %v1388 = vmax.f32 %v1294, %v1334
  %v1389 = vmax.f32 %v1297, %v1337
  %v1390 = vmax.f32 %v1299, %v1339
  %v1391 = vmax.f32 %v1302, %v1342
  %v1392 = vmax.f32 %v1304, %v1344
  %v1393 = vmax.f32 %v1307, %v1347
  %v1394 = vmax.f32 %v1309, %v1349
  %v1395 = vmax.f32 %v1312, %v1352
  %v1396 = vmax.f32 %v1314, %v1354
  %v1397 = vmax.f32 %v1317, %v1357
  %v1398 = vmax.f32 %v1319, %v1359
  %v1399 = vmax.f32 %v1322, %v1362
  %v1400 = vmax.f32 %v1324, %v1364
  %v1401 = vmax.f32 %v1327, %v1367
  %v1402 = vmax.f32 %v1329, %v1369
  %v1403 = vmax.f32 %v1371, %v1387
  %v1404 = vmax.f32 %v1372, %v1388
  %v1405 = vmax.f32 %v1373, %v1389
  %v1406 = vmax.f32 %v1374, %v1390
  %v1407 = vmax.f32 %v1375, %v1391
  %v1408 = vmax.f32 %v1376, %v1392
  %v1409 = vmax.f32 %v1377, %v1393
  %v1410 = vmax.f32 %v1378, %v1394
  %v1411 = vmax.f32 %v1379, %v1395
  %v1412 = vmax.f32 %v1380, %v1396
  %v1413 = vmax.f32 %v1381, %v1397
  %v1414 = vmax.f32 %v1382, %v1398
  %v1415 = vmax.f32 %v1383, %v1399
  %v1416 = vmax.f32 %v1384, %v1400
  %v1417 = vmax.f32 %v1385, %v1401
  %v1418 = vmax.f32 %v1386, %v1402
  %v1419 = vld [vmem:[%s2] sm:$0x1]
  %v1421 = vperm.slane %v1419, 0
  %v1423 = vadd.f32 %v1403, %v1421
  %v1424 = vadd.f32 %v1404, %v1421
  %v1425 = vadd.f32 %v1405, %v1421
  %v1426 = vadd.f32 %v1406, %v1421
  %v1427 = vadd.f32 %v1407, %v1421
  %v1428 = vadd.f32 %v1408, %v1421
  %v1429 = vadd.f32 %v1409, %v1421
  %v1430 = vadd.f32 %v1410, %v1421
  %v1431 = vadd.f32 %v1411, %v1421
  %v1432 = vadd.f32 %v1412, %v1421
  %v1433 = vadd.f32 %v1413, %v1421
  %v1434 = vadd.f32 %v1414, %v1421
  %v1435 = vadd.f32 %v1415, %v1421
  %v1436 = vadd.f32 %v1416, %v1421
  %v1437 = vadd.f32 %v1417, %v1421
  %v1438 = vadd.f32 %v1418, %v1421
  %v1439 = vmax.f32 %v1423, 0.0
  %v1440 = vmax.f32 %v1424, 0.0
  %v1441 = vmax.f32 %v1425, 0.0
  %v1442 = vmax.f32 %v1426, 0.0
  %v1443 = vmax.f32 %v1427, 0.0
  %v1444 = vmax.f32 %v1428, 0.0
  %v1445 = vmax.f32 %v1429, 0.0
  %v1446 = vmax.f32 %v1430, 0.0
  %v1447 = vmax.f32 %v1431, 0.0
  %v1448 = vmax.f32 %v1432, 0.0
  %v1449 = vmax.f32 %v1433, 0.0
  %v1450 = vmax.f32 %v1434, 0.0
  %v1451 = vmax.f32 %v1435, 0.0
  %v1452 = vmax.f32 %v1436, 0.0
  %v1453 = vmax.f32 %v1437, 0.0
  %v1454 = vmax.f32 %v1438, 0.0
  %vm1455 = vcmask 523264
  %1456 = vst.msk [vmem:[%s3] sm:$0xff] %vm1455, %v1439
  %1457 = vst.msk [vmem:[%s3 + $0x8] sm:$0xff] %vm1455, %v1440
  %1458 = vst.msk [vmem:[%s3 + $0x10] sm:$0xff] %vm1455, %v1441
  %1459 = vst.msk [vmem:[%s3 + $0x18] sm:$0xff] %vm1455, %v1442
  %1460 = vst.msk [vmem:[%s3 + $0x20] sm:$0xff] %vm1455, %v1443
  %1461 = vst.msk [vmem:[%s3 + $0x28] sm:$0xff] %vm1455, %v1444
  %1462 = vst.msk [vmem:[%s3 + $0x30] sm:$0xff] %vm1455, %v1445
  %1463 = vst.msk [vmem:[%s3 + $0x38] sm:$0xff] %vm1455, %v1446
  %1464 = vst.msk [vmem:[%s3 + $0x40] sm:$0xff] %vm1455, %v1447
  %1465 = vst.msk [vmem:[%s3 + $0x48] sm:$0xff] %vm1455, %v1448
  %1466 = vst.msk [vmem:[%s3 + $0x50] sm:$0xff] %vm1455, %v1449
  %1467 = vst.msk [vmem:[%s3 + $0x58] sm:$0xff] %vm1455, %v1450
  %1468 = vst.msk [vmem:[%s3 + $0x60] sm:$0xff] %vm1455, %v1451
  %1469 = vst.msk [vmem:[%s3 + $0x68] sm:$0xff] %vm1455, %v1452
  %1470 = vst.msk [vmem:[%s3 + $0x70] sm:$0xff] %vm1455, %v1453
  %1471 = vst.msk [vmem:[%s3 + $0x78] sm:$0xff] %vm1455, %v1454
  // Predicated region
  $region14: #{torch_cnn_forward.5} parent=0 // pred_check
    _
  $region15: #{torch_cnn_forward.5} parent=0 // pred_check_branch
    %1473 = sbr.rel (0) target = $region17
  $region16: #{torch_cnn_forward.5} parent=0 // pred_region
    _
  $region17: #{torch_cnn_forward.5} parent=0 // pred_fallthru
    _
  // Predicated region
  $region18: #{torch_cnn_forward.5} parent=0 // pred_check
    _
  $region19: #{torch_cnn_forward.5} parent=0 // pred_check_branch
    %1475 = sbr.rel (0) target = $region21
  $region20: #{torch_cnn_forward.5} parent=0 // pred_region
    _
  $region21: #{torch_cnn_forward.5} parent=0 // pred_fallthru
    _

// kernel: torch_cnn_forward.6
$region0: #{torch_cnn_forward.6}
  #allocation0 [shape = 'u32[]', space=smem, size = 0x4, offset = 0x4, fixed_abs, tag = 'smem constant byte address 0x4 - core index']
  #allocation1 [shape = 'u32[72,128]{1,0:T(1,128)}', space=vmem, size = 0x9000, scoped, tag = 'internal scratch']
  %s0 = inlined_call_operand.vmem [shape: bf16[128,576], index: 0, kind: input, shape index: {}]
  %s1 = inlined_call_operand.vmem [shape: bf16[576,128], index: 1, kind: input, shape index: {}]
  %s2 = inlined_call_operand.vmem [shape: f32[1,128], index: 2, kind: input, shape index: {}]
  %s3 = inlined_call_operand.vmem [shape: f32[32,128], index: 3, kind: output, shape index: {}]
  %s4 = sld [smem:[#allocation0]]
  $region22: #{torch_cnn_forward.6} parent=0
    _
  %s6 = ssub.s32 1, %s4
  %s7 = scalar_select 0, %s6, %s4
  // Predicated region
  $region2: #{torch_cnn_forward.6} parent=0 // pred_check
    _
  $region3: #{torch_cnn_forward.6} parent=0 // pred_check_branch
    %9 = sbr.rel (0) target = $region5
  $region4: #{torch_cnn_forward.6} parent=0 // pred_region
    _
  $region5: #{torch_cnn_forward.6} parent=0 // pred_fallthru
    _
  // Predicated region
  $region6: #{torch_cnn_forward.6} parent=0 // pred_check
    _
  $region7: #{torch_cnn_forward.6} parent=0 // pred_check_branch
    %11 = sbr.rel (0) target = $region9
  $region8: #{torch_cnn_forward.6} parent=0 // pred_region
    _
  $region9: #{torch_cnn_forward.6} parent=0 // pred_fallthru
    _
  // Predicated region
  $region10: #{torch_cnn_forward.6} parent=0 // pred_check
    _
  $region11: #{torch_cnn_forward.6} parent=0 // pred_check_branch
    %13 = sbr.rel (0) target = $region13
  $region12: #{torch_cnn_forward.6} parent=0 // pred_region
    _
  $region13: #{torch_cnn_forward.6} parent=0 // pred_fallthru
    _
  %v15 = vld [vmem:[%s0] sm:$0xff]
  %v16 = vld [vmem:[%s0 + $0x8] sm:$0xff]
  %v17 = vld [vmem:[%s0 + $0x10] sm:$0xf]
  %v18 = vld [vmem:[%s0 + $0x14] sm:$0xff]
  %v19 = vld [vmem:[%s0 + $0x1c] sm:$0xff]
  %v20 = vld [vmem:[%s0 + $0x24] sm:$0xf]
  %v21 = vld [vmem:[%s0 + $0x28] sm:$0xff]
  %v22 = vld [vmem:[%s0 + $0x30] sm:$0xff]
  %v23 = vld [vmem:[%s0 + $0x38] sm:$0xf]
  %v24 = vld [vmem:[%s0 + $0x3c] sm:$0xff]
  %v25 = vld [vmem:[%s0 + $0x44] sm:$0xff]
  %v26 = vld [vmem:[%s0 + $0x4c] sm:$0xf]
  %v27 = vld [vmem:[%s0 + $0x50] sm:$0xff]
  %v28 = vld [vmem:[%s0 + $0x58] sm:$0xff]
  %v29 = vld [vmem:[%s0 + $0x60] sm:$0xf]
  %v30 = vld [vmem:[%s0 + $0x64] sm:$0xff]
  %v31 = vld [vmem:[%s0 + $0x6c] sm:$0xff]
  %v32 = vld [vmem:[%s0 + $0x74] sm:$0xf]
  %v33 = vld [vmem:[%s0 + $0x78] sm:$0xff]
  %v34 = vld [vmem:[%s0 + $0x80] sm:$0xff]
  %v35 = vld [vmem:[%s0 + $0x88] sm:$0xf]
  %v36 = vld [vmem:[%s0 + $0x8c] sm:$0xff]
  %v37 = vld [vmem:[%s0 + $0x94] sm:$0xff]
  %v38 = vld [vmem:[%s0 + $0x9c] sm:$0xf]
  %v39 = vld [vmem:[%s0 + $0xa0] sm:$0xff]
  %v40 = vld [vmem:[%s0 + $0xa8] sm:$0xff]
  %v41 = vld [vmem:[%s0 + $0xb0] sm:$0xf]
  %v42 = vld [vmem:[%s0 + $0xb4] sm:$0xff]
  %v43 = vld [vmem:[%s0 + $0xbc] sm:$0xff]
  %v44 = vld [vmem:[%s0 + $0xc4] sm:$0xf]
  %v45 = vld [vmem:[%s0 + $0xc8] sm:$0xff]
  %v46 = vld [vmem:[%s0 + $0xd0] sm:$0xff]
  %v47 = vld [vmem:[%s0 + $0xd8] sm:$0xf]
  %v48 = vld [vmem:[%s0 + $0xdc] sm:$0xff]
  %v49 = vld [vmem:[%s0 + $0xe4] sm:$0xff]
  %v50 = vld [vmem:[%s0 + $0xec] sm:$0xf]
  %v51 = vld [vmem:[%s0 + $0xf0] sm:$0xff]
  %v52 = vld [vmem:[%s0 + $0xf8] sm:$0xff]
  %v53 = vld [vmem:[%s0 + $0x100] sm:$0xf]
  %v54 = vld [vmem:[%s0 + $0x104] sm:$0xff]
  %v55 = vld [vmem:[%s0 + $0x10c] sm:$0xff]
  %v56 = vld [vmem:[%s0 + $0x114] sm:$0xf]
  %v57 = vld [vmem:[%s0 + $0x118] sm:$0xff]
  %v58 = vld [vmem:[%s0 + $0x120] sm:$0xff]
  %v59 = vld [vmem:[%s0 + $0x128] sm:$0xf]
  %v60 = vld [vmem:[%s0 + $0x12c] sm:$0xff]
  %v61 = vld [vmem:[%s0 + $0x134] sm:$0xff]
  %v62 = vld [vmem:[%s0 + $0x13c] sm:$0xf]
  %v63 = vld [vmem:[%s1] sm:$0xf]
  %v64 = vld [vmem:[%s1 + $0x4] sm:$0xf]
  %v65 = vld [vmem:[%s1 + $0x8] sm:$0xf]
  %v66 = vld [vmem:[%s1 + $0xc] sm:$0xf]
  %v67 = vld [vmem:[%s1 + $0x10] sm:$0xf]
  %v68 = vld [vmem:[%s1 + $0x14] sm:$0xf]
  %v69 = vld [vmem:[%s1 + $0x18] sm:$0xf]
  %v70 = vld [vmem:[%s1 + $0x1c] sm:$0xf]
  %v71 = vld [vmem:[%s1 + $0x20] sm:$0xf]
  %v72 = vld [vmem:[%s1 + $0x24] sm:$0xf]
  %v73 = vld [vmem:[%s1 + $0x28] sm:$0xf]
  %v74 = vld [vmem:[%s1 + $0x2c] sm:$0xf]
  %v75 = vld [vmem:[%s1 + $0x30] sm:$0xf]
  %v76 = vld [vmem:[%s1 + $0x34] sm:$0xf]
  %v77 = vld [vmem:[%s1 + $0x38] sm:$0xf]
  %v78 = vld [vmem:[%s1 + $0x3c] sm:$0xf]
  %v79 = vld [vmem:[%s1 + $0x40] sm:$0xf]
  %v80 = vld [vmem:[%s1 + $0x44] sm:$0xf]
  %v81 = vld [vmem:[%s1 + $0x48] sm:$0xf]
  %v82 = vld [vmem:[%s1 + $0x4c] sm:$0xf]
  %v83 = vld [vmem:[%s1 + $0x50] sm:$0xf]
  %v84 = vld [vmem:[%s1 + $0x54] sm:$0xf]
  %v85 = vld [vmem:[%s1 + $0x58] sm:$0xf]
  %v86 = vld [vmem:[%s1 + $0x5c] sm:$0xf]
  %v87 = vld [vmem:[%s1 + $0x60] sm:$0xf]
  %v88 = vld [vmem:[%s1 + $0x64] sm:$0xf]
  %v89 = vld [vmem:[%s1 + $0x68] sm:$0xf]
  %v90 = vld [vmem:[%s1 + $0x6c] sm:$0xf]
  %v91 = vld [vmem:[%s1 + $0x70] sm:$0xf]
  %v92 = vld [vmem:[%s1 + $0x74] sm:$0xf]
  %v93 = vld [vmem:[%s1 + $0x78] sm:$0xf]
  %v94 = vld [vmem:[%s1 + $0x7c] sm:$0xf]
  %v95 = vld [vmem:[%s1 + $0x80] sm:$0xf]
  %v96 = vld [vmem:[%s1 + $0x84] sm:$0xf]
  %v97 = vld [vmem:[%s1 + $0x88] sm:$0xf]
  %v98 = vld [vmem:[%s1 + $0x8c] sm:$0xf]
  %v99 = vld [vmem:[%s1 + $0x90] sm:$0xf]
  %v100 = vld [vmem:[%s1 + $0x94] sm:$0xf]
  %v101 = vld [vmem:[%s1 + $0x98] sm:$0xf]
  %v102 = vld [vmem:[%s1 + $0x9c] sm:$0xf]
  %v103 = vld [vmem:[%s1 + $0xa0] sm:$0xf]
  %v104 = vld [vmem:[%s1 + $0xa4] sm:$0xf]
  %v105 = vld [vmem:[%s1 + $0xa8] sm:$0xf]
  %v106 = vld [vmem:[%s1 + $0xac] sm:$0xf]
  %v107 = vld [vmem:[%s1 + $0xb0] sm:$0xf]
  %v108 = vld [vmem:[%s1 + $0xb4] sm:$0xf]
  %v109 = vld [vmem:[%s1 + $0xb8] sm:$0xf]
  %v110 = vld [vmem:[%s1 + $0xbc] sm:$0xf]
  %v111 = vld [vmem:[%s1 + $0xc0] sm:$0xf]
  %v112 = vld [vmem:[%s1 + $0xc4] sm:$0xf]
  %v113 = vld [vmem:[%s1 + $0xc8] sm:$0xf]
  %v114 = vld [vmem:[%s1 + $0xcc] sm:$0xf]
  %v115 = vld [vmem:[%s1 + $0xd0] sm:$0xf]
  %v116 = vld [vmem:[%s1 + $0xd4] sm:$0xf]
  %v117 = vld [vmem:[%s1 + $0xd8] sm:$0xf]
  %v118 = vld [vmem:[%s1 + $0xdc] sm:$0xf]
  %v119 = vld [vmem:[%s1 + $0xe0] sm:$0xf]
  %v120 = vld [vmem:[%s1 + $0xe4] sm:$0xf]
  %v121 = vld [vmem:[%s1 + $0xe8] sm:$0xf]
  %v122 = vld [vmem:[%s1 + $0xec] sm:$0xf]
  %v123 = vld [vmem:[%s1 + $0xf0] sm:$0xf]
  %v124 = vld [vmem:[%s1 + $0xf4] sm:$0xf]
  %v125 = vld [vmem:[%s1 + $0xf8] sm:$0xf]
  %v126 = vld [vmem:[%s1 + $0xfc] sm:$0xf]
  %v127 = vld [vmem:[%s1 + $0x100] sm:$0xf]
  %v128 = vld [vmem:[%s1 + $0x104] sm:$0xf]
  %v129 = vld [vmem:[%s1 + $0x108] sm:$0xf]
  %v130 = vld [vmem:[%s1 + $0x10c] sm:$0xf]
  %v131 = vld [vmem:[%s1 + $0x110] sm:$0xf]
  %v132 = vld [vmem:[%s1 + $0x114] sm:$0xf]
  %v133 = vld [vmem:[%s1 + $0x118] sm:$0xf]
  %v134 = vld [vmem:[%s1 + $0x11c] sm:$0xf]
  %v183 = vunpack.c.l.b16 %v15
  %v184 = vunpack.c.h.b16 %v15
  %v185 = vunpack.c.l.b16 %v16
  %v186 = vunpack.c.h.b16 %v16
  %v187 = vunpack.c.l.b16 %v17
  %v188 = vunpack.c.l.b16 %v18
  %v189 = vunpack.c.h.b16 %v18
  %v190 = vunpack.c.l.b16 %v19
  %v191 = vunpack.c.h.b16 %v19
  %v192 = vunpack.c.l.b16 %v20
  %v193 = vunpack.c.l.b16 %v21
  %v194 = vunpack.c.h.b16 %v21
  %v195 = vunpack.c.l.b16 %v22
  %v196 = vunpack.c.h.b16 %v22
  %v197 = vunpack.c.l.b16 %v23
  %v198 = vunpack.c.l.b16 %v24
  %v199 = vunpack.c.h.b16 %v24
  %v200 = vunpack.c.l.b16 %v25
  %v201 = vunpack.c.h.b16 %v25
  %v202 = vunpack.c.l.b16 %v26
  %v203 = vunpack.c.l.b16 %v27
  %v204 = vunpack.c.h.b16 %v27
  %v205 = vunpack.c.l.b16 %v28
  %v206 = vunpack.c.h.b16 %v28
  %v207 = vunpack.c.l.b16 %v29
  %v208 = vunpack.c.l.b16 %v30
  %v209 = vunpack.c.h.b16 %v30
  %v210 = vunpack.c.l.b16 %v31
  %v211 = vunpack.c.h.b16 %v31
  %v212 = vunpack.c.l.b16 %v32
  %v213 = vunpack.c.l.b16 %v33
  %v214 = vunpack.c.h.b16 %v33
  %v215 = vunpack.c.l.b16 %v34
  %v216 = vunpack.c.h.b16 %v34
  %v217 = vunpack.c.l.b16 %v35
  %v218 = vunpack.c.l.b16 %v36
  %v219 = vunpack.c.h.b16 %v36
  %v220 = vunpack.c.l.b16 %v37
  %v221 = vunpack.c.h.b16 %v37
  %v222 = vunpack.c.l.b16 %v38
  %v223 = vunpack.c.l.b16 %v39
  %v224 = vunpack.c.h.b16 %v39
  %v225 = vunpack.c.l.b16 %v40
  %v226 = vunpack.c.h.b16 %v40
  %v227 = vunpack.c.l.b16 %v41
  %v228 = vunpack.c.l.b16 %v42
  %v229 = vunpack.c.h.b16 %v42
  %v230 = vunpack.c.l.b16 %v43
  %v231 = vunpack.c.h.b16 %v43
  %v232 = vunpack.c.l.b16 %v44
  %v233 = vunpack.c.l.b16 %v45
  %v234 = vunpack.c.h.b16 %v45
  %v235 = vunpack.c.l.b16 %v46
  %v236 = vunpack.c.h.b16 %v46
  %v237 = vunpack.c.l.b16 %v47
  %v238 = vunpack.c.l.b16 %v48
  %v239 = vunpack.c.h.b16 %v48
  %v240 = vunpack.c.l.b16 %v49
  %v241 = vunpack.c.h.b16 %v49
  %v242 = vunpack.c.l.b16 %v50
  %v243 = vunpack.c.l.b16 %v51
  %v244 = vunpack.c.h.b16 %v51
  %v245 = vunpack.c.l.b16 %v52
  %v246 = vunpack.c.h.b16 %v52
  %v247 = vunpack.c.l.b16 %v53
  %v248 = vunpack.c.l.b16 %v54
  %v249 = vunpack.c.h.b16 %v54
  %v250 = vunpack.c.l.b16 %v55
  %v251 = vunpack.c.h.b16 %v55
  %v252 = vunpack.c.l.b16 %v56
  %v253 = vunpack.c.l.b16 %v57
  %v254 = vunpack.c.h.b16 %v57
  %v255 = vunpack.c.l.b16 %v58
  %v256 = vunpack.c.h.b16 %v58
  %v257 = vunpack.c.l.b16 %v59
  %v258 = vunpack.c.l.b16 %v60
  %v259 = vunpack.c.h.b16 %v60
  %v260 = vunpack.c.l.b16 %v61
  %v261 = vunpack.c.h.b16 %v61
  %v262 = vunpack.c.l.b16 %v62
  %v263 = vpack.c.b16 %v188, %v183
  %v264 = vpack.c.b16 %v189, %v184
  %v265 = vpack.c.b16 %v190, %v185
  %v266 = vpack.c.b16 %v191, %v186
  %v267 = vpack.c.b16 %v192, %v187
  %v268 = vpack.c.b16 %v198, %v193
  %v269 = vpack.c.b16 %v199, %v194
  %v270 = vpack.c.b16 %v200, %v195
  %v271 = vpack.c.b16 %v201, %v196
  %v272 = vpack.c.b16 %v202, %v197
  %v273 = vpack.c.b16 %v208, %v203
  %v274 = vpack.c.b16 %v209, %v204
  %v275 = vpack.c.b16 %v210, %v205
  %v276 = vpack.c.b16 %v211, %v206
  %v277 = vpack.c.b16 %v212, %v207
  %v278 = vpack.c.b16 %v218, %v213
  %v279 = vpack.c.b16 %v219, %v214
  %v280 = vpack.c.b16 %v220, %v215
  %v281 = vpack.c.b16 %v221, %v216
  %v282 = vpack.c.b16 %v222, %v217
  %v283 = vpack.c.b16 %v228, %v223
  %v284 = vpack.c.b16 %v229, %v224
  %v285 = vpack.c.b16 %v230, %v225
  %v286 = vpack.c.b16 %v231, %v226
  %v287 = vpack.c.b16 %v232, %v227
  %v288 = vpack.c.b16 %v238, %v233
  %v289 = vpack.c.b16 %v239, %v234
  %v290 = vpack.c.b16 %v240, %v235
  %v291 = vpack.c.b16 %v241, %v236
  %v292 = vpack.c.b16 %v242, %v237
  %v293 = vpack.c.b16 %v248, %v243
  %v294 = vpack.c.b16 %v249, %v244
  %v295 = vpack.c.b16 %v250, %v245
  %v296 = vpack.c.b16 %v251, %v246
  %v297 = vpack.c.b16 %v252, %v247
  %v298 = vpack.c.b16 %v258, %v253
  %v299 = vpack.c.b16 %v259, %v254
  %v300 = vpack.c.b16 %v260, %v255
  %v301 = vpack.c.b16 %v261, %v256
  %v302 = vpack.c.b16 %v262, %v257
  %v407 = vunpack.c.l.b16 %v63
  %v408 = vunpack.c.l.b16 %v64
  %v409 = vunpack.c.l.b16 %v65
  %v410 = vunpack.c.l.b16 %v66
  %v411 = vunpack.c.l.b16 %v67
  %v412 = vunpack.c.l.b16 %v68
  %v413 = vunpack.c.l.b16 %v69
  %v414 = vunpack.c.l.b16 %v70
  %v415 = vunpack.c.l.b16 %v71
  %v416 = vunpack.c.l.b16 %v72
  %v417 = vunpack.c.l.b16 %v73
  %v418 = vunpack.c.l.b16 %v74
  %v419 = vunpack.c.l.b16 %v75
  %v420 = vunpack.c.l.b16 %v76
  %v421 = vunpack.c.l.b16 %v77
  %v422 = vunpack.c.l.b16 %v78
  %v423 = vunpack.c.l.b16 %v79
  %v424 = vunpack.c.l.b16 %v80
  %v425 = vunpack.c.l.b16 %v81
  %v426 = vunpack.c.l.b16 %v82
  %v427 = vunpack.c.l.b16 %v83
  %v428 = vunpack.c.l.b16 %v84
  %v429 = vunpack.c.l.b16 %v85
  %v430 = vunpack.c.l.b16 %v86
  %v431 = vunpack.c.l.b16 %v87
  %v432 = vunpack.c.l.b16 %v88
  %v433 = vunpack.c.l.b16 %v89
  %v434 = vunpack.c.l.b16 %v90
  %v435 = vunpack.c.l.b16 %v91
  %v436 = vunpack.c.l.b16 %v92
  %v437 = vunpack.c.l.b16 %v93
  %v438 = vunpack.c.l.b16 %v94
  %v439 = vunpack.c.l.b16 %v95
  %v440 = vunpack.c.l.b16 %v96
  %v441 = vunpack.c.l.b16 %v97
  %v442 = vunpack.c.l.b16 %v98
  %v443 = vunpack.c.l.b16 %v99
  %v444 = vunpack.c.l.b16 %v100
  %v445 = vunpack.c.l.b16 %v101
  %v446 = vunpack.c.l.b16 %v102
  %v447 = vunpack.c.l.b16 %v103
  %v448 = vunpack.c.l.b16 %v104
  %v449 = vunpack.c.l.b16 %v105
  %v450 = vunpack.c.l.b16 %v106
  %v451 = vunpack.c.l.b16 %v107
  %v452 = vunpack.c.l.b16 %v108
  %v453 = vunpack.c.l.b16 %v109
  %v454 = vunpack.c.l.b16 %v110
  %v455 = vunpack.c.l.b16 %v111
  %v456 = vunpack.c.l.b16 %v112
  %v457 = vunpack.c.l.b16 %v113
  %v458 = vunpack.c.l.b16 %v114
  %v459 = vunpack.c.l.b16 %v115
  %v460 = vunpack.c.l.b16 %v116
  %v461 = vunpack.c.l.b16 %v117
  %v462 = vunpack.c.l.b16 %v118
  %v463 = vunpack.c.l.b16 %v119
  %v464 = vunpack.c.l.b16 %v120
  %v465 = vunpack.c.l.b16 %v121
  %v466 = vunpack.c.l.b16 %v122
  %v467 = vunpack.c.l.b16 %v123
  %v468 = vunpack.c.l.b16 %v124
  %v469 = vunpack.c.l.b16 %v125
  %v470 = vunpack.c.l.b16 %v126
  %v471 = vunpack.c.l.b16 %v127
  %v472 = vunpack.c.l.b16 %v128
  %v473 = vunpack.c.l.b16 %v129
  %v474 = vunpack.c.l.b16 %v130
  %v475 = vunpack.c.l.b16 %v131
  %v476 = vunpack.c.l.b16 %v132
  %v477 = vunpack.c.l.b16 %v133
  %v478 = vunpack.c.l.b16 %v134
  %v479 = vpack.c.b16 %v408, %v407
  %v480 = vpack.c.b16 %v410, %v409
  %v481 = vpack.c.b16 %v412, %v411
  %v482 = vpack.c.b16 %v414, %v413
  %v483 = vpack.c.b16 %v416, %v415
  %v484 = vpack.c.b16 %v418, %v417
  %v485 = vpack.c.b16 %v420, %v419
  %v486 = vpack.c.b16 %v422, %v421
  %v487 = vpack.c.b16 %v424, %v423
  %v488 = vpack.c.b16 %v426, %v425
  %v489 = vpack.c.b16 %v428, %v427
  %v490 = vpack.c.b16 %v430, %v429
  %v491 = vpack.c.b16 %v432, %v431
  %v492 = vpack.c.b16 %v434, %v433
  %v493 = vpack.c.b16 %v436, %v435
  %v494 = vpack.c.b16 %v438, %v437
  %v495 = vpack.c.b16 %v440, %v439
  %v496 = vpack.c.b16 %v442, %v441
  %v497 = vpack.c.b16 %v444, %v443
  %v498 = vpack.c.b16 %v446, %v445
  %v499 = vpack.c.b16 %v448, %v447
  %v500 = vpack.c.b16 %v450, %v449
  %v501 = vpack.c.b16 %v452, %v451
  %v502 = vpack.c.b16 %v454, %v453
  %v503 = vpack.c.b16 %v456, %v455
  %v504 = vpack.c.b16 %v458, %v457
  %v505 = vpack.c.b16 %v460, %v459
  %v506 = vpack.c.b16 %v462, %v461
  %v507 = vpack.c.b16 %v464, %v463
  %v508 = vpack.c.b16 %v466, %v465
  %v509 = vpack.c.b16 %v468, %v467
  %v510 = vpack.c.b16 %v470, %v469
  %v511 = vpack.c.b16 %v472, %v471
  %v512 = vpack.c.b16 %v474, %v473
  %v513 = vpack.c.b16 %v476, %v475
  %v514 = vpack.c.b16 %v478, %v477
  %vm551 = vcmask 523264
  %v553 = vsel %vm551, %v267, 0
  %v556 = vsel %vm551, %v272, 0
  %v559 = vsel %vm551, %v277, 0
  %v562 = vsel %vm551, %v282, 0
  %v565 = vsel %vm551, %v287, 0
  %v568 = vsel %vm551, %v292, 0
  %v571 = vsel %vm551, %v297, 0
  %v574 = vsel %vm551, %v302, 0
  %576 = vmatpush.bf16.msra.mxu0 %v486
  %577 = vmatpush.bf16.msra.mxu0 %v485
  %578 = vmatpush.bf16.msra.mxu0 %v484
  %579 = vmatpush.bf16.msra.mxu0 %v483
  %580 = vmatpush.bf16.msra.mxu0 %v482
  %581 = vmatpush.bf16.msra.mxu0 %v481
  %582 = vmatpush.bf16.msra.mxu0 %v480
  %583 = vmatpush.bf16.msra.mxu0 %v479
  %584 = vmatmul.bf16.gmra.mxu0 %v263
  %v585 = vpop.f32.mrf.mxu0
  %v586 = vadd.f32 0.0, %v585
  %v587 = vpop.f32.mrf.mxu0
  %v588 = vadd.f32 0.0, %v587
  %589 = vmatmul.bf16.gmra.mxu0 %v268
  %v590 = vpop.f32.mrf.mxu0
  %v591 = vadd.f32 0.0, %v590
  %v592 = vpop.f32.mrf.mxu0
  %v593 = vadd.f32 0.0, %v592
  %594 = vmatmul.bf16.gmra.mxu0 %v273
  %v595 = vpop.f32.mrf.mxu0
  %v596 = vadd.f32 0.0, %v595
  %v597 = vpop.f32.mrf.mxu0
  %v598 = vadd.f32 0.0, %v597
  %599 = vmatmul.bf16.gmra.mxu0 %v278
  %v600 = vpop.f32.mrf.mxu0
  %v601 = vadd.f32 0.0, %v600
  %v602 = vpop.f32.mrf.mxu0
  %v603 = vadd.f32 0.0, %v602
  %604 = vmatmul.bf16.gmra.mxu0 %v283
  %v605 = vpop.f32.mrf.mxu0
  %v606 = vadd.f32 0.0, %v605
  %v607 = vpop.f32.mrf.mxu0
  %v608 = vadd.f32 0.0, %v607
  %609 = vmatmul.bf16.gmra.mxu0 %v288
  %v610 = vpop.f32.mrf.mxu0
  %v611 = vadd.f32 0.0, %v610
  %v612 = vpop.f32.mrf.mxu0
  %v613 = vadd.f32 0.0, %v612
  %614 = vmatmul.bf16.gmra.mxu0 %v293
  %v615 = vpop.f32.mrf.mxu0
  %v616 = vadd.f32 0.0, %v615
  %v617 = vpop.f32.mrf.mxu0
  %v618 = vadd.f32 0.0, %v617
  %619 = vmatmul.bf16.gmra.mxu0 %v298
  %v620 = vpop.f32.mrf.mxu0
  %v621 = vadd.f32 0.0, %v620
  %v622 = vpop.f32.mrf.mxu0
  %v623 = vadd.f32 0.0, %v622
  %624 = vdwg.mxu0
  %625 = vmatpush.bf16.msra.mxu0 %v494
  %626 = vmatpush.bf16.msra.mxu0 %v493
  %627 = vmatpush.bf16.msra.mxu0 %v492
  %628 = vmatpush.bf16.msra.mxu0 %v491
  %629 = vmatpush.bf16.msra.mxu0 %v490
  %630 = vmatpush.bf16.msra.mxu0 %v489
  %631 = vmatpush.bf16.msra.mxu0 %v488
  %632 = vmatpush.bf16.msra.mxu0 %v487
  %633 = vmatmul.bf16.gmra.mxu0 %v264
  %v634 = vpop.f32.mrf.mxu0
  %v635 = vadd.f32 %v586, %v634
  %v636 = vpop.f32.mrf.mxu0
  %v637 = vadd.f32 %v588, %v636
  %638 = vmatmul.bf16.gmra.mxu0 %v269
  %v639 = vpop.f32.mrf.mxu0
  %v640 = vadd.f32 %v591, %v639
  %v641 = vpop.f32.mrf.mxu0
  %v642 = vadd.f32 %v593, %v641
  %643 = vmatmul.bf16.gmra.mxu0 %v274
  %v644 = vpop.f32.mrf.mxu0
  %v645 = vadd.f32 %v596, %v644
  %v646 = vpop.f32.mrf.mxu0
  %v647 = vadd.f32 %v598, %v646
  %648 = vmatmul.bf16.gmra.mxu0 %v279
  %v649 = vpop.f32.mrf.mxu0
  %v650 = vadd.f32 %v601, %v649
  %v651 = vpop.f32.mrf.mxu0
  %v652 = vadd.f32 %v603, %v651
  %653 = vmatmul.bf16.gmra.mxu0 %v284
  %v654 = vpop.f32.mrf.mxu0
  %v655 = vadd.f32 %v606, %v654
  %v656 = vpop.f32.mrf.mxu0
  %v657 = vadd.f32 %v608, %v656
  %658 = vmatmul.bf16.gmra.mxu0 %v289
  %v659 = vpop.f32.mrf.mxu0
  %v660 = vadd.f32 %v611, %v659
  %v661 = vpop.f32.mrf.mxu0
  %v662 = vadd.f32 %v613, %v661
  %663 = vmatmul.bf16.gmra.mxu0 %v294
  %v664 = vpop.f32.mrf.mxu0
  %v665 = vadd.f32 %v616, %v664
  %v666 = vpop.f32.mrf.mxu0
  %v667 = vadd.f32 %v618, %v666
  %668 = vmatmul.bf16.gmra.mxu0 %v299
  %v669 = vpop.f32.mrf.mxu0
  %v670 = vadd.f32 %v621, %v669
  %v671 = vpop.f32.mrf.mxu0
  %v672 = vadd.f32 %v623, %v671
  %673 = vdwg.mxu0
  %674 = vmatpush.bf16.msra.mxu0 %v502
  %675 = vmatpush.bf16.msra.mxu0 %v501
  %676 = vmatpush.bf16.msra.mxu0 %v500
  %677 = vmatpush.bf16.msra.mxu0 %v499
  %678 = vmatpush.bf16.msra.mxu0 %v498
  %679 = vmatpush.bf16.msra.mxu0 %v497
  %680 = vmatpush.bf16.msra.mxu0 %v496
  %681 = vmatpush.bf16.msra.mxu0 %v495
  %682 = vmatmul.bf16.gmra.mxu0 %v265
  %v683 = vpop.f32.mrf.mxu0
  %v684 = vadd.f32 %v635, %v683
  %v685 = vpop.f32.mrf.mxu0
  %v686 = vadd.f32 %v637, %v685
  %687 = vmatmul.bf16.gmra.mxu0 %v270
  %v688 = vpop.f32.mrf.mxu0
  %v689 = vadd.f32 %v640, %v688
  %v690 = vpop.f32.mrf.mxu0
  %v691 = vadd.f32 %v642, %v690
  %692 = vmatmul.bf16.gmra.mxu0 %v275
  %v693 = vpop.f32.mrf.mxu0
  %v694 = vadd.f32 %v645, %v693
  %v695 = vpop.f32.mrf.mxu0
  %v696 = vadd.f32 %v647, %v695
  %697 = vmatmul.bf16.gmra.mxu0 %v280
  %v698 = vpop.f32.mrf.mxu0
  %v699 = vadd.f32 %v650, %v698
  %v700 = vpop.f32.mrf.mxu0
  %v701 = vadd.f32 %v652, %v700
  %702 = vmatmul.bf16.gmra.mxu0 %v285
  %v703 = vpop.f32.mrf.mxu0
  %v704 = vadd.f32 %v655, %v703
  %v705 = vpop.f32.mrf.mxu0
  %v706 = vadd.f32 %v657, %v705
  %707 = vmatmul.bf16.gmra.mxu0 %v290
  %v708 = vpop.f32.mrf.mxu0
  %v709 = vadd.f32 %v660, %v708
  %v710 = vpop.f32.mrf.mxu0
  %v711 = vadd.f32 %v662, %v710
  %712 = vmatmul.bf16.gmra.mxu0 %v295
  %v713 = vpop.f32.mrf.mxu0
  %v714 = vadd.f32 %v665, %v713
  %v715 = vpop.f32.mrf.mxu0
  %v716 = vadd.f32 %v667, %v715
  %717 = vmatmul.bf16.gmra.mxu0 %v300
  %v718 = vpop.f32.mrf.mxu0
  %v719 = vadd.f32 %v670, %v718
  %v720 = vpop.f32.mrf.mxu0
  %v721 = vadd.f32 %v672, %v720
  %722 = vdwg.mxu0
  %723 = vmatpush.bf16.msra.mxu0 %v510
  %724 = vmatpush.bf16.msra.mxu0 %v509
  %725 = vmatpush.bf16.msra.mxu0 %v508
  %726 = vmatpush.bf16.msra.mxu0 %v507
  %727 = vmatpush.bf16.msra.mxu0 %v506
  %728 = vmatpush.bf16.msra.mxu0 %v505
  %729 = vmatpush.bf16.msra.mxu0 %v504
  %730 = vmatpush.bf16.msra.mxu0 %v503
  %731 = vmatmul.bf16.gmra.mxu0 %v266
  %v732 = vpop.f32.mrf.mxu0
  %v733 = vadd.f32 %v684, %v732
  %v734 = vpop.f32.mrf.mxu0
  %v735 = vadd.f32 %v686, %v734
  %736 = vmatmul.bf16.gmra.mxu0 %v271
  %v737 = vpop.f32.mrf.mxu0
  %v738 = vadd.f32 %v689, %v737
  %v739 = vpop.f32.mrf.mxu0
  %v740 = vadd.f32 %v691, %v739
  %741 = vmatmul.bf16.gmra.mxu0 %v276
  %v742 = vpop.f32.mrf.mxu0
  %v743 = vadd.f32 %v694, %v742
  %v744 = vpop.f32.mrf.mxu0
  %v745 = vadd.f32 %v696, %v744
  %746 = vmatmul.bf16.gmra.mxu0 %v281
  %v747 = vpop.f32.mrf.mxu0
  %v748 = vadd.f32 %v699, %v747
  %v749 = vpop.f32.mrf.mxu0
  %v750 = vadd.f32 %v701, %v749
  %751 = vmatmul.bf16.gmra.mxu0 %v286
  %v752 = vpop.f32.mrf.mxu0
  %v753 = vadd.f32 %v704, %v752
  %v754 = vpop.f32.mrf.mxu0
  %v755 = vadd.f32 %v706, %v754
  %756 = vmatmul.bf16.gmra.mxu0 %v291
  %v757 = vpop.f32.mrf.mxu0
  %v758 = vadd.f32 %v709, %v757
  %v759 = vpop.f32.mrf.mxu0
  %v760 = vadd.f32 %v711, %v759
  %761 = vmatmul.bf16.gmra.mxu0 %v296
  %v762 = vpop.f32.mrf.mxu0
  %v763 = vadd.f32 %v714, %v762
  %v764 = vpop.f32.mrf.mxu0
  %v765 = vadd.f32 %v716, %v764
  %766 = vmatmul.bf16.gmra.mxu0 %v301
  %v767 = vpop.f32.mrf.mxu0
  %v768 = vadd.f32 %v719, %v767
  %v769 = vpop.f32.mrf.mxu0
  %v770 = vadd.f32 %v721, %v769
  %771 = vdwg.mxu0
  %772 = vmatpush.bf16.msra.mxu0 0
  %773 = vmatpush.bf16.msra.mxu0 0
  %774 = vmatpush.bf16.msra.mxu0 0
  %775 = vmatpush.bf16.msra.mxu0 0
  %776 = vmatpush.bf16.msra.mxu0 %v514
  %777 = vmatpush.bf16.msra.mxu0 %v513
  %778 = vmatpush.bf16.msra.mxu0 %v512
  %779 = vmatpush.bf16.msra.mxu0 %v511
  %780 = vmatmul.bf16.gmra.mxu0 %v553
  %v781 = vpop.f32.mrf.mxu0
  %v782 = vadd.f32 %v733, %v781
  %v783 = vpop.f32.mrf.mxu0
  %v784 = vadd.f32 %v735, %v783
  %785 = vmatmul.bf16.gmra.mxu0 %v556
  %v786 = vpop.f32.mrf.mxu0
  %v787 = vadd.f32 %v738, %v786
  %v788 = vpop.f32.mrf.mxu0
  %v789 = vadd.f32 %v740, %v788
  %790 = vmatmul.bf16.gmra.mxu0 %v559
  %v791 = vpop.f32.mrf.mxu0
  %v792 = vadd.f32 %v743, %v791
  %v793 = vpop.f32.mrf.mxu0
  %v794 = vadd.f32 %v745, %v793
  %795 = vmatmul.bf16.gmra.mxu0 %v562
  %v796 = vpop.f32.mrf.mxu0
  %v797 = vadd.f32 %v748, %v796
  %v798 = vpop.f32.mrf.mxu0
  %v799 = vadd.f32 %v750, %v798
  %800 = vmatmul.bf16.gmra.mxu0 %v565
  %v801 = vpop.f32.mrf.mxu0
  %v802 = vadd.f32 %v753, %v801
  %v803 = vpop.f32.mrf.mxu0
  %v804 = vadd.f32 %v755, %v803
  %805 = vmatmul.bf16.gmra.mxu0 %v568
  %v806 = vpop.f32.mrf.mxu0
  %v807 = vadd.f32 %v758, %v806
  %v808 = vpop.f32.mrf.mxu0
  %v809 = vadd.f32 %v760, %v808
  %810 = vmatmul.bf16.gmra.mxu0 %v571
  %v811 = vpop.f32.mrf.mxu0
  %v812 = vadd.f32 %v763, %v811
  %v813 = vpop.f32.mrf.mxu0
  %v814 = vadd.f32 %v765, %v813
  %815 = vmatmul.bf16.gmra.mxu0 %v574
  %v816 = vpop.f32.mrf.mxu0
  %v817 = vadd.f32 %v768, %v816
  %v818 = vpop.f32.mrf.mxu0
  %v819 = vadd.f32 %v770, %v818
  %820 = vdwg.mxu0
  %v821 = vmax.f32 %v782, %v792
  %v822 = vmax.f32 %v784, %v794
  %v823 = vmax.f32 %v787, %v797
  %v824 = vmax.f32 %v789, %v799
  %v825 = vmax.f32 %v802, %v812
  %v826 = vmax.f32 %v804, %v814
  %v827 = vmax.f32 %v807, %v817
  %v828 = vmax.f32 %v809, %v819
  %v829 = vmax.f32 %v821, %v825
  %v830 = vmax.f32 %v822, %v826
  %v831 = vmax.f32 %v823, %v827
  %v832 = vmax.f32 %v824, %v828
  %v833 = vld [vmem:[%s2] sm:$0x1]
  %v835 = vperm.slane %v833, 0
  %v837 = vadd.f32 %v829, %v835
  %v838 = vadd.f32 %v830, %v835
  %v839 = vadd.f32 %v831, %v835
  %v840 = vadd.f32 %v832, %v835
  %v841 = vmax.f32 %v837, 0.0
  %v842 = vmax.f32 %v838, 0.0
  %v843 = vmax.f32 %v839, 0.0
  %v844 = vmax.f32 %v840, 0.0
  %845 = vst [vmem:[%s3] sm:$0xff] %v841
  %846 = vst [vmem:[%s3 + $0x8] sm:$0xff] %v842
  %847 = vst [vmem:[%s3 + $0x10] sm:$0xff] %v843
  %848 = vst [vmem:[%s3 + $0x18] sm:$0xff] %v844
  // Predicated region
  $region14: #{torch_cnn_forward.6} parent=0 // pred_check
    _
  $region15: #{torch_cnn_forward.6} parent=0 // pred_check_branch
    %850 = sbr.rel (0) target = $region17
  $region16: #{torch_cnn_forward.6} parent=0 // pred_region
    _
  $region17: #{torch_cnn_forward.6} parent=0 // pred_fallthru
    _
  // Predicated region
  $region18: #{torch_cnn_forward.6} parent=0 // pred_check
    _
  $region19: #{torch_cnn_forward.6} parent=0 // pred_check_branch
    %852 = sbr.rel (0) target = $region21
  $region20: #{torch_cnn_forward.6} parent=0 // pred_region
    _
  $region21: #{torch_cnn_forward.6} parent=0 // pred_fallthru
    _

// kernel: torch_cnn_forward.7
$region0: #{torch_cnn_forward.7}
  #allocation0 [shape = 'u32[]', space=smem, size = 0x4, offset = 0x4, fixed_abs, tag = 'smem constant byte address 0x4 - core index']
  #allocation1 [shape = 'u32[72,128]{1,0:T(1,128)}', space=vmem, size = 0x9000, scoped, tag = 'internal scratch']
  %s0 = inlined_call_operand.vmem [shape: bf16[8,1152], index: 0, kind: input, shape index: {}]
  %s1 = inlined_call_operand.vmem [shape: bf16[1152,256], index: 1, kind: input, shape index: {}]
  %s2 = inlined_call_operand.vmem [shape: f32[1,256], index: 2, kind: input, shape index: {}]
  %s3 = inlined_call_operand.vmem [shape: bf16[256,10], index: 3, kind: input, shape index: {}]
  %s4 = inlined_call_operand.vmem [shape: f32[1,10], index: 4, kind: input, shape index: {}]
  %s5 = inlined_call_operand.vmem [shape: f32[8,10], index: 5, kind: output, shape index: {}]
  %s6 = sld [smem:[#allocation0]]
  $region30: #{torch_cnn_forward.7} parent=0
    _
  %s8 = ssub.s32 1, %s6
  %s9 = scalar_select 0, %s8, %s6
  // Predicated region
  $region2: #{torch_cnn_forward.7} parent=0 // pred_check
    _
  $region3: #{torch_cnn_forward.7} parent=0 // pred_check_branch
    %11 = sbr.rel (0) target = $region5
  $region4: #{torch_cnn_forward.7} parent=0 // pred_region
    _
  $region5: #{torch_cnn_forward.7} parent=0 // pred_fallthru
    _
  // Predicated region
  $region6: #{torch_cnn_forward.7} parent=0 // pred_check
    _
  $region7: #{torch_cnn_forward.7} parent=0 // pred_check_branch
    %13 = sbr.rel (0) target = $region9
  $region8: #{torch_cnn_forward.7} parent=0 // pred_region
    _
  $region9: #{torch_cnn_forward.7} parent=0 // pred_fallthru
    _
  // Predicated region
  $region10: #{torch_cnn_forward.7} parent=0 // pred_check
    _
  $region11: #{torch_cnn_forward.7} parent=0 // pred_check_branch
    %15 = sbr.rel (0) target = $region13
  $region12: #{torch_cnn_forward.7} parent=0 // pred_region
    _
  $region13: #{torch_cnn_forward.7} parent=0 // pred_fallthru
    _
  // Predicated region
  $region14: #{torch_cnn_forward.7} parent=0 // pred_check
    _
  $region15: #{torch_cnn_forward.7} parent=0 // pred_check_branch
    %17 = sbr.rel (0) target = $region17
  $region16: #{torch_cnn_forward.7} parent=0 // pred_region
    _
  $region17: #{torch_cnn_forward.7} parent=0 // pred_fallthru
    _
  // Predicated region
  $region18: #{torch_cnn_forward.7} parent=0 // pred_check
    _
  $region19: #{torch_cnn_forward.7} parent=0 // pred_check_branch
    %19 = sbr.rel (0) target = $region21
  $region20: #{torch_cnn_forward.7} parent=0 // pred_region
    _
  $region21: #{torch_cnn_forward.7} parent=0 // pred_fallthru
    _
  %v20 = vld [vmem:[%s0] sm:$0xff]
  %v21 = vld [vmem:[%s0 + $0x8] sm:$0xff]
  %v22 = vld [vmem:[%s0 + $0x10] sm:$0xff]
  %v23 = vld [vmem:[%s0 + $0x18] sm:$0xff]
  %v24 = vld [vmem:[%s0 + $0x20] sm:$0xf]
  %v25 = vld [vmem:[%s1] sm:$0xff]
  %v26 = vld [vmem:[%s1 + $0x8] sm:$0xff]
  %v27 = vld [vmem:[%s1 + $0x10] sm:$0xff]
  %v28 = vld [vmem:[%s1 + $0x18] sm:$0xff]
  %v29 = vld [vmem:[%s1 + $0x20] sm:$0xff]
  %v30 = vld [vmem:[%s1 + $0x28] sm:$0xff]
  %v31 = vld [vmem:[%s1 + $0x30] sm:$0xff]
  %v32 = vld [vmem:[%s1 + $0x38] sm:$0xff]
  %v33 = vld [vmem:[%s1 + $0x40] sm:$0xff]
  %v34 = vld [vmem:[%s1 + $0x48] sm:$0xff]
  %v35 = vld [vmem:[%s1 + $0x50] sm:$0xff]
  %v36 = vld [vmem:[%s1 + $0x58] sm:$0xff]
  %v37 = vld [vmem:[%s1 + $0x60] sm:$0xff]
  %v38 = vld [vmem:[%s1 + $0x68] sm:$0xff]
  %v39 = vld [vmem:[%s1 + $0x70] sm:$0xff]
  %v40 = vld [vmem:[%s1 + $0x78] sm:$0xff]
  %v41 = vld [vmem:[%s1 + $0x80] sm:$0xff]
  %v42 = vld [vmem:[%s1 + $0x88] sm:$0xff]
  %v43 = vld [vmem:[%s1 + $0x90] sm:$0xff]
  %v44 = vld [vmem:[%s1 + $0x98] sm:$0xff]
  %v45 = vld [vmem:[%s1 + $0xa0] sm:$0xff]
  %v46 = vld [vmem:[%s1 + $0xa8] sm:$0xff]
  %v47 = vld [vmem:[%s1 + $0xb0] sm:$0xff]
  %v48 = vld [vmem:[%s1 + $0xb8] sm:$0xff]
  %v49 = vld [vmem:[%s1 + $0xc0] sm:$0xff]
  %v50 = vld [vmem:[%s1 + $0xc8] sm:$0xff]
  %v51 = vld [vmem:[%s1 + $0xd0] sm:$0xff]
  %v52 = vld [vmem:[%s1 + $0xd8] sm:$0xff]
  %v53 = vld [vmem:[%s1 + $0xe0] sm:$0xff]
  %v54 = vld [vmem:[%s1 + $0xe8] sm:$0xff]
  %v55 = vld [vmem:[%s1 + $0xf0] sm:$0xff]
  %v56 = vld [vmem:[%s1 + $0xf8] sm:$0xff]
  %v57 = vld [vmem:[%s1 + $0x100] sm:$0xff]
  %v58 = vld [vmem:[%s1 + $0x108] sm:$0xff]
  %v59 = vld [vmem:[%s1 + $0x110] sm:$0xff]
  %v60 = vld [vmem:[%s1 + $0x118] sm:$0xff]
  %v61 = vld [vmem:[%s1 + $0x120] sm:$0xff]
  %v62 = vld [vmem:[%s1 + $0x128] sm:$0xff]
  %v63 = vld [vmem:[%s1 + $0x130] sm:$0xff]
  %v64 = vld [vmem:[%s1 + $0x138] sm:$0xff]
  %v65 = vld [vmem:[%s1 + $0x140] sm:$0xff]
  %v66 = vld [vmem:[%s1 + $0x148] sm:$0xff]
  %v67 = vld [vmem:[%s1 + $0x150] sm:$0xff]
  %v68 = vld [vmem:[%s1 + $0x158] sm:$0xff]
  %v69 = vld [vmem:[%s1 + $0x160] sm:$0xff]
  %v70 = vld [vmem:[%s1 + $0x168] sm:$0xff]
  %v71 = vld [vmem:[%s1 + $0x170] sm:$0xff]
  %v72 = vld [vmem:[%s1 + $0x178] sm:$0xff]
  %v73 = vld [vmem:[%s1 + $0x180] sm:$0xff]
  %v74 = vld [vmem:[%s1 + $0x188] sm:$0xff]
  %v75 = vld [vmem:[%s1 + $0x190] sm:$0xff]
  %v76 = vld [vmem:[%s1 + $0x198] sm:$0xff]
  %v77 = vld [vmem:[%s1 + $0x1a0] sm:$0xff]
  %v78 = vld [vmem:[%s1 + $0x1a8] sm:$0xff]
  %v79 = vld [vmem:[%s1 + $0x1b0] sm:$0xff]
  %v80 = vld [vmem:[%s1 + $0x1b8] sm:$0xff]
  %v81 = vld [vmem:[%s1 + $0x1c0] sm:$0xff]
  %v82 = vld [vmem:[%s1 + $0x1c8] sm:$0xff]
  %v83 = vld [vmem:[%s1 + $0x1d0] sm:$0xff]
  %v84 = vld [vmem:[%s1 + $0x1d8] sm:$0xff]
  %v85 = vld [vmem:[%s1 + $0x1e0] sm:$0xff]
  %v86 = vld [vmem:[%s1 + $0x1e8] sm:$0xff]
  %v87 = vld [vmem:[%s1 + $0x1f0] sm:$0xff]
  %v88 = vld [vmem:[%s1 + $0x1f8] sm:$0xff]
  %v89 = vld [vmem:[%s1 + $0x200] sm:$0xff]
  %v90 = vld [vmem:[%s1 + $0x208] sm:$0xff]
  %v91 = vld [vmem:[%s1 + $0x210] sm:$0xff]
  %v92 = vld [vmem:[%s1 + $0x218] sm:$0xff]
  %v93 = vld [vmem:[%s1 + $0x220] sm:$0xff]
  %v94 = vld [vmem:[%s1 + $0x228] sm:$0xff]
  %v95 = vld [vmem:[%s1 + $0x230] sm:$0xff]
  %v96 = vld [vmem:[%s1 + $0x238] sm:$0xff]
  %v97 = vld [vmem:[%s1 + $0x240] sm:$0xff]
  %v98 = vld [vmem:[%s1 + $0x248] sm:$0xff]
  %v99 = vld [vmem:[%s1 + $0x250] sm:$0xff]
  %v100 = vld [vmem:[%s1 + $0x258] sm:$0xff]
  %v101 = vld [vmem:[%s1 + $0x260] sm:$0xff]
  %v102 = vld [vmem:[%s1 + $0x268] sm:$0xff]
  %v103 = vld [vmem:[%s1 + $0x270] sm:$0xff]
  %v104 = vld [vmem:[%s1 + $0x278] sm:$0xff]
  %v105 = vld [vmem:[%s1 + $0x280] sm:$0xff]
  %v106 = vld [vmem:[%s1 + $0x288] sm:$0xff]
  %v107 = vld [vmem:[%s1 + $0x290] sm:$0xff]
  %v108 = vld [vmem:[%s1 + $0x298] sm:$0xff]
  %v109 = vld [vmem:[%s1 + $0x2a0] sm:$0xff]
  %v110 = vld [vmem:[%s1 + $0x2a8] sm:$0xff]
  %v111 = vld [vmem:[%s1 + $0x2b0] sm:$0xff]
  %v112 = vld [vmem:[%s1 + $0x2b8] sm:$0xff]
  %v113 = vld [vmem:[%s1 + $0x2c0] sm:$0xff]
  %v114 = vld [vmem:[%s1 + $0x2c8] sm:$0xff]
  %v115 = vld [vmem:[%s1 + $0x2d0] sm:$0xff]
  %v116 = vld [vmem:[%s1 + $0x2d8] sm:$0xff]
  %v117 = vld [vmem:[%s1 + $0x2e0] sm:$0xff]
  %v118 = vld [vmem:[%s1 + $0x2e8] sm:$0xff]
  %v119 = vld [vmem:[%s1 + $0x2f0] sm:$0xff]
  %v120 = vld [vmem:[%s1 + $0x2f8] sm:$0xff]
  %v121 = vld [vmem:[%s1 + $0x300] sm:$0xff]
  %v122 = vld [vmem:[%s1 + $0x308] sm:$0xff]
  %v123 = vld [vmem:[%s1 + $0x310] sm:$0xff]
  %v124 = vld [vmem:[%s1 + $0x318] sm:$0xff]
  %v125 = vld [vmem:[%s1 + $0x320] sm:$0xff]
  %v126 = vld [vmem:[%s1 + $0x328] sm:$0xff]
  %v127 = vld [vmem:[%s1 + $0x330] sm:$0xff]
  %v128 = vld [vmem:[%s1 + $0x338] sm:$0xff]
  %v129 = vld [vmem:[%s1 + $0x340] sm:$0xff]
  %v130 = vld [vmem:[%s1 + $0x348] sm:$0xff]
  %v131 = vld [vmem:[%s1 + $0x350] sm:$0xff]
  %v132 = vld [vmem:[%s1 + $0x358] sm:$0xff]
  %v133 = vld [vmem:[%s1 + $0x360] sm:$0xff]
  %v134 = vld [vmem:[%s1 + $0x368] sm:$0xff]
  %v135 = vld [vmem:[%s1 + $0x370] sm:$0xff]
  %v136 = vld [vmem:[%s1 + $0x378] sm:$0xff]
  %v137 = vld [vmem:[%s1 + $0x380] sm:$0xff]
  %v138 = vld [vmem:[%s1 + $0x388] sm:$0xff]
  %v139 = vld [vmem:[%s1 + $0x390] sm:$0xff]
  %v140 = vld [vmem:[%s1 + $0x398] sm:$0xff]
  %v141 = vld [vmem:[%s1 + $0x3a0] sm:$0xff]
  %v142 = vld [vmem:[%s1 + $0x3a8] sm:$0xff]
  %v143 = vld [vmem:[%s1 + $0x3b0] sm:$0xff]
  %v144 = vld [vmem:[%s1 + $0x3b8] sm:$0xff]
  %v145 = vld [vmem:[%s1 + $0x3c0] sm:$0xff]
  %v146 = vld [vmem:[%s1 + $0x3c8] sm:$0xff]
  %v147 = vld [vmem:[%s1 + $0x3d0] sm:$0xff]
  %v148 = vld [vmem:[%s1 + $0x3d8] sm:$0xff]
  %v149 = vld [vmem:[%s1 + $0x3e0] sm:$0xff]
  %v150 = vld [vmem:[%s1 + $0x3e8] sm:$0xff]
  %v151 = vld [vmem:[%s1 + $0x3f0] sm:$0xff]
  %v152 = vld [vmem:[%s1 + $0x3f8] sm:$0xff]
  %v153 = vld [vmem:[%s1 + $0x400] sm:$0xff]
  %v154 = vld [vmem:[%s1 + $0x408] sm:$0xff]
  %v155 = vld [vmem:[%s1 + $0x410] sm:$0xff]
  %v156 = vld [vmem:[%s1 + $0x418] sm:$0xff]
  %v157 = vld [vmem:[%s1 + $0x420] sm:$0xff]
  %v158 = vld [vmem:[%s1 + $0x428] sm:$0xff]
  %v159 = vld [vmem:[%s1 + $0x430] sm:$0xff]
  %v160 = vld [vmem:[%s1 + $0x438] sm:$0xff]
  %v161 = vld [vmem:[%s1 + $0x440] sm:$0xff]
  %v162 = vld [vmem:[%s1 + $0x448] sm:$0xff]
  %v163 = vld [vmem:[%s1 + $0x450] sm:$0xff]
  %v164 = vld [vmem:[%s1 + $0x458] sm:$0xff]
  %v165 = vld [vmem:[%s1 + $0x460] sm:$0xff]
  %v166 = vld [vmem:[%s1 + $0x468] sm:$0xff]
  %v167 = vld [vmem:[%s1 + $0x470] sm:$0xff]
  %v168 = vld [vmem:[%s1 + $0x478] sm:$0xff]
  %v169 = vld [vmem:[%s2] sm:$0x3]
  %v171 = vperm.slane %v169, 0
  %v172 = vperm.slane %v169, 1
  %v180 = vunpack.c.l.b16 %v20
  %v181 = vunpack.c.h.b16 %v20
  %v182 = vunpack.c.l.b16 %v21
  %v183 = vunpack.c.h.b16 %v21
  %v184 = vunpack.c.l.b16 %v22
  %v185 = vunpack.c.h.b16 %v22
  %v186 = vunpack.c.l.b16 %v23
  %v187 = vunpack.c.h.b16 %v23
  %v188 = vunpack.c.l.b16 %v24
  %v189 = vpack.c.b16 %v180, %v180
  %v190 = vpack.c.b16 %v181, %v181
  %v191 = vpack.c.b16 %v182, %v182
  %v192 = vpack.c.b16 %v183, %v183
  %v193 = vpack.c.b16 %v184, %v184
  %v194 = vpack.c.b16 %v185, %v185
  %v195 = vpack.c.b16 %v186, %v186
  %v196 = vpack.c.b16 %v187, %v187
  %v197 = vpack.c.b16 %v188, %v188
  %v351 = vunpack.c.l.b16 %v25
  %v352 = vunpack.c.h.b16 %v25
  %v353 = vunpack.c.l.b16 %v26
  %v354 = vunpack.c.h.b16 %v26
  %v355 = vunpack.c.l.b16 %v27
  %v356 = vunpack.c.h.b16 %v27
  %v357 = vunpack.c.l.b16 %v28
  %v358 = vunpack.c.h.b16 %v28
  %v359 = vunpack.c.l.b16 %v29
  %v360 = vunpack.c.h.b16 %v29
  %v361 = vunpack.c.l.b16 %v30
  %v362 = vunpack.c.h.b16 %v30
  %v363 = vunpack.c.l.b16 %v31
  %v364 = vunpack.c.h.b16 %v31
  %v365 = vunpack.c.l.b16 %v32
  %v366 = vunpack.c.h.b16 %v32
  %v367 = vunpack.c.l.b16 %v33
  %v368 = vunpack.c.h.b16 %v33
  %v369 = vunpack.c.l.b16 %v34
  %v370 = vunpack.c.h.b16 %v34
  %v371 = vunpack.c.l.b16 %v35
  %v372 = vunpack.c.h.b16 %v35
  %v373 = vunpack.c.l.b16 %v36
  %v374 = vunpack.c.h.b16 %v36
  %v375 = vunpack.c.l.b16 %v37
  %v376 = vunpack.c.h.b16 %v37
  %v377 = vunpack.c.l.b16 %v38
  %v378 = vunpack.c.h.b16 %v38
  %v379 = vunpack.c.l.b16 %v39
  %v380 = vunpack.c.h.b16 %v39
  %v381 = vunpack.c.l.b16 %v40
  %v382 = vunpack.c.h.b16 %v40
  %v383 = vunpack.c.l.b16 %v41
  %v384 = vunpack.c.h.b16 %v41
  %v385 = vunpack.c.l.b16 %v42
  %v386 = vunpack.c.h.b16 %v42
  %v387 = vunpack.c.l.b16 %v43
  %v388 = vunpack.c.h.b16 %v43
  %v389 = vunpack.c.l.b16 %v44
  %v390 = vunpack.c.h.b16 %v44
  %v391 = vunpack.c.l.b16 %v45
  %v392 = vunpack.c.h.b16 %v45
  %v393 = vunpack.c.l.b16 %v46
  %v394 = vunpack.c.h.b16 %v46
  %v395 = vunpack.c.l.b16 %v47
  %v396 = vunpack.c.h.b16 %v47
  %v397 = vunpack.c.l.b16 %v48
  %v398 = vunpack.c.h.b16 %v48
  %v399 = vunpack.c.l.b16 %v49
  %v400 = vunpack.c.h.b16 %v49
  %v401 = vunpack.c.l.b16 %v50
  %v402 = vunpack.c.h.b16 %v50
  %v403 = vunpack.c.l.b16 %v51
  %v404 = vunpack.c.h.b16 %v51
  %v405 = vunpack.c.l.b16 %v52
  %v406 = vunpack.c.h.b16 %v52
  %v407 = vunpack.c.l.b16 %v53
  %v408 = vunpack.c.h.b16 %v53
  %v409 = vunpack.c.l.b16 %v54
  %v410 = vunpack.c.h.b16 %v54
  %v411 = vunpack.c.l.b16 %v55
  %v412 = vunpack.c.h.b16 %v55
  %v413 = vunpack.c.l.b16 %v56
  %v414 = vunpack.c.h.b16 %v56
  %v415 = vunpack.c.l.b16 %v57
  %v416 = vunpack.c.h.b16 %v57
  %v417 = vunpack.c.l.b16 %v58
  %v418 = vunpack.c.h.b16 %v58
  %v419 = vunpack.c.l.b16 %v59
  %v420 = vunpack.c.h.b16 %v59
  %v421 = vunpack.c.l.b16 %v60
  %v422 = vunpack.c.h.b16 %v60
  %v423 = vunpack.c.l.b16 %v61
  %v424 = vunpack.c.h.b16 %v61
  %v425 = vunpack.c.l.b16 %v62
  %v426 = vunpack.c.h.b16 %v62
  %v427 = vunpack.c.l.b16 %v63
  %v428 = vunpack.c.h.b16 %v63
  %v429 = vunpack.c.l.b16 %v64
  %v430 = vunpack.c.h.b16 %v64
  %v431 = vunpack.c.l.b16 %v65
  %v432 = vunpack.c.h.b16 %v65
  %v433 = vunpack.c.l.b16 %v66
  %v434 = vunpack.c.h.b16 %v66
  %v435 = vunpack.c.l.b16 %v67
  %v436 = vunpack.c.h.b16 %v67
  %v437 = vunpack.c.l.b16 %v68
  %v438 = vunpack.c.h.b16 %v68
  %v439 = vunpack.c.l.b16 %v69
  %v440 = vunpack.c.h.b16 %v69
  %v441 = vunpack.c.l.b16 %v70
  %v442 = vunpack.c.h.b16 %v70
  %v443 = vunpack.c.l.b16 %v71
  %v444 = vunpack.c.h.b16 %v71
  %v445 = vunpack.c.l.b16 %v72
  %v446 = vunpack.c.h.b16 %v72
  %v447 = vunpack.c.l.b16 %v73
  %v448 = vunpack.c.h.b16 %v73
  %v449 = vunpack.c.l.b16 %v74
  %v450 = vunpack.c.h.b16 %v74
  %v451 = vunpack.c.l.b16 %v75
  %v452 = vunpack.c.h.b16 %v75
  %v453 = vunpack.c.l.b16 %v76
  %v454 = vunpack.c.h.b16 %v76
  %v455 = vunpack.c.l.b16 %v77
  %v456 = vunpack.c.h.b16 %v77
  %v457 = vunpack.c.l.b16 %v78
  %v458 = vunpack.c.h.b16 %v78
  %v459 = vunpack.c.l.b16 %v79
  %v460 = vunpack.c.h.b16 %v79
  %v461 = vunpack.c.l.b16 %v80
  %v462 = vunpack.c.h.b16 %v80
  %v463 = vunpack.c.l.b16 %v81
  %v464 = vunpack.c.h.b16 %v81
  %v465 = vunpack.c.l.b16 %v82
  %v466 = vunpack.c.h.b16 %v82
  %v467 = vunpack.c.l.b16 %v83
  %v468 = vunpack.c.h.b16 %v83
  %v469 = vunpack.c.l.b16 %v84
  %v470 = vunpack.c.h.b16 %v84
  %v471 = vunpack.c.l.b16 %v85
  %v472 = vunpack.c.h.b16 %v85
  %v473 = vunpack.c.l.b16 %v86
  %v474 = vunpack.c.h.b16 %v86
  %v475 = vunpack.c.l.b16 %v87
  %v476 = vunpack.c.h.b16 %v87
  %v477 = vunpack.c.l.b16 %v88
  %v478 = vunpack.c.h.b16 %v88
  %v479 = vunpack.c.l.b16 %v89
  %v480 = vunpack.c.h.b16 %v89
  %v481 = vunpack.c.l.b16 %v90
  %v482 = vunpack.c.h.b16 %v90
  %v483 = vunpack.c.l.b16 %v91
  %v484 = vunpack.c.h.b16 %v91
  %v485 = vunpack.c.l.b16 %v92
  %v486 = vunpack.c.h.b16 %v92
  %v487 = vunpack.c.l.b16 %v93
  %v488 = vunpack.c.h.b16 %v93
  %v489 = vunpack.c.l.b16 %v94
  %v490 = vunpack.c.h.b16 %v94
  %v491 = vunpack.c.l.b16 %v95
  %v492 = vunpack.c.h.b16 %v95
  %v493 = vunpack.c.l.b16 %v96
  %v494 = vunpack.c.h.b16 %v96
  %v495 = vunpack.c.l.b16 %v97
  %v496 = vunpack.c.h.b16 %v97
  %v497 = vunpack.c.l.b16 %v98
  %v498 = vunpack.c.h.b16 %v98
  %v499 = vunpack.c.l.b16 %v99
  %v500 = vunpack.c.h.b16 %v99
  %v501 = vunpack.c.l.b16 %v100
  %v502 = vunpack.c.h.b16 %v100
  %v503 = vunpack.c.l.b16 %v101
  %v504 = vunpack.c.h.b16 %v101
  %v505 = vunpack.c.l.b16 %v102
  %v506 = vunpack.c.h.b16 %v102
  %v507 = vunpack.c.l.b16 %v103
  %v508 = vunpack.c.h.b16 %v103
  %v509 = vunpack.c.l.b16 %v104
  %v510 = vunpack.c.h.b16 %v104
  %v511 = vunpack.c.l.b16 %v105
  %v512 = vunpack.c.h.b16 %v105
  %v513 = vunpack.c.l.b16 %v106
  %v514 = vunpack.c.h.b16 %v106
  %v515 = vunpack.c.l.b16 %v107
  %v516 = vunpack.c.h.b16 %v107
  %v517 = vunpack.c.l.b16 %v108
  %v518 = vunpack.c.h.b16 %v108
  %v519 = vunpack.c.l.b16 %v109
  %v520 = vunpack.c.h.b16 %v109
  %v521 = vunpack.c.l.b16 %v110
  %v522 = vunpack.c.h.b16 %v110
  %v523 = vunpack.c.l.b16 %v111
  %v524 = vunpack.c.h.b16 %v111
  %v525 = vunpack.c.l.b16 %v112
  %v526 = vunpack.c.h.b16 %v112
  %v527 = vunpack.c.l.b16 %v113
  %v528 = vunpack.c.h.b16 %v113
  %v529 = vunpack.c.l.b16 %v114
  %v530 = vunpack.c.h.b16 %v114
  %v531 = vunpack.c.l.b16 %v115
  %v532 = vunpack.c.h.b16 %v115
  %v533 = vunpack.c.l.b16 %v116
  %v534 = vunpack.c.h.b16 %v116
  %v535 = vunpack.c.l.b16 %v117
  %v536 = vunpack.c.h.b16 %v117
  %v537 = vunpack.c.l.b16 %v118
  %v538 = vunpack.c.h.b16 %v118
  %v539 = vunpack.c.l.b16 %v119
  %v540 = vunpack.c.h.b16 %v119
  %v541 = vunpack.c.l.b16 %v120
  %v542 = vunpack.c.h.b16 %v120
  %v543 = vunpack.c.l.b16 %v121
  %v544 = vunpack.c.h.b16 %v121
  %v545 = vunpack.c.l.b16 %v122
  %v546 = vunpack.c.h.b16 %v122
  %v547 = vunpack.c.l.b16 %v123
  %v548 = vunpack.c.h.b16 %v123
  %v549 = vunpack.c.l.b16 %v124
  %v550 = vunpack.c.h.b16 %v124
  %v551 = vunpack.c.l.b16 %v125
  %v552 = vunpack.c.h.b16 %v125
  %v553 = vunpack.c.l.b16 %v126
  %v554 = vunpack.c.h.b16 %v126
  %v555 = vunpack.c.l.b16 %v127
  %v556 = vunpack.c.h.b16 %v127
  %v557 = vunpack.c.l.b16 %v128
  %v558 = vunpack.c.h.b16 %v128
  %v559 = vunpack.c.l.b16 %v129
  %v560 = vunpack.c.h.b16 %v129
  %v561 = vunpack.c.l.b16 %v130
  %v562 = vunpack.c.h.b16 %v130
  %v563 = vunpack.c.l.b16 %v131
  %v564 = vunpack.c.h.b16 %v131
  %v565 = vunpack.c.l.b16 %v132
  %v566 = vunpack.c.h.b16 %v132
  %v567 = vunpack.c.l.b16 %v133
  %v568 = vunpack.c.h.b16 %v133
  %v569 = vunpack.c.l.b16 %v134
  %v570 = vunpack.c.h.b16 %v134
  %v571 = vunpack.c.l.b16 %v135
  %v572 = vunpack.c.h.b16 %v135
  %v573 = vunpack.c.l.b16 %v136
  %v574 = vunpack.c.h.b16 %v136
  %v575 = vunpack.c.l.b16 %v137
  %v576 = vunpack.c.h.b16 %v137
  %v577 = vunpack.c.l.b16 %v138
  %v578 = vunpack.c.h.b16 %v138
  %v579 = vunpack.c.l.b16 %v139
  %v580 = vunpack.c.h.b16 %v139
  %v581 = vunpack.c.l.b16 %v140
  %v582 = vunpack.c.h.b16 %v140
  %v583 = vunpack.c.l.b16 %v141
  %v584 = vunpack.c.h.b16 %v141
  %v585 = vunpack.c.l.b16 %v142
  %v586 = vunpack.c.h.b16 %v142
  %v587 = vunpack.c.l.b16 %v143
  %v588 = vunpack.c.h.b16 %v143
  %v589 = vunpack.c.l.b16 %v144
  %v590 = vunpack.c.h.b16 %v144
  %v591 = vunpack.c.l.b16 %v145
  %v592 = vunpack.c.h.b16 %v145
  %v593 = vunpack.c.l.b16 %v146
  %v594 = vunpack.c.h.b16 %v146
  %v595 = vunpack.c.l.b16 %v147
  %v596 = vunpack.c.h.b16 %v147
  %v597 = vunpack.c.l.b16 %v148
  %v598 = vunpack.c.h.b16 %v148
  %v599 = vunpack.c.l.b16 %v149
  %v600 = vunpack.c.h.b16 %v149
  %v601 = vunpack.c.l.b16 %v150
  %v602 = vunpack.c.h.b16 %v150
  %v603 = vunpack.c.l.b16 %v151
  %v604 = vunpack.c.h.b16 %v151
  %v605 = vunpack.c.l.b16 %v152
  %v606 = vunpack.c.h.b16 %v152
  %v607 = vunpack.c.l.b16 %v153
  %v608 = vunpack.c.h.b16 %v153
  %v609 = vunpack.c.l.b16 %v154
  %v610 = vunpack.c.h.b16 %v154
  %v611 = vunpack.c.l.b16 %v155
  %v612 = vunpack.c.h.b16 %v155
  %v613 = vunpack.c.l.b16 %v156
  %v614 = vunpack.c.h.b16 %v156
  %v615 = vunpack.c.l.b16 %v157
  %v616 = vunpack.c.h.b16 %v157
  %v617 = vunpack.c.l.b16 %v158
  %v618 = vunpack.c.h.b16 %v158
  %v619 = vunpack.c.l.b16 %v159
  %v620 = vunpack.c.h.b16 %v159
  %v621 = vunpack.c.l.b16 %v160
  %v622 = vunpack.c.h.b16 %v160
  %v623 = vunpack.c.l.b16 %v161
  %v624 = vunpack.c.h.b16 %v161
  %v625 = vunpack.c.l.b16 %v162
  %v626 = vunpack.c.h.b16 %v162
  %v627 = vunpack.c.l.b16 %v163
  %v628 = vunpack.c.h.b16 %v163
  %v629 = vunpack.c.l.b16 %v164
  %v630 = vunpack.c.h.b16 %v164
  %v631 = vunpack.c.l.b16 %v165
  %v632 = vunpack.c.h.b16 %v165
  %v633 = vunpack.c.l.b16 %v166
  %v634 = vunpack.c.h.b16 %v166
  %v635 = vunpack.c.l.b16 %v167
  %v636 = vunpack.c.h.b16 %v167
  %v637 = vunpack.c.l.b16 %v168
  %v638 = vunpack.c.h.b16 %v168
  %v639 = vpack.c.b16 %v353, %v351
  %v640 = vpack.c.b16 %v354, %v352
  %v641 = vpack.c.b16 %v357, %v355
  %v642 = vpack.c.b16 %v358, %v356
  %v643 = vpack.c.b16 %v361, %v359
  %v644 = vpack.c.b16 %v362, %v360
  %v645 = vpack.c.b16 %v365, %v363
  %v646 = vpack.c.b16 %v366, %v364
  %v647 = vpack.c.b16 %v369, %v367
  %v648 = vpack.c.b16 %v370, %v368
  %v649 = vpack.c.b16 %v373, %v371
  %v650 = vpack.c.b16 %v374, %v372
  %v651 = vpack.c.b16 %v377, %v375
  %v652 = vpack.c.b16 %v378, %v376
  %v653 = vpack.c.b16 %v381, %v379
  %v654 = vpack.c.b16 %v382, %v380
  %v655 = vpack.c.b16 %v385, %v383
  %v656 = vpack.c.b16 %v386, %v384
  %v657 = vpack.c.b16 %v389, %v387
  %v658 = vpack.c.b16 %v390, %v388
  %v659 = vpack.c.b16 %v393, %v391
  %v660 = vpack.c.b16 %v394, %v392
  %v661 = vpack.c.b16 %v397, %v395
  %v662 = vpack.c.b16 %v398, %v396
  %v663 = vpack.c.b16 %v401, %v399
  %v664 = vpack.c.b16 %v402, %v400
  %v665 = vpack.c.b16 %v405, %v403
  %v666 = vpack.c.b16 %v406, %v404
  %v667 = vpack.c.b16 %v409, %v407
  %v668 = vpack.c.b16 %v410, %v408
  %v669 = vpack.c.b16 %v413, %v411
  %v670 = vpack.c.b16 %v414, %v412
  %v671 = vpack.c.b16 %v417, %v415
  %v672 = vpack.c.b16 %v418, %v416
  %v673 = vpack.c.b16 %v421, %v419
  %v674 = vpack.c.b16 %v422, %v420
  %v675 = vpack.c.b16 %v425, %v423
  %v676 = vpack.c.b16 %v426, %v424
  %v677 = vpack.c.b16 %v429, %v427
  %v678 = vpack.c.b16 %v430, %v428
  %v679 = vpack.c.b16 %v433, %v431
  %v680 = vpack.c.b16 %v434, %v432
  %v681 = vpack.c.b16 %v437, %v435
  %v682 = vpack.c.b16 %v438, %v436
  %v683 = vpack.c.b16 %v441, %v439
  %v684 = vpack.c.b16 %v442, %v440
  %v685 = vpack.c.b16 %v445, %v443
  %v686 = vpack.c.b16 %v446, %v444
  %v687 = vpack.c.b16 %v449, %v447
  %v688 = vpack.c.b16 %v450, %v448
  %v689 = vpack.c.b16 %v453, %v451
  %v690 = vpack.c.b16 %v454, %v452
  %v691 = vpack.c.b16 %v457, %v455
  %v692 = vpack.c.b16 %v458, %v456
  %v693 = vpack.c.b16 %v461, %v459
  %v694 = vpack.c.b16 %v462, %v460
  %v695 = vpack.c.b16 %v465, %v463
  %v696 = vpack.c.b16 %v466, %v464
  %v697 = vpack.c.b16 %v469, %v467
  %v698 = vpack.c.b16 %v470, %v468
  %v699 = vpack.c.b16 %v473, %v471
  %v700 = vpack.c.b16 %v474, %v472
  %v701 = vpack.c.b16 %v477, %v475
  %v702 = vpack.c.b16 %v478, %v476
  %v703 = vpack.c.b16 %v481, %v479
  %v704 = vpack.c.b16 %v482, %v480
  %v705 = vpack.c.b16 %v485, %v483
  %v706 = vpack.c.b16 %v486, %v484
  %v707 = vpack.c.b16 %v489, %v487
  %v708 = vpack.c.b16 %v490, %v488
  %v709 = vpack.c.b16 %v493, %v491
  %v710 = vpack.c.b16 %v494, %v492
  %v711 = vpack.c.b16 %v497, %v495
  %v712 = vpack.c.b16 %v498, %v496
  %v713 = vpack.c.b16 %v501, %v499
  %v714 = vpack.c.b16 %v502, %v500
  %v715 = vpack.c.b16 %v505, %v503
  %v716 = vpack.c.b16 %v506, %v504
  %v717 = vpack.c.b16 %v509, %v507
  %v718 = vpack.c.b16 %v510, %v508
  %v719 = vpack.c.b16 %v513, %v511
  %v720 = vpack.c.b16 %v514, %v512
  %v721 = vpack.c.b16 %v517, %v515
  %v722 = vpack.c.b16 %v518, %v516
  %v723 = vpack.c.b16 %v521, %v519
  %v724 = vpack.c.b16 %v522, %v520
  %v725 = vpack.c.b16 %v525, %v523
  %v726 = vpack.c.b16 %v526, %v524
  %v727 = vpack.c.b16 %v529, %v527
  %v728 = vpack.c.b16 %v530, %v528
  %v729 = vpack.c.b16 %v533, %v531
  %v730 = vpack.c.b16 %v534, %v532
  %v731 = vpack.c.b16 %v537, %v535
  %v732 = vpack.c.b16 %v538, %v536
  %v733 = vpack.c.b16 %v541, %v539
  %v734 = vpack.c.b16 %v542, %v540
  %v735 = vpack.c.b16 %v545, %v543
  %v736 = vpack.c.b16 %v546, %v544
  %v737 = vpack.c.b16 %v549, %v547
  %v738 = vpack.c.b16 %v550, %v548
  %v739 = vpack.c.b16 %v553, %v551
  %v740 = vpack.c.b16 %v554, %v552
  %v741 = vpack.c.b16 %v557, %v555
  %v742 = vpack.c.b16 %v558, %v556
  %v743 = vpack.c.b16 %v561, %v559
  %v744 = vpack.c.b16 %v562, %v560
  %v745 = vpack.c.b16 %v565, %v563
  %v746 = vpack.c.b16 %v566, %v564
  %v747 = vpack.c.b16 %v569, %v567
  %v748 = vpack.c.b16 %v570, %v568
  %v749 = vpack.c.b16 %v573, %v571
  %v750 = vpack.c.b16 %v574, %v572
  %v751 = vpack.c.b16 %v577, %v575
  %v752 = vpack.c.b16 %v578, %v576
  %v753 = vpack.c.b16 %v581, %v579
  %v754 = vpack.c.b16 %v582, %v580
  %v755 = vpack.c.b16 %v585, %v583
  %v756 = vpack.c.b16 %v586, %v584
  %v757 = vpack.c.b16 %v589, %v587
  %v758 = vpack.c.b16 %v590, %v588
  %v759 = vpack.c.b16 %v593, %v591
  %v760 = vpack.c.b16 %v594, %v592
  %v761 = vpack.c.b16 %v597, %v595
  %v762 = vpack.c.b16 %v598, %v596
  %v763 = vpack.c.b16 %v601, %v599
  %v764 = vpack.c.b16 %v602, %v600
  %v765 = vpack.c.b16 %v605, %v603
  %v766 = vpack.c.b16 %v606, %v604
  %v767 = vpack.c.b16 %v609, %v607
  %v768 = vpack.c.b16 %v610, %v608
  %v769 = vpack.c.b16 %v613, %v611
  %v770 = vpack.c.b16 %v614, %v612
  %v771 = vpack.c.b16 %v617, %v615
  %v772 = vpack.c.b16 %v618, %v616
  %v773 = vpack.c.b16 %v621, %v619
  %v774 = vpack.c.b16 %v622, %v620
  %v775 = vpack.c.b16 %v625, %v623
  %v776 = vpack.c.b16 %v626, %v624
  %v777 = vpack.c.b16 %v629, %v627
  %v778 = vpack.c.b16 %v630, %v628
  %v779 = vpack.c.b16 %v633, %v631
  %v780 = vpack.c.b16 %v634, %v632
  %v781 = vpack.c.b16 %v637, %v635
  %v782 = vpack.c.b16 %v638, %v636
  %927 = vmatpush.bf16.msra.mxu0 %v653
  %928 = vmatpush.bf16.msra.mxu0 %v651
  %929 = vmatpush.bf16.msra.mxu0 %v649
  %930 = vmatpush.bf16.msra.mxu0 %v647
  %931 = vmatpush.bf16.msra.mxu0 %v645
  %932 = vmatpush.bf16.msra.mxu0 %v643
  %933 = vmatpush.bf16.msra.mxu0 %v641
  %934 = vmatpush.bf16.msra.mxu0 %v639
  %935 = vmatmul.bf16.gmra.mxu0 %v189
  %v936 = vpop.f32.mrf.mxu0
  %v937 = vadd.f32 %v171, %v936
  %v938 = vpop.f32.mrf.mxu0
  %939 = vdwg.mxu0
  %940 = vmatpush.bf16.msra.mxu0 %v669
  %941 = vmatpush.bf16.msra.mxu0 %v667
  %942 = vmatpush.bf16.msra.mxu0 %v665
  %943 = vmatpush.bf16.msra.mxu0 %v663
  %944 = vmatpush.bf16.msra.mxu0 %v661
  %945 = vmatpush.bf16.msra.mxu0 %v659
  %946 = vmatpush.bf16.msra.mxu0 %v657
  %947 = vmatpush.bf16.msra.mxu0 %v655
  %948 = vmatmul.bf16.gmra.mxu0 %v190
  %v949 = vpop.f32.mrf.mxu0
  %v950 = vadd.f32 %v937, %v949
  %v951 = vpop.f32.mrf.mxu0
  %952 = vdwg.mxu0
  %953 = vmatpush.bf16.msra.mxu0 %v685
  %954 = vmatpush.bf16.msra.mxu0 %v683
  %955 = vmatpush.bf16.msra.mxu0 %v681
  %956 = vmatpush.bf16.msra.mxu0 %v679
  %957 = vmatpush.bf16.msra.mxu0 %v677
  %958 = vmatpush.bf16.msra.mxu0 %v675
  %959 = vmatpush.bf16.msra.mxu0 %v673
  %960 = vmatpush.bf16.msra.mxu0 %v671
  %961 = vmatmul.bf16.gmra.mxu0 %v191
  %v962 = vpop.f32.mrf.mxu0
  %v963 = vadd.f32 %v950, %v962
  %v964 = vpop.f32.mrf.mxu0
  %965 = vdwg.mxu0
  %966 = vmatpush.bf16.msra.mxu0 %v701
  %967 = vmatpush.bf16.msra.mxu0 %v699
  %968 = vmatpush.bf16.msra.mxu0 %v697
  %969 = vmatpush.bf16.msra.mxu0 %v695
  %970 = vmatpush.bf16.msra.mxu0 %v693
  %971 = vmatpush.bf16.msra.mxu0 %v691
  %972 = vmatpush.bf16.msra.mxu0 %v689
  %973 = vmatpush.bf16.msra.mxu0 %v687
  %974 = vmatmul.bf16.gmra.mxu0 %v192
  %v975 = vpop.f32.mrf.mxu0
  %v976 = vadd.f32 %v963, %v975
  %v977 = vpop.f32.mrf.mxu0
  %978 = vdwg.mxu0
  %979 = vmatpush.bf16.msra.mxu0 %v717
  %980 = vmatpush.bf16.msra.mxu0 %v715
  %981 = vmatpush.bf16.msra.mxu0 %v713
  %982 = vmatpush.bf16.msra.mxu0 %v711
  %983 = vmatpush.bf16.msra.mxu0 %v709
  %984 = vmatpush.bf16.msra.mxu0 %v707
  %985 = vmatpush.bf16.msra.mxu0 %v705
  %986 = vmatpush.bf16.msra.mxu0 %v703
  %987 = vmatmul.bf16.gmra.mxu0 %v193
  %v988 = vpop.f32.mrf.mxu0
  %v989 = vadd.f32 %v976, %v988
  %v990 = vpop.f32.mrf.mxu0
  %991 = vdwg.mxu0
  %992 = vmatpush.bf16.msra.mxu0 %v733
  %993 = vmatpush.bf16.msra.mxu0 %v731
  %994 = vmatpush.bf16.msra.mxu0 %v729
  %995 = vmatpush.bf16.msra.mxu0 %v727
  %996 = vmatpush.bf16.msra.mxu0 %v725
  %997 = vmatpush.bf16.msra.mxu0 %v723
  %998 = vmatpush.bf16.msra.mxu0 %v721
  %999 = vmatpush.bf16.msra.mxu0 %v719
  %1000 = vmatmul.bf16.gmra.mxu0 %v194
  %v1001 = vpop.f32.mrf.mxu0
  %v1002 = vadd.f32 %v989, %v1001
  %v1003 = vpop.f32.mrf.mxu0
  %1004 = vdwg.mxu0
  %1005 = vmatpush.bf16.msra.mxu0 %v749
  %1006 = vmatpush.bf16.msra.mxu0 %v747
  %1007 = vmatpush.bf16.msra.mxu0 %v745
  %1008 = vmatpush.bf16.msra.mxu0 %v743
  %1009 = vmatpush.bf16.msra.mxu0 %v741
  %1010 = vmatpush.bf16.msra.mxu0 %v739
  %1011 = vmatpush.bf16.msra.mxu0 %v737
  %1012 = vmatpush.bf16.msra.mxu0 %v735
  %1013 = vmatmul.bf16.gmra.mxu0 %v195
  %v1014 = vpop.f32.mrf.mxu0
  %v1015 = vadd.f32 %v1002, %v1014
  %v1016 = vpop.f32.mrf.mxu0
  %1017 = vdwg.mxu0
  %1018 = vmatpush.bf16.msra.mxu0 %v765
  %1019 = vmatpush.bf16.msra.mxu0 %v763
  %1020 = vmatpush.bf16.msra.mxu0 %v761
  %1021 = vmatpush.bf16.msra.mxu0 %v759
  %1022 = vmatpush.bf16.msra.mxu0 %v757
  %1023 = vmatpush.bf16.msra.mxu0 %v755
  %1024 = vmatpush.bf16.msra.mxu0 %v753
  %1025 = vmatpush.bf16.msra.mxu0 %v751
  %1026 = vmatmul.bf16.gmra.mxu0 %v196
  %v1027 = vpop.f32.mrf.mxu0
  %v1028 = vadd.f32 %v1015, %v1027
  %v1029 = vpop.f32.mrf.mxu0
  %1030 = vdwg.mxu0
  %1031 = vmatpush.bf16.msra.mxu0 %v781
  %1032 = vmatpush.bf16.msra.mxu0 %v779
  %1033 = vmatpush.bf16.msra.mxu0 %v777
  %1034 = vmatpush.bf16.msra.mxu0 %v775
  %1035 = vmatpush.bf16.msra.mxu0 %v773
  %1036 = vmatpush.bf16.msra.mxu0 %v771
  %1037 = vmatpush.bf16.msra.mxu0 %v769
  %1038 = vmatpush.bf16.msra.mxu0 %v767
  %1039 = vmatmul.bf16.gmra.mxu0 %v197
  %v1040 = vpop.f32.mrf.mxu0
  %v1041 = vadd.f32 %v1028, %v1040
  %v1042 = vpop.f32.mrf.mxu0
  %1043 = vdwg.mxu0
  %1044 = vmatpush.bf16.msra.mxu0 %v654
  %1045 = vmatpush.bf16.msra.mxu0 %v652
  %1046 = vmatpush.bf16.msra.mxu0 %v650
  %1047 = vmatpush.bf16.msra.mxu0 %v648
  %1048 = vmatpush.bf16.msra.mxu0 %v646
  %1049 = vmatpush.bf16.msra.mxu0 %v644
  %1050 = vmatpush.bf16.msra.mxu0 %v642
  %1051 = vmatpush.bf16.msra.mxu0 %v640
  %1052 = vmatmul.bf16.gmra.mxu0 %v189
  %v1053 = vpop.f32.mrf.mxu0
  %v1054 = vadd.f32 %v172, %v1053
  %v1055 = vpop.f32.mrf.mxu0
  %1056 = vdwg.mxu0
  %1057 = vmatpush.bf16.msra.mxu0 %v670
  %1058 = vmatpush.bf16.msra.mxu0 %v668
  %1059 = vmatpush.bf16.msra.mxu0 %v666
  %1060 = vmatpush.bf16.msra.mxu0 %v664
  %1061 = vmatpush.bf16.msra.mxu0 %v662
  %1062 = vmatpush.bf16.msra.mxu0 %v660
  %1063 = vmatpush.bf16.msra.mxu0 %v658
  %1064 = vmatpush.bf16.msra.mxu0 %v656
  %1065 = vmatmul.bf16.gmra.mxu0 %v190
  %v1066 = vpop.f32.mrf.mxu0
  %v1067 = vadd.f32 %v1054, %v1066
  %v1068 = vpop.f32.mrf.mxu0
  %1069 = vdwg.mxu0
  %1070 = vmatpush.bf16.msra.mxu0 %v686
  %1071 = vmatpush.bf16.msra.mxu0 %v684
  %1072 = vmatpush.bf16.msra.mxu0 %v682
  %1073 = vmatpush.bf16.msra.mxu0 %v680
  %1074 = vmatpush.bf16.msra.mxu0 %v678
  %1075 = vmatpush.bf16.msra.mxu0 %v676
  %1076 = vmatpush.bf16.msra.mxu0 %v674
  %1077 = vmatpush.bf16.msra.mxu0 %v672
  %1078 = vmatmul.bf16.gmra.mxu0 %v191
  %v1079 = vpop.f32.mrf.mxu0
  %v1080 = vadd.f32 %v1067, %v1079
  %v1081 = vpop.f32.mrf.mxu0
  %1082 = vdwg.mxu0
  %1083 = vmatpush.bf16.msra.mxu0 %v702
  %1084 = vmatpush.bf16.msra.mxu0 %v700
  %1085 = vmatpush.bf16.msra.mxu0 %v698
  %1086 = vmatpush.bf16.msra.mxu0 %v696
  %1087 = vmatpush.bf16.msra.mxu0 %v694
  %1088 = vmatpush.bf16.msra.mxu0 %v692
  %1089 = vmatpush.bf16.msra.mxu0 %v690
  %1090 = vmatpush.bf16.msra.mxu0 %v688
  %1091 = vmatmul.bf16.gmra.mxu0 %v192
  %v1092 = vpop.f32.mrf.mxu0
  %v1093 = vadd.f32 %v1080, %v1092
  %v1094 = vpop.f32.mrf.mxu0
  %1095 = vdwg.mxu0
  %1096 = vmatpush.bf16.msra.mxu0 %v718
  %1097 = vmatpush.bf16.msra.mxu0 %v716
  %1098 = vmatpush.bf16.msra.mxu0 %v714
  %1099 = vmatpush.bf16.msra.mxu0 %v712
  %1100 = vmatpush.bf16.msra.mxu0 %v710
  %1101 = vmatpush.bf16.msra.mxu0 %v708
  %1102 = vmatpush.bf16.msra.mxu0 %v706
  %1103 = vmatpush.bf16.msra.mxu0 %v704
  %1104 = vmatmul.bf16.gmra.mxu0 %v193
  %v1105 = vpop.f32.mrf.mxu0
  %v1106 = vadd.f32 %v1093, %v1105
  %v1107 = vpop.f32.mrf.mxu0
  %1108 = vdwg.mxu0
  %1109 = vmatpush.bf16.msra.mxu0 %v734
  %1110 = vmatpush.bf16.msra.mxu0 %v732
  %1111 = vmatpush.bf16.msra.mxu0 %v730
  %1112 = vmatpush.bf16.msra.mxu0 %v728
  %1113 = vmatpush.bf16.msra.mxu0 %v726
  %1114 = vmatpush.bf16.msra.mxu0 %v724
  %1115 = vmatpush.bf16.msra.mxu0 %v722
  %1116 = vmatpush.bf16.msra.mxu0 %v720
  %1117 = vmatmul.bf16.gmra.mxu0 %v194
  %v1118 = vpop.f32.mrf.mxu0
  %v1119 = vadd.f32 %v1106, %v1118
  %v1120 = vpop.f32.mrf.mxu0
  %1121 = vdwg.mxu0
  %1122 = vmatpush.bf16.msra.mxu0 %v750
  %1123 = vmatpush.bf16.msra.mxu0 %v748
  %1124 = vmatpush.bf16.msra.mxu0 %v746
  %1125 = vmatpush.bf16.msra.mxu0 %v744
  %1126 = vmatpush.bf16.msra.mxu0 %v742
  %1127 = vmatpush.bf16.msra.mxu0 %v740
  %1128 = vmatpush.bf16.msra.mxu0 %v738
  %1129 = vmatpush.bf16.msra.mxu0 %v736
  %1130 = vmatmul.bf16.gmra.mxu0 %v195
  %v1131 = vpop.f32.mrf.mxu0
  %v1132 = vadd.f32 %v1119, %v1131
  %v1133 = vpop.f32.mrf.mxu0
  %1134 = vdwg.mxu0
  %1135 = vmatpush.bf16.msra.mxu0 %v766
  %1136 = vmatpush.bf16.msra.mxu0 %v764
  %1137 = vmatpush.bf16.msra.mxu0 %v762
  %1138 = vmatpush.bf16.msra.mxu0 %v760
  %1139 = vmatpush.bf16.msra.mxu0 %v758
  %1140 = vmatpush.bf16.msra.mxu0 %v756
  %1141 = vmatpush.bf16.msra.mxu0 %v754
  %1142 = vmatpush.bf16.msra.mxu0 %v752
  %1143 = vmatmul.bf16.gmra.mxu0 %v196
  %v1144 = vpop.f32.mrf.mxu0
  %v1145 = vadd.f32 %v1132, %v1144
  %v1146 = vpop.f32.mrf.mxu0
  %1147 = vdwg.mxu0
  %1148 = vmatpush.bf16.msra.mxu0 %v782
  %1149 = vmatpush.bf16.msra.mxu0 %v780
  %1150 = vmatpush.bf16.msra.mxu0 %v778
  %1151 = vmatpush.bf16.msra.mxu0 %v776
  %1152 = vmatpush.bf16.msra.mxu0 %v774
  %1153 = vmatpush.bf16.msra.mxu0 %v772
  %1154 = vmatpush.bf16.msra.mxu0 %v770
  %1155 = vmatpush.bf16.msra.mxu0 %v768
  %1156 = vmatmul.bf16.gmra.mxu0 %v197
  %v1157 = vpop.f32.mrf.mxu0
  %v1158 = vadd.f32 %v1145, %v1157
  %v1159 = vpop.f32.mrf.mxu0
  %1160 = vdwg.mxu0
  %v1161 = vmax.f32 %v1041, 0.0
  %v1162 = vmax.f32 %v1158, 0.0
  %v1163 = vpack.c.bf16 %v1161, %v1161
  %v1164 = vpack.c.bf16 %v1162, %v1162
  %v1165 = vld [vmem:[%s3] sm:$0xf]
  %v1166 = vld [vmem:[%s3 + $0x4] sm:$0xf]
  %v1167 = vld [vmem:[%s3 + $0x8] sm:$0xf]
  %v1168 = vld [vmem:[%s3 + $0xc] sm:$0xf]
  %v1169 = vld [vmem:[%s3 + $0x10] sm:$0xf]
  %v1170 = vld [vmem:[%s3 + $0x14] sm:$0xf]
  %v1171 = vld [vmem:[%s3 + $0x18] sm:$0xf]
  %v1172 = vld [vmem:[%s3 + $0x1c] sm:$0xf]
  %v1173 = vld [vmem:[%s3 + $0x20] sm:$0xf]
  %v1174 = vld [vmem:[%s3 + $0x24] sm:$0xf]
  %v1175 = vld [vmem:[%s3 + $0x28] sm:$0xf]
  %v1176 = vld [vmem:[%s3 + $0x2c] sm:$0xf]
  %v1177 = vld [vmem:[%s3 + $0x30] sm:$0xf]
  %v1178 = vld [vmem:[%s3 + $0x34] sm:$0xf]
  %v1179 = vld [vmem:[%s3 + $0x38] sm:$0xf]
  %v1180 = vld [vmem:[%s3 + $0x3c] sm:$0xf]
  %v1181 = vld [vmem:[%s3 + $0x40] sm:$0xf]
  %v1182 = vld [vmem:[%s3 + $0x44] sm:$0xf]
  %v1183 = vld [vmem:[%s3 + $0x48] sm:$0xf]
  %v1184 = vld [vmem:[%s3 + $0x4c] sm:$0xf]
  %v1185 = vld [vmem:[%s3 + $0x50] sm:$0xf]
  %v1186 = vld [vmem:[%s3 + $0x54] sm:$0xf]
  %v1187 = vld [vmem:[%s3 + $0x58] sm:$0xf]
  %v1188 = vld [vmem:[%s3 + $0x5c] sm:$0xf]
  %v1189 = vld [vmem:[%s3 + $0x60] sm:$0xf]
  %v1190 = vld [vmem:[%s3 + $0x64] sm:$0xf]
  %v1191 = vld [vmem:[%s3 + $0x68] sm:$0xf]
  %v1192 = vld [vmem:[%s3 + $0x6c] sm:$0xf]
  %v1193 = vld [vmem:[%s3 + $0x70] sm:$0xf]
  %v1194 = vld [vmem:[%s3 + $0x74] sm:$0xf]
  %v1195 = vld [vmem:[%s3 + $0x78] sm:$0xf]
  %v1196 = vld [vmem:[%s3 + $0x7c] sm:$0xf]
  %v1197 = vld [vmem:[%s4] sm:$0x1]
  %v1199 = vperm.slane %v1197, 0
  %v1233 = vunpack.c.l.b16 %v1165
  %v1234 = vunpack.c.l.b16 %v1166
  %v1235 = vunpack.c.l.b16 %v1167
  %v1236 = vunpack.c.l.b16 %v1168
  %v1237 = vunpack.c.l.b16 %v1169
  %v1238 = vunpack.c.l.b16 %v1170
  %v1239 = vunpack.c.l.b16 %v1171
  %v1240 = vunpack.c.l.b16 %v1172
  %v1241 = vunpack.c.l.b16 %v1173
  %v1242 = vunpack.c.l.b16 %v1174
  %v1243 = vunpack.c.l.b16 %v1175
  %v1244 = vunpack.c.l.b16 %v1176
  %v1245 = vunpack.c.l.b16 %v1177
  %v1246 = vunpack.c.l.b16 %v1178
  %v1247 = vunpack.c.l.b16 %v1179
  %v1248 = vunpack.c.l.b16 %v1180
  %v1249 = vunpack.c.l.b16 %v1181
  %v1250 = vunpack.c.l.b16 %v1182
  %v1251 = vunpack.c.l.b16 %v1183
  %v1252 = vunpack.c.l.b16 %v1184
  %v1253 = vunpack.c.l.b16 %v1185
  %v1254 = vunpack.c.l.b16 %v1186
  %v1255 = vunpack.c.l.b16 %v1187
  %v1256 = vunpack.c.l.b16 %v1188
  %v1257 = vunpack.c.l.b16 %v1189
  %v1258 = vunpack.c.l.b16 %v1190
  %v1259 = vunpack.c.l.b16 %v1191
  %v1260 = vunpack.c.l.b16 %v1192
  %v1261 = vunpack.c.l.b16 %v1193
  %v1262 = vunpack.c.l.b16 %v1194
  %v1263 = vunpack.c.l.b16 %v1195
  %v1264 = vunpack.c.l.b16 %v1196
  %v1265 = vpack.c.b16 %v1234, %v1233
  %v1266 = vpack.c.b16 %v1236, %v1235
  %v1267 = vpack.c.b16 %v1238, %v1237
  %v1268 = vpack.c.b16 %v1240, %v1239
  %v1269 = vpack.c.b16 %v1242, %v1241
  %v1270 = vpack.c.b16 %v1244, %v1243
  %v1271 = vpack.c.b16 %v1246, %v1245
  %v1272 = vpack.c.b16 %v1248, %v1247
  %v1273 = vpack.c.b16 %v1250, %v1249
  %v1274 = vpack.c.b16 %v1252, %v1251
  %v1275 = vpack.c.b16 %v1254, %v1253
  %v1276 = vpack.c.b16 %v1256, %v1255
  %v1277 = vpack.c.b16 %v1258, %v1257
  %v1278 = vpack.c.b16 %v1260, %v1259
  %v1279 = vpack.c.b16 %v1262, %v1261
  %v1280 = vpack.c.b16 %v1264, %v1263
  %1297 = vmatpush.bf16.msra.mxu0 %v1272
  %1298 = vmatpush.bf16.msra.mxu0 %v1271
  %1299 = vmatpush.bf16.msra.mxu0 %v1270
  %1300 = vmatpush.bf16.msra.mxu0 %v1269
  %1301 = vmatpush.bf16.msra.mxu0 %v1268
  %1302 = vmatpush.bf16.msra.mxu0 %v1267
  %1303 = vmatpush.bf16.msra.mxu0 %v1266
  %1304 = vmatpush.bf16.msra.mxu0 %v1265
  %1305 = vmatmul.bf16.gmra.mxu0 %v1163
  %v1306 = vpop.f32.mrf.mxu0
  %v1307 = vadd.f32 %v1199, %v1306
  %v1308 = vpop.f32.mrf.mxu0
  %1309 = vdwg.mxu0
  %1310 = vmatpush.bf16.msra.mxu0 %v1280
  %1311 = vmatpush.bf16.msra.mxu0 %v1279
  %1312 = vmatpush.bf16.msra.mxu0 %v1278
  %1313 = vmatpush.bf16.msra.mxu0 %v1277
  %1314 = vmatpush.bf16.msra.mxu0 %v1276
  %1315 = vmatpush.bf16.msra.mxu0 %v1275
  %1316 = vmatpush.bf16.msra.mxu0 %v1274
  %1317 = vmatpush.bf16.msra.mxu0 %v1273
  %1318 = vmatmul.bf16.gmra.mxu0 %v1164
  %v1319 = vpop.f32.mrf.mxu0
  %v1320 = vadd.f32 %v1307, %v1319
  %v1321 = vpop.f32.mrf.mxu0
  %1322 = vdwg.mxu0
  %vm1323 = vcmask 80896
  %1324 = vst.msk [vmem:[%s5] sm:$0xff] %vm1323, %v1320
  // Predicated region
  $region22: #{torch_cnn_forward.7} parent=0 // pred_check
    _
  $region23: #{torch_cnn_forward.7} parent=0 // pred_check_branch
    %1326 = sbr.rel (0) target = $region25
  $region24: #{torch_cnn_forward.7} parent=0 // pred_region
    _
  $region25: #{torch_cnn_forward.7} parent=0 // pred_fallthru
    _
  // Predicated region
  $region26: #{torch_cnn_forward.7} parent=0 // pred_check
    _
  $region27: #{torch_cnn_forward.7} parent=0 // pred_check_branch
    %1328 = sbr.rel (0) target = $region29
  $region28: #{torch_cnn_forward.7} parent=0 // pred_region
    _
  $region29: #{torch_cnn_forward.7} parent=0 // pred_fallthru
    _

</llo_original>
